<compile_context>
chip_gen: v5e
topology: v5e:2x2
jax: 0.10.0
libtpu: 0.0.40
codegen_flags: <defaults>
</compile_context>

<pallas_src>
import functools

import jax
import jax.numpy as jnp
from jax import lax
from jax.experimental import pallas as pl
from jax.experimental.pallas import tpu as pltpu

K = 3  # kernel_size of CausalConv2d in BasicBlock


# ----------------------------- Pallas kernel ------------------------------- #

def _basic_block_kernel(xp_ref, w1_ref, w2_ref, o_ref, mid_ref, *,
                        cin, cout, f, t, isfinal):
    """Fused BasicBlock forward for one batch element.

    xp_ref : (1, cin, F+2, T+2)  causally padded input (freq (1,1), time (2,0))
    w1_ref : SMEM f32[cout*cin*K*K]   weight-normed conv1 weights (OIHW, flat)
    w2_ref : SMEM f32[cout*cout*K*K]  weight-normed conv2 weights (OIHW, flat)
    o_ref  : (1, cout, F, T)
    mid_ref: VMEM scratch (cout, F+2, T+2) -- conv1 activation, padded for conv2
    """
    # ------------------ conv1 + ReLU -> padded VMEM scratch ---------------- #
    accs = [jnp.zeros((f, t), jnp.float32) for _ in range(cout)]
    for ci in range(cin):
        xc = xp_ref[0, ci, :, :]                       # (F+2, T+2), loaded once
        for kh in range(K):
            for kw in range(K):
                xs = xc[kh:kh + f, kw:kw + t]          # hoisted tap window
                for co in range(cout):
                    w = w1_ref[((co * cin + ci) * K + kh) * K + kw]
                    accs[co] = accs[co] + w * xs
    mid_ref[...] = jnp.zeros_like(mid_ref)             # causal zero padding
    mid_ref[:, 1:1 + f, 2:2 + t] = jnp.stack(
        [jnp.maximum(a, 0.0) for a in accs], axis=0)

    # --------------- conv2 + residual add (+ optional ReLU) ---------------- #
    accs = [jnp.zeros((f, t), jnp.float32) for _ in range(cout)]
    for ci in range(cout):
        mc = mid_ref[ci, :, :]                         # (F+2, T+2)
        for kh in range(K):
            for kw in range(K):
                xs = mc[kh:kh + f, kw:kw + t]          # hoisted tap window
                for co in range(cout):
                    w = w2_ref[((co * cout + ci) * K + kh) * K + kw]
                    accs[co] = accs[co] + w * xs
    identity = xp_ref[0, :, 1:1 + f, 2:2 + t].astype(jnp.float32)
    out = jnp.stack(accs, axis=0) + identity
    if not isfinal:
        out = jnp.maximum(out, 0.0)
    o_ref[0, :, :, :] = out.astype(o_ref.dtype)


# ------------------------------ JAX wrappers -------------------------------- #

def weight_norm_weight(v_oihw, g):
    # torch weight_norm (dim=0): w = g * v / ||v||, norm over (in, kh, kw).
    v = v_oihw.astype(jnp.float32)
    norm = jnp.sqrt(jnp.sum(v ** 2, axis=(1, 2, 3), keepdims=True))
    return (g.astype(jnp.float32).reshape(-1, 1, 1, 1) / norm) * v


def basic_block_forward(x_nchw, params, isfinal=False):
    """BasicBlock.forward with downsample=None, stride=1 (fused Pallas call)."""
    n, cin, f, t = x_nchw.shape
    cout = params["v1"].shape[0]
    # TODO(synk): stride > 1 and the external `downsample` module are not
    # implemented (BasicBlock defaults: stride=1, downsample=None); the
    # identity residual requires cin == cout.
    assert cin == cout

    w1 = weight_norm_weight(params["v1"], params["g1"]).reshape(-1)   # SMEM table
    w2 = weight_norm_weight(params["v2"], params["g2"]).reshape(-1)   # SMEM table
    # Causal padding done once in the wrapper: freq (1,1), time (2,0).
    xp = jnp.pad(x_nchw, ((0, 0), (0, 0), (1, 1), (2, 0)))

    kern = functools.partial(_basic_block_kernel, cin=cin, cout=cout,
                             f=f, t=t, isfinal=isfinal)

    # TODO(synk): for production shapes, tile T in multiples of 128 (lane-dense
    # stores) and switch to an im2col + MXU matmul if channel counts reach ~64+.
    return pl.pallas_call(
        kern,
        out_shape=jax.ShapeDtypeStruct((n, cout, f, t), x_nchw.dtype),
        grid=(n,),
        in_specs=[
            pl.BlockSpec((1, cin, f + 2, t + 2), lambda i: (i, 0, 0, 0)),
            pl.BlockSpec(memory_space=pltpu.MemorySpace.SMEM),
            pl.BlockSpec(memory_space=pltpu.MemorySpace.SMEM),
        ],
        out_specs=pl.BlockSpec((1, cout, f, t), lambda i: (i, 0, 0, 0)),
        scratch_shapes=[pltpu.VMEM((cout, f + 2, t + 2), jnp.float32)],
        compiler_params=pltpu.CompilerParams(
            dimension_semantics=("parallel",)),
    )(xp, w1, w2)


# ----------------------------- pure-JAX reference --------------------------- #

def _ref_forward(x_nchw, params, isfinal=False):
    def causal_conv(x, w):
        xpad = jnp.pad(x, ((0, 0), (0, 0), (1, 1), (2, 0)))
        return lax.conv_general_dilated(
            xpad, w, window_strides=(1, 1), padding="VALID",
            dimension_numbers=("NCHW", "OIHW", "NCHW"))

    w1 = weight_norm_weight(params["v1"], params["g1"])
    w2 = weight_norm_weight(params["v2"], params["g2"])
    out = jnp.maximum(causal_conv(x_nchw, w1), 0.0)
    out = causal_conv(out, w2) + x_nchw
    if not isfinal:
        out = jnp.maximum(out, 0.0)
    return out


# ----------------------------------- main ----------------------------------- #

if __name__ == "__main__":
    key = jax.random.PRNGKey(0)
    k_x, k_v1, k_v2 = jax.random.split(key, 3)

    N, C, F_DIM, T_DIM = 2, 4, 16, 16       # conv_dim = out_channels = 4
    COUT = C

    x = jax.random.normal(k_x, (N, C, F_DIM, T_DIM), jnp.float32)
    v1 = jax.random.normal(k_v1, (COUT, C, K, K), jnp.float32) * 0.2
    v2 = jax.random.normal(k_v2, (COUT, COUT, K, K), jnp.float32) * 0.2
    g1 = 0.5 * jnp.arange(1, COUT + 1, dtype=jnp.float32)
    g2 = 0.3 * jnp.arange(1, COUT + 1, dtype=jnp.float32)
    params = dict(v1=v1, g1=g1, v2=v2, g2=g2)

    out = basic_block_forward(x, params, isfinal=False)
    out = jax.block_until_ready(out)

    ref = _ref_forward(x, params, isfinal=False)
    assert out.shape == (N, COUT, F_DIM, T_DIM)
    assert jnp.allclose(out, ref, atol=1e-4, rtol=1e-4)

    print("KERNEL_OK")
</pallas_src>

<mosaic_0001>
module attributes {stable_mosaic.version = 11 : i64} {
  func.func @_basic_block_kernel(%arg0: i32, %arg1: memref<1x4x18x18xf32, #tpu.memory_space<vmem>>, %arg2: memref<144xf32, #tpu.memory_space<smem>>, %arg3: memref<144xf32, #tpu.memory_space<smem>>, %arg4: memref<1x4x16x16xf32, #tpu.memory_space<vmem>>, %arg5: memref<4x18x18xf32, #tpu.memory_space<vmem>>) attributes {dimension_semantics = [#tpu.dimension_semantics<parallel>], iteration_bounds = array<i64: 2>, scalar_prefetch = 0 : i64, scratch_operands = 1 : i64, tpu.core_type = #tpu.core_type<tc>, window_params = [{transform_indices = @transform_0, window_bounds = array<i64: 1, 4, 18, 18>}, {transform_indices = @transform_1, window_bounds = array<i64: 144>}, {transform_indices = @transform_2, window_bounds = array<i64: 144>}, {transform_indices = @transform_3, window_bounds = array<i64: 1, 4, 16, 16>}]} {
    %cst = arith.constant 0.000000e+00 : f32
    %0 = vector.broadcast %cst : f32 to vector<16x16xf32>
    %cst_0 = arith.constant 0.000000e+00 : f32
    %1 = vector.broadcast %cst_0 : f32 to vector<16x16xf32>
    %cst_1 = arith.constant 0.000000e+00 : f32
    %2 = vector.broadcast %cst_1 : f32 to vector<16x16xf32>
    %cst_2 = arith.constant 0.000000e+00 : f32
    %3 = vector.broadcast %cst_2 : f32 to vector<16x16xf32>
    %c0 = arith.constant 0 : index
    %c0_3 = arith.constant 0 : index
    %c0_4 = arith.constant 0 : index
    %c0_5 = arith.constant 0 : index
    %4 = vector.load %arg1[%c0, %c0_3, %c0_4, %c0_5] : memref<1x4x18x18xf32, #tpu.memory_space<vmem>>, vector<1x1x18x18xf32>
    %5 = vector.shape_cast %4 : vector<1x1x18x18xf32> to vector<18x18xf32>
    %6 = vector.extract_strided_slice %5 {offsets = [0, 0], sizes = [16, 16], strides = [1, 1]} : vector<18x18xf32> to vector<16x16xf32>
    %c0_6 = arith.constant 0 : index
    %7 = memref.load %arg2[%c0_6] : memref<144xf32, #tpu.memory_space<smem>>
    %8 = vector.broadcast %7 : f32 to vector<16x16xf32>
    %9 = arith.mulf %8, %6 : vector<16x16xf32>
    %10 = arith.addf %0, %9 : vector<16x16xf32>
    %c36 = arith.constant 36 : index
    %11 = memref.load %arg2[%c36] : memref<144xf32, #tpu.memory_space<smem>>
    %12 = vector.broadcast %11 : f32 to vector<16x16xf32>
    %13 = arith.mulf %12, %6 : vector<16x16xf32>
    %14 = arith.addf %1, %13 : vector<16x16xf32>
    %c72 = arith.constant 72 : index
    %15 = memref.load %arg2[%c72] : memref<144xf32, #tpu.memory_space<smem>>
    %16 = vector.broadcast %15 : f32 to vector<16x16xf32>
    %17 = arith.mulf %16, %6 : vector<16x16xf32>
    %18 = arith.addf %2, %17 : vector<16x16xf32>
    %c108 = arith.constant 108 : index
    %19 = memref.load %arg2[%c108] : memref<144xf32, #tpu.memory_space<smem>>
    %20 = vector.broadcast %19 : f32 to vector<16x16xf32>
    %21 = arith.mulf %20, %6 : vector<16x16xf32>
    %22 = arith.addf %3, %21 : vector<16x16xf32>
    %23 = vector.extract_strided_slice %5 {offsets = [0, 1], sizes = [16, 16], strides = [1, 1]} : vector<18x18xf32> to vector<16x16xf32>
    %c1 = arith.constant 1 : index
    %24 = memref.load %arg2[%c1] : memref<144xf32, #tpu.memory_space<smem>>
    %25 = vector.broadcast %24 : f32 to vector<16x16xf32>
    %26 = arith.mulf %25, %23 : vector<16x16xf32>
    %27 = arith.addf %10, %26 : vector<16x16xf32>
    %c37 = arith.constant 37 : index
    %28 = memref.load %arg2[%c37] : memref<144xf32, #tpu.memory_space<smem>>
    %29 = vector.broadcast %28 : f32 to vector<16x16xf32>
    %30 = arith.mulf %29, %23 : vector<16x16xf32>
    %31 = arith.addf %14, %30 : vector<16x16xf32>
    %c73 = arith.constant 73 : index
    %32 = memref.load %arg2[%c73] : memref<144xf32, #tpu.memory_space<smem>>
    %33 = vector.broadcast %32 : f32 to vector<16x16xf32>
    %34 = arith.mulf %33, %23 : vector<16x16xf32>
    %35 = arith.addf %18, %34 : vector<16x16xf32>
    %c109 = arith.constant 109 : index
    %36 = memref.load %arg2[%c109] : memref<144xf32, #tpu.memory_space<smem>>
    %37 = vector.broadcast %36 : f32 to vector<16x16xf32>
    %38 = arith.mulf %37, %23 : vector<16x16xf32>
    %39 = arith.addf %22, %38 : vector<16x16xf32>
    %40 = vector.extract_strided_slice %5 {offsets = [0, 2], sizes = [16, 16], strides = [1, 1]} : vector<18x18xf32> to vector<16x16xf32>
    %c2 = arith.constant 2 : index
    %41 = memref.load %arg2[%c2] : memref<144xf32, #tpu.memory_space<smem>>
    %42 = vector.broadcast %41 : f32 to vector<16x16xf32>
    %43 = arith.mulf %42, %40 : vector<16x16xf32>
    %44 = arith.addf %27, %43 : vector<16x16xf32>
    %c38 = arith.constant 38 : index
    %45 = memref.load %arg2[%c38] : memref<144xf32, #tpu.memory_space<smem>>
    %46 = vector.broadcast %45 : f32 to vector<16x16xf32>
    %47 = arith.mulf %46, %40 : vector<16x16xf32>
    %48 = arith.addf %31, %47 : vector<16x16xf32>
    %c74 = arith.constant 74 : index
    %49 = memref.load %arg2[%c74] : memref<144xf32, #tpu.memory_space<smem>>
    %50 = vector.broadcast %49 : f32 to vector<16x16xf32>
    %51 = arith.mulf %50, %40 : vector<16x16xf32>
    %52 = arith.addf %35, %51 : vector<16x16xf32>
    %c110 = arith.constant 110 : index
    %53 = memref.load %arg2[%c110] : memref<144xf32, #tpu.memory_space<smem>>
    %54 = vector.broadcast %53 : f32 to vector<16x16xf32>
    %55 = arith.mulf %54, %40 : vector<16x16xf32>
    %56 = arith.addf %39, %55 : vector<16x16xf32>
    %57 = vector.extract_strided_slice %5 {offsets = [1, 0], sizes = [16, 16], strides = [1, 1]} : vector<18x18xf32> to vector<16x16xf32>
    %c3 = arith.constant 3 : index
    %58 = memref.load %arg2[%c3] : memref<144xf32, #tpu.memory_space<smem>>
    %59 = vector.broadcast %58 : f32 to vector<16x16xf32>
    %60 = arith.mulf %59, %57 : vector<16x16xf32>
    %61 = arith.addf %44, %60 : vector<16x16xf32>
    %c39 = arith.constant 39 : index
    %62 = memref.load %arg2[%c39] : memref<144xf32, #tpu.memory_space<smem>>
    %63 = vector.broadcast %62 : f32 to vector<16x16xf32>
    %64 = arith.mulf %63, %57 : vector<16x16xf32>
    %65 = arith.addf %48, %64 : vector<16x16xf32>
    %c75 = arith.constant 75 : index
    %66 = memref.load %arg2[%c75] : memref<144xf32, #tpu.memory_space<smem>>
    %67 = vector.broadcast %66 : f32 to vector<16x16xf32>
    %68 = arith.mulf %67, %57 : vector<16x16xf32>
    %69 = arith.addf %52, %68 : vector<16x16xf32>
    %c111 = arith.constant 111 : index
    %70 = memref.load %arg2[%c111] : memref<144xf32, #tpu.memory_space<smem>>
    %71 = vector.broadcast %70 : f32 to vector<16x16xf32>
    %72 = arith.mulf %71, %57 : vector<16x16xf32>
    %73 = arith.addf %56, %72 : vector<16x16xf32>
    %74 = vector.extract_strided_slice %5 {offsets = [1, 1], sizes = [16, 16], strides = [1, 1]} : vector<18x18xf32> to vector<16x16xf32>
    %c4 = arith.constant 4 : index
    %75 = memref.load %arg2[%c4] : memref<144xf32, #tpu.memory_space<smem>>
    %76 = vector.broadcast %75 : f32 to vector<16x16xf32>
    %77 = arith.mulf %76, %74 : vector<16x16xf32>
    %78 = arith.addf %61, %77 : vector<16x16xf32>
    %c40 = arith.constant 40 : index
    %79 = memref.load %arg2[%c40] : memref<144xf32, #tpu.memory_space<smem>>
    %80 = vector.broadcast %79 : f32 to vector<16x16xf32>
    %81 = arith.mulf %80, %74 : vector<16x16xf32>
    %82 = arith.addf %65, %81 : vector<16x16xf32>
    %c76 = arith.constant 76 : index
    %83 = memref.load %arg2[%c76] : memref<144xf32, #tpu.memory_space<smem>>
    %84 = vector.broadcast %83 : f32 to vector<16x16xf32>
    %85 = arith.mulf %84, %74 : vector<16x16xf32>
    %86 = arith.addf %69, %85 : vector<16x16xf32>
    %c112 = arith.constant 112 : index
    %87 = memref.load %arg2[%c112] : memref<144xf32, #tpu.memory_space<smem>>
    %88 = vector.broadcast %87 : f32 to vector<16x16xf32>
    %89 = arith.mulf %88, %74 : vector<16x16xf32>
    %90 = arith.addf %73, %89 : vector<16x16xf32>
    %91 = vector.extract_strided_slice %5 {offsets = [1, 2], sizes = [16, 16], strides = [1, 1]} : vector<18x18xf32> to vector<16x16xf32>
    %c5 = arith.constant 5 : index
    %92 = memref.load %arg2[%c5] : memref<144xf32, #tpu.memory_space<smem>>
    %93 = vector.broadcast %92 : f32 to vector<16x16xf32>
    %94 = arith.mulf %93, %91 : vector<16x16xf32>
    %95 = arith.addf %78, %94 : vector<16x16xf32>
    %c41 = arith.constant 41 : index
    %96 = memref.load %arg2[%c41] : memref<144xf32, #tpu.memory_space<smem>>
    %97 = vector.broadcast %96 : f32 to vector<16x16xf32>
    %98 = arith.mulf %97, %91 : vector<16x16xf32>
    %99 = arith.addf %82, %98 : vector<16x16xf32>
    %c77 = arith.constant 77 : index
    %100 = memref.load %arg2[%c77] : memref<144xf32, #tpu.memory_space<smem>>
    %101 = vector.broadcast %100 : f32 to vector<16x16xf32>
    %102 = arith.mulf %101, %91 : vector<16x16xf32>
    %103 = arith.addf %86, %102 : vector<16x16xf32>
    %c113 = arith.constant 113 : index
    %104 = memref.load %arg2[%c113] : memref<144xf32, #tpu.memory_space<smem>>
    %105 = vector.broadcast %104 : f32 to vector<16x16xf32>
    %106 = arith.mulf %105, %91 : vector<16x16xf32>
    %107 = arith.addf %90, %106 : vector<16x16xf32>
    %108 = vector.extract_strided_slice %5 {offsets = [2, 0], sizes = [16, 16], strides = [1, 1]} : vector<18x18xf32> to vector<16x16xf32>
    %c6 = arith.constant 6 : index
    %109 = memref.load %arg2[%c6] : memref<144xf32, #tpu.memory_space<smem>>
    %110 = vector.broadcast %109 : f32 to vector<16x16xf32>
    %111 = arith.mulf %110, %108 : vector<16x16xf32>
    %112 = arith.addf %95, %111 : vector<16x16xf32>
    %c42 = arith.constant 42 : index
    %113 = memref.load %arg2[%c42] : memref<144xf32, #tpu.memory_space<smem>>
    %114 = vector.broadcast %113 : f32 to vector<16x16xf32>
    %115 = arith.mulf %114, %108 : vector<16x16xf32>
    %116 = arith.addf %99, %115 : vector<16x16xf32>
    %c78 = arith.constant 78 : index
    %117 = memref.load %arg2[%c78] : memref<144xf32, #tpu.memory_space<smem>>
    %118 = vector.broadcast %117 : f32 to vector<16x16xf32>
    %119 = arith.mulf %118, %108 : vector<16x16xf32>
    %120 = arith.addf %103, %119 : vector<16x16xf32>
    %c114 = arith.constant 114 : index
    %121 = memref.load %arg2[%c114] : memref<144xf32, #tpu.memory_space<smem>>
    %122 = vector.broadcast %121 : f32 to vector<16x16xf32>
    %123 = arith.mulf %122, %108 : vector<16x16xf32>
    %124 = arith.addf %107, %123 : vector<16x16xf32>
    %125 = vector.extract_strided_slice %5 {offsets = [2, 1], sizes = [16, 16], strides = [1, 1]} : vector<18x18xf32> to vector<16x16xf32>
    %c7 = arith.constant 7 : index
    %126 = memref.load %arg2[%c7] : memref<144xf32, #tpu.memory_space<smem>>
    %127 = vector.broadcast %126 : f32 to vector<16x16xf32>
    %128 = arith.mulf %127, %125 : vector<16x16xf32>
    %129 = arith.addf %112, %128 : vector<16x16xf32>
    %c43 = arith.constant 43 : index
    %130 = memref.load %arg2[%c43] : memref<144xf32, #tpu.memory_space<smem>>
    %131 = vector.broadcast %130 : f32 to vector<16x16xf32>
    %132 = arith.mulf %131, %125 : vector<16x16xf32>
    %133 = arith.addf %116, %132 : vector<16x16xf32>
    %c79 = arith.constant 79 : index
    %134 = memref.load %arg2[%c79] : memref<144xf32, #tpu.memory_space<smem>>
    %135 = vector.broadcast %134 : f32 to vector<16x16xf32>
    %136 = arith.mulf %135, %125 : vector<16x16xf32>
    %137 = arith.addf %120, %136 : vector<16x16xf32>
    %c115 = arith.constant 115 : index
    %138 = memref.load %arg2[%c115] : memref<144xf32, #tpu.memory_space<smem>>
    %139 = vector.broadcast %138 : f32 to vector<16x16xf32>
    %140 = arith.mulf %139, %125 : vector<16x16xf32>
    %141 = arith.addf %124, %140 : vector<16x16xf32>
    %142 = vector.extract_strided_slice %5 {offsets = [2, 2], sizes = [16, 16], strides = [1, 1]} : vector<18x18xf32> to vector<16x16xf32>
    %c8 = arith.constant 8 : index
    %143 = memref.load %arg2[%c8] : memref<144xf32, #tpu.memory_space<smem>>
    %144 = vector.broadcast %143 : f32 to vector<16x16xf32>
    %145 = arith.mulf %144, %142 : vector<16x16xf32>
    %146 = arith.addf %129, %145 : vector<16x16xf32>
    %c44 = arith.constant 44 : index
    %147 = memref.load %arg2[%c44] : memref<144xf32, #tpu.memory_space<smem>>
    %148 = vector.broadcast %147 : f32 to vector<16x16xf32>
    %149 = arith.mulf %148, %142 : vector<16x16xf32>
    %150 = arith.addf %133, %149 : vector<16x16xf32>
    %c80 = arith.constant 80 : index
    %151 = memref.load %arg2[%c80] : memref<144xf32, #tpu.memory_space<smem>>
    %152 = vector.broadcast %151 : f32 to vector<16x16xf32>
    %153 = arith.mulf %152, %142 : vector<16x16xf32>
    %154 = arith.addf %137, %153 : vector<16x16xf32>
    %c116 = arith.constant 116 : index
    %155 = memref.load %arg2[%c116] : memref<144xf32, #tpu.memory_space<smem>>
    %156 = vector.broadcast %155 : f32 to vector<16x16xf32>
    %157 = arith.mulf %156, %142 : vector<16x16xf32>
    %158 = arith.addf %141, %157 : vector<16x16xf32>
    %c0_7 = arith.constant 0 : index
    %c1_8 = arith.constant 1 : index
    %c0_9 = arith.constant 0 : index
    %c0_10 = arith.constant 0 : index
    %159 = vector.load %arg1[%c0_7, %c1_8, %c0_9, %c0_10] : memref<1x4x18x18xf32, #tpu.memory_space<vmem>>, vector<1x1x18x18xf32>
    %160 = vector.shape_cast %159 : vector<1x1x18x18xf32> to vector<18x18xf32>
    %161 = vector.extract_strided_slice %160 {offsets = [0, 0], sizes = [16, 16], strides = [1, 1]} : vector<18x18xf32> to vector<16x16xf32>
    %c9 = arith.constant 9 : index
    %162 = memref.load %arg2[%c9] : memref<144xf32, #tpu.memory_space<smem>>
    %163 = vector.broadcast %162 : f32 to vector<16x16xf32>
    %164 = arith.mulf %163, %161 : vector<16x16xf32>
    %165 = arith.addf %146, %164 : vector<16x16xf32>
    %c45 = arith.constant 45 : index
    %166 = memref.load %arg2[%c45] : memref<144xf32, #tpu.memory_space<smem>>
    %167 = vector.broadcast %166 : f32 to vector<16x16xf32>
    %168 = arith.mulf %167, %161 : vector<16x16xf32>
    %169 = arith.addf %150, %168 : vector<16x16xf32>
    %c81 = arith.constant 81 : index
    %170 = memref.load %arg2[%c81] : memref<144xf32, #tpu.memory_space<smem>>
    %171 = vector.broadcast %170 : f32 to vector<16x16xf32>
    %172 = arith.mulf %171, %161 : vector<16x16xf32>
    %173 = arith.addf %154, %172 : vector<16x16xf32>
    %c117 = arith.constant 117 : index
    %174 = memref.load %arg2[%c117] : memref<144xf32, #tpu.memory_space<smem>>
    %175 = vector.broadcast %174 : f32 to vector<16x16xf32>
    %176 = arith.mulf %175, %161 : vector<16x16xf32>
    %177 = arith.addf %158, %176 : vector<16x16xf32>
    %178 = vector.extract_strided_slice %160 {offsets = [0, 1], sizes = [16, 16], strides = [1, 1]} : vector<18x18xf32> to vector<16x16xf32>
    %c10 = arith.constant 10 : index
    %179 = memref.load %arg2[%c10] : memref<144xf32, #tpu.memory_space<smem>>
    %180 = vector.broadcast %179 : f32 to vector<16x16xf32>
    %181 = arith.mulf %180, %178 : vector<16x16xf32>
    %182 = arith.addf %165, %181 : vector<16x16xf32>
    %c46 = arith.constant 46 : index
    %183 = memref.load %arg2[%c46] : memref<144xf32, #tpu.memory_space<smem>>
    %184 = vector.broadcast %183 : f32 to vector<16x16xf32>
    %185 = arith.mulf %184, %178 : vector<16x16xf32>
    %186 = arith.addf %169, %185 : vector<16x16xf32>
    %c82 = arith.constant 82 : index
    %187 = memref.load %arg2[%c82] : memref<144xf32, #tpu.memory_space<smem>>
    %188 = vector.broadcast %187 : f32 to vector<16x16xf32>
    %189 = arith.mulf %188, %178 : vector<16x16xf32>
    %190 = arith.addf %173, %189 : vector<16x16xf32>
    %c118 = arith.constant 118 : index
    %191 = memref.load %arg2[%c118] : memref<144xf32, #tpu.memory_space<smem>>
    %192 = vector.broadcast %191 : f32 to vector<16x16xf32>
    %193 = arith.mulf %192, %178 : vector<16x16xf32>
    %194 = arith.addf %177, %193 : vector<16x16xf32>
    %195 = vector.extract_strided_slice %160 {offsets = [0, 2], sizes = [16, 16], strides = [1, 1]} : vector<18x18xf32> to vector<16x16xf32>
    %c11 = arith.constant 11 : index
    %196 = memref.load %arg2[%c11] : memref<144xf32, #tpu.memory_space<smem>>
    %197 = vector.broadcast %196 : f32 to vector<16x16xf32>
    %198 = arith.mulf %197, %195 : vector<16x16xf32>
    %199 = arith.addf %182, %198 : vector<16x16xf32>
    %c47 = arith.constant 47 : index
    %200 = memref.load %arg2[%c47] : memref<144xf32, #tpu.memory_space<smem>>
    %201 = vector.broadcast %200 : f32 to vector<16x16xf32>
    %202 = arith.mulf %201, %195 : vector<16x16xf32>
    %203 = arith.addf %186, %202 : vector<16x16xf32>
    %c83 = arith.constant 83 : index
    %204 = memref.load %arg2[%c83] : memref<144xf32, #tpu.memory_space<smem>>
    %205 = vector.broadcast %204 : f32 to vector<16x16xf32>
    %206 = arith.mulf %205, %195 : vector<16x16xf32>
    %207 = arith.addf %190, %206 : vector<16x16xf32>
    %c119 = arith.constant 119 : index
    %208 = memref.load %arg2[%c119] : memref<144xf32, #tpu.memory_space<smem>>
    %209 = vector.broadcast %208 : f32 to vector<16x16xf32>
    %210 = arith.mulf %209, %195 : vector<16x16xf32>
    %211 = arith.addf %194, %210 : vector<16x16xf32>
    %212 = vector.extract_strided_slice %160 {offsets = [1, 0], sizes = [16, 16], strides = [1, 1]} : vector<18x18xf32> to vector<16x16xf32>
    %c12 = arith.constant 12 : index
    %213 = memref.load %arg2[%c12] : memref<144xf32, #tpu.memory_space<smem>>
    %214 = vector.broadcast %213 : f32 to vector<16x16xf32>
    %215 = arith.mulf %214, %212 : vector<16x16xf32>
    %216 = arith.addf %199, %215 : vector<16x16xf32>
    %c48 = arith.constant 48 : index
    %217 = memref.load %arg2[%c48] : memref<144xf32, #tpu.memory_space<smem>>
    %218 = vector.broadcast %217 : f32 to vector<16x16xf32>
    %219 = arith.mulf %218, %212 : vector<16x16xf32>
    %220 = arith.addf %203, %219 : vector<16x16xf32>
    %c84 = arith.constant 84 : index
    %221 = memref.load %arg2[%c84] : memref<144xf32, #tpu.memory_space<smem>>
    %222 = vector.broadcast %221 : f32 to vector<16x16xf32>
    %223 = arith.mulf %222, %212 : vector<16x16xf32>
    %224 = arith.addf %207, %223 : vector<16x16xf32>
    %c120 = arith.constant 120 : index
    %225 = memref.load %arg2[%c120] : memref<144xf32, #tpu.memory_space<smem>>
    %226 = vector.broadcast %225 : f32 to vector<16x16xf32>
    %227 = arith.mulf %226, %212 : vector<16x16xf32>
    %228 = arith.addf %211, %227 : vector<16x16xf32>
    %229 = vector.extract_strided_slice %160 {offsets = [1, 1], sizes = [16, 16], strides = [1, 1]} : vector<18x18xf32> to vector<16x16xf32>
    %c13 = arith.constant 13 : index
    %230 = memref.load %arg2[%c13] : memref<144xf32, #tpu.memory_space<smem>>
    %231 = vector.broadcast %230 : f32 to vector<16x16xf32>
    %232 = arith.mulf %231, %229 : vector<16x16xf32>
    %233 = arith.addf %216, %232 : vector<16x16xf32>
    %c49 = arith.constant 49 : index
    %234 = memref.load %arg2[%c49] : memref<144xf32, #tpu.memory_space<smem>>
    %235 = vector.broadcast %234 : f32 to vector<16x16xf32>
    %236 = arith.mulf %235, %229 : vector<16x16xf32>
    %237 = arith.addf %220, %236 : vector<16x16xf32>
    %c85 = arith.constant 85 : index
    %238 = memref.load %arg2[%c85] : memref<144xf32, #tpu.memory_space<smem>>
    %239 = vector.broadcast %238 : f32 to vector<16x16xf32>
    %240 = arith.mulf %239, %229 : vector<16x16xf32>
    %241 = arith.addf %224, %240 : vector<16x16xf32>
    %c121 = arith.constant 121 : index
    %242 = memref.load %arg2[%c121] : memref<144xf32, #tpu.memory_space<smem>>
    %243 = vector.broadcast %242 : f32 to vector<16x16xf32>
    %244 = arith.mulf %243, %229 : vector<16x16xf32>
    %245 = arith.addf %228, %244 : vector<16x16xf32>
    %246 = vector.extract_strided_slice %160 {offsets = [1, 2], sizes = [16, 16], strides = [1, 1]} : vector<18x18xf32> to vector<16x16xf32>
    %c14 = arith.constant 14 : index
    %247 = memref.load %arg2[%c14] : memref<144xf32, #tpu.memory_space<smem>>
    %248 = vector.broadcast %247 : f32 to vector<16x16xf32>
    %249 = arith.mulf %248, %246 : vector<16x16xf32>
    %250 = arith.addf %233, %249 : vector<16x16xf32>
    %c50 = arith.constant 50 : index
    %251 = memref.load %arg2[%c50] : memref<144xf32, #tpu.memory_space<smem>>
    %252 = vector.broadcast %251 : f32 to vector<16x16xf32>
    %253 = arith.mulf %252, %246 : vector<16x16xf32>
    %254 = arith.addf %237, %253 : vector<16x16xf32>
    %c86 = arith.constant 86 : index
    %255 = memref.load %arg2[%c86] : memref<144xf32, #tpu.memory_space<smem>>
    %256 = vector.broadcast %255 : f32 to vector<16x16xf32>
    %257 = arith.mulf %256, %246 : vector<16x16xf32>
    %258 = arith.addf %241, %257 : vector<16x16xf32>
    %c122 = arith.constant 122 : index
    %259 = memref.load %arg2[%c122] : memref<144xf32, #tpu.memory_space<smem>>
    %260 = vector.broadcast %259 : f32 to vector<16x16xf32>
    %261 = arith.mulf %260, %246 : vector<16x16xf32>
    %262 = arith.addf %245, %261 : vector<16x16xf32>
    %263 = vector.extract_strided_slice %160 {offsets = [2, 0], sizes = [16, 16], strides = [1, 1]} : vector<18x18xf32> to vector<16x16xf32>
    %c15 = arith.constant 15 : index
    %264 = memref.load %arg2[%c15] : memref<144xf32, #tpu.memory_space<smem>>
    %265 = vector.broadcast %264 : f32 to vector<16x16xf32>
    %266 = arith.mulf %265, %263 : vector<16x16xf32>
    %267 = arith.addf %250, %266 : vector<16x16xf32>
    %c51 = arith.constant 51 : index
    %268 = memref.load %arg2[%c51] : memref<144xf32, #tpu.memory_space<smem>>
    %269 = vector.broadcast %268 : f32 to vector<16x16xf32>
    %270 = arith.mulf %269, %263 : vector<16x16xf32>
    %271 = arith.addf %254, %270 : vector<16x16xf32>
    %c87 = arith.constant 87 : index
    %272 = memref.load %arg2[%c87] : memref<144xf32, #tpu.memory_space<smem>>
    %273 = vector.broadcast %272 : f32 to vector<16x16xf32>
    %274 = arith.mulf %273, %263 : vector<16x16xf32>
    %275 = arith.addf %258, %274 : vector<16x16xf32>
    %c123 = arith.constant 123 : index
    %276 = memref.load %arg2[%c123] : memref<144xf32, #tpu.memory_space<smem>>
    %277 = vector.broadcast %276 : f32 to vector<16x16xf32>
    %278 = arith.mulf %277, %263 : vector<16x16xf32>
    %279 = arith.addf %262, %278 : vector<16x16xf32>
    %280 = vector.extract_strided_slice %160 {offsets = [2, 1], sizes = [16, 16], strides = [1, 1]} : vector<18x18xf32> to vector<16x16xf32>
    %c16 = arith.constant 16 : index
    %281 = memref.load %arg2[%c16] : memref<144xf32, #tpu.memory_space<smem>>
    %282 = vector.broadcast %281 : f32 to vector<16x16xf32>
    %283 = arith.mulf %282, %280 : vector<16x16xf32>
    %284 = arith.addf %267, %283 : vector<16x16xf32>
    %c52 = arith.constant 52 : index
    %285 = memref.load %arg2[%c52] : memref<144xf32, #tpu.memory_space<smem>>
    %286 = vector.broadcast %285 : f32 to vector<16x16xf32>
    %287 = arith.mulf %286, %280 : vector<16x16xf32>
    %288 = arith.addf %271, %287 : vector<16x16xf32>
    %c88 = arith.constant 88 : index
    %289 = memref.load %arg2[%c88] : memref<144xf32, #tpu.memory_space<smem>>
    %290 = vector.broadcast %289 : f32 to vector<16x16xf32>
    %291 = arith.mulf %290, %280 : vector<16x16xf32>
    %292 = arith.addf %275, %291 : vector<16x16xf32>
    %c124 = arith.constant 124 : index
    %293 = memref.load %arg2[%c124] : memref<144xf32, #tpu.memory_space<smem>>
    %294 = vector.broadcast %293 : f32 to vector<16x16xf32>
    %295 = arith.mulf %294, %280 : vector<16x16xf32>
    %296 = arith.addf %279, %295 : vector<16x16xf32>
    %297 = vector.extract_strided_slice %160 {offsets = [2, 2], sizes = [16, 16], strides = [1, 1]} : vector<18x18xf32> to vector<16x16xf32>
    %c17 = arith.constant 17 : index
    %298 = memref.load %arg2[%c17] : memref<144xf32, #tpu.memory_space<smem>>
    %299 = vector.broadcast %298 : f32 to vector<16x16xf32>
    %300 = arith.mulf %299, %297 : vector<16x16xf32>
    %301 = arith.addf %284, %300 : vector<16x16xf32>
    %c53 = arith.constant 53 : index
    %302 = memref.load %arg2[%c53] : memref<144xf32, #tpu.memory_space<smem>>
    %303 = vector.broadcast %302 : f32 to vector<16x16xf32>
    %304 = arith.mulf %303, %297 : vector<16x16xf32>
    %305 = arith.addf %288, %304 : vector<16x16xf32>
    %c89 = arith.constant 89 : index
    %306 = memref.load %arg2[%c89] : memref<144xf32, #tpu.memory_space<smem>>
    %307 = vector.broadcast %306 : f32 to vector<16x16xf32>
    %308 = arith.mulf %307, %297 : vector<16x16xf32>
    %309 = arith.addf %292, %308 : vector<16x16xf32>
    %c125 = arith.constant 125 : index
    %310 = memref.load %arg2[%c125] : memref<144xf32, #tpu.memory_space<smem>>
    %311 = vector.broadcast %310 : f32 to vector<16x16xf32>
    %312 = arith.mulf %311, %297 : vector<16x16xf32>
    %313 = arith.addf %296, %312 : vector<16x16xf32>
    %c0_11 = arith.constant 0 : index
    %c2_12 = arith.constant 2 : index
    %c0_13 = arith.constant 0 : index
    %c0_14 = arith.constant 0 : index
    %314 = vector.load %arg1[%c0_11, %c2_12, %c0_13, %c0_14] : memref<1x4x18x18xf32, #tpu.memory_space<vmem>>, vector<1x1x18x18xf32>
    %315 = vector.shape_cast %314 : vector<1x1x18x18xf32> to vector<18x18xf32>
    %316 = vector.extract_strided_slice %315 {offsets = [0, 0], sizes = [16, 16], strides = [1, 1]} : vector<18x18xf32> to vector<16x16xf32>
    %c18 = arith.constant 18 : index
    %317 = memref.load %arg2[%c18] : memref<144xf32, #tpu.memory_space<smem>>
    %318 = vector.broadcast %317 : f32 to vector<16x16xf32>
    %319 = arith.mulf %318, %316 : vector<16x16xf32>
    %320 = arith.addf %301, %319 : vector<16x16xf32>
    %c54 = arith.constant 54 : index
    %321 = memref.load %arg2[%c54] : memref<144xf32, #tpu.memory_space<smem>>
    %322 = vector.broadcast %321 : f32 to vector<16x16xf32>
    %323 = arith.mulf %322, %316 : vector<16x16xf32>
    %324 = arith.addf %305, %323 : vector<16x16xf32>
    %c90 = arith.constant 90 : index
    %325 = memref.load %arg2[%c90] : memref<144xf32, #tpu.memory_space<smem>>
    %326 = vector.broadcast %325 : f32 to vector<16x16xf32>
    %327 = arith.mulf %326, %316 : vector<16x16xf32>
    %328 = arith.addf %309, %327 : vector<16x16xf32>
    %c126 = arith.constant 126 : index
    %329 = memref.load %arg2[%c126] : memref<144xf32, #tpu.memory_space<smem>>
    %330 = vector.broadcast %329 : f32 to vector<16x16xf32>
    %331 = arith.mulf %330, %316 : vector<16x16xf32>
    %332 = arith.addf %313, %331 : vector<16x16xf32>
    %333 = vector.extract_strided_slice %315 {offsets = [0, 1], sizes = [16, 16], strides = [1, 1]} : vector<18x18xf32> to vector<16x16xf32>
    %c19 = arith.constant 19 : index
    %334 = memref.load %arg2[%c19] : memref<144xf32, #tpu.memory_space<smem>>
    %335 = vector.broadcast %334 : f32 to vector<16x16xf32>
    %336 = arith.mulf %335, %333 : vector<16x16xf32>
    %337 = arith.addf %320, %336 : vector<16x16xf32>
    %c55 = arith.constant 55 : index
    %338 = memref.load %arg2[%c55] : memref<144xf32, #tpu.memory_space<smem>>
    %339 = vector.broadcast %338 : f32 to vector<16x16xf32>
    %340 = arith.mulf %339, %333 : vector<16x16xf32>
    %341 = arith.addf %324, %340 : vector<16x16xf32>
    %c91 = arith.constant 91 : index
    %342 = memref.load %arg2[%c91] : memref<144xf32, #tpu.memory_space<smem>>
    %343 = vector.broadcast %342 : f32 to vector<16x16xf32>
    %344 = arith.mulf %343, %333 : vector<16x16xf32>
    %345 = arith.addf %328, %344 : vector<16x16xf32>
    %c127 = arith.constant 127 : index
    %346 = memref.load %arg2[%c127] : memref<144xf32, #tpu.memory_space<smem>>
    %347 = vector.broadcast %346 : f32 to vector<16x16xf32>
    %348 = arith.mulf %347, %333 : vector<16x16xf32>
    %349 = arith.addf %332, %348 : vector<16x16xf32>
    %350 = vector.extract_strided_slice %315 {offsets = [0, 2], sizes = [16, 16], strides = [1, 1]} : vector<18x18xf32> to vector<16x16xf32>
    %c20 = arith.constant 20 : index
    %351 = memref.load %arg2[%c20] : memref<144xf32, #tpu.memory_space<smem>>
    %352 = vector.broadcast %351 : f32 to vector<16x16xf32>
    %353 = arith.mulf %352, %350 : vector<16x16xf32>
    %354 = arith.addf %337, %353 : vector<16x16xf32>
    %c56 = arith.constant 56 : index
    %355 = memref.load %arg2[%c56] : memref<144xf32, #tpu.memory_space<smem>>
    %356 = vector.broadcast %355 : f32 to vector<16x16xf32>
    %357 = arith.mulf %356, %350 : vector<16x16xf32>
    %358 = arith.addf %341, %357 : vector<16x16xf32>
    %c92 = arith.constant 92 : index
    %359 = memref.load %arg2[%c92] : memref<144xf32, #tpu.memory_space<smem>>
    %360 = vector.broadcast %359 : f32 to vector<16x16xf32>
    %361 = arith.mulf %360, %350 : vector<16x16xf32>
    %362 = arith.addf %345, %361 : vector<16x16xf32>
    %c128 = arith.constant 128 : index
    %363 = memref.load %arg2[%c128] : memref<144xf32, #tpu.memory_space<smem>>
    %364 = vector.broadcast %363 : f32 to vector<16x16xf32>
    %365 = arith.mulf %364, %350 : vector<16x16xf32>
    %366 = arith.addf %349, %365 : vector<16x16xf32>
    %367 = vector.extract_strided_slice %315 {offsets = [1, 0], sizes = [16, 16], strides = [1, 1]} : vector<18x18xf32> to vector<16x16xf32>
    %c21 = arith.constant 21 : index
    %368 = memref.load %arg2[%c21] : memref<144xf32, #tpu.memory_space<smem>>
    %369 = vector.broadcast %368 : f32 to vector<16x16xf32>
    %370 = arith.mulf %369, %367 : vector<16x16xf32>
    %371 = arith.addf %354, %370 : vector<16x16xf32>
    %c57 = arith.constant 57 : index
    %372 = memref.load %arg2[%c57] : memref<144xf32, #tpu.memory_space<smem>>
    %373 = vector.broadcast %372 : f32 to vector<16x16xf32>
    %374 = arith.mulf %373, %367 : vector<16x16xf32>
    %375 = arith.addf %358, %374 : vector<16x16xf32>
    %c93 = arith.constant 93 : index
    %376 = memref.load %arg2[%c93] : memref<144xf32, #tpu.memory_space<smem>>
    %377 = vector.broadcast %376 : f32 to vector<16x16xf32>
    %378 = arith.mulf %377, %367 : vector<16x16xf32>
    %379 = arith.addf %362, %378 : vector<16x16xf32>
    %c129 = arith.constant 129 : index
    %380 = memref.load %arg2[%c129] : memref<144xf32, #tpu.memory_space<smem>>
    %381 = vector.broadcast %380 : f32 to vector<16x16xf32>
    %382 = arith.mulf %381, %367 : vector<16x16xf32>
    %383 = arith.addf %366, %382 : vector<16x16xf32>
    %384 = vector.extract_strided_slice %315 {offsets = [1, 1], sizes = [16, 16], strides = [1, 1]} : vector<18x18xf32> to vector<16x16xf32>
    %c22 = arith.constant 22 : index
    %385 = memref.load %arg2[%c22] : memref<144xf32, #tpu.memory_space<smem>>
    %386 = vector.broadcast %385 : f32 to vector<16x16xf32>
    %387 = arith.mulf %386, %384 : vector<16x16xf32>
    %388 = arith.addf %371, %387 : vector<16x16xf32>
    %c58 = arith.constant 58 : index
    %389 = memref.load %arg2[%c58] : memref<144xf32, #tpu.memory_space<smem>>
    %390 = vector.broadcast %389 : f32 to vector<16x16xf32>
    %391 = arith.mulf %390, %384 : vector<16x16xf32>
    %392 = arith.addf %375, %391 : vector<16x16xf32>
    %c94 = arith.constant 94 : index
    %393 = memref.load %arg2[%c94] : memref<144xf32, #tpu.memory_space<smem>>
    %394 = vector.broadcast %393 : f32 to vector<16x16xf32>
    %395 = arith.mulf %394, %384 : vector<16x16xf32>
    %396 = arith.addf %379, %395 : vector<16x16xf32>
    %c130 = arith.constant 130 : index
    %397 = memref.load %arg2[%c130] : memref<144xf32, #tpu.memory_space<smem>>
    %398 = vector.broadcast %397 : f32 to vector<16x16xf32>
    %399 = arith.mulf %398, %384 : vector<16x16xf32>
    %400 = arith.addf %383, %399 : vector<16x16xf32>
    %401 = vector.extract_strided_slice %315 {offsets = [1, 2], sizes = [16, 16], strides = [1, 1]} : vector<18x18xf32> to vector<16x16xf32>
    %c23 = arith.constant 23 : index
    %402 = memref.load %arg2[%c23] : memref<144xf32, #tpu.memory_space<smem>>
    %403 = vector.broadcast %402 : f32 to vector<16x16xf32>
    %404 = arith.mulf %403, %401 : vector<16x16xf32>
    %405 = arith.addf %388, %404 : vector<16x16xf32>
    %c59 = arith.constant 59 : index
    %406 = memref.load %arg2[%c59] : memref<144xf32, #tpu.memory_space<smem>>
    %407 = vector.broadcast %406 : f32 to vector<16x16xf32>
    %408 = arith.mulf %407, %401 : vector<16x16xf32>
    %409 = arith.addf %392, %408 : vector<16x16xf32>
    %c95 = arith.constant 95 : index
    %410 = memref.load %arg2[%c95] : memref<144xf32, #tpu.memory_space<smem>>
    %411 = vector.broadcast %410 : f32 to vector<16x16xf32>
    %412 = arith.mulf %411, %401 : vector<16x16xf32>
    %413 = arith.addf %396, %412 : vector<16x16xf32>
    %c131 = arith.constant 131 : index
    %414 = memref.load %arg2[%c131] : memref<144xf32, #tpu.memory_space<smem>>
    %415 = vector.broadcast %414 : f32 to vector<16x16xf32>
    %416 = arith.mulf %415, %401 : vector<16x16xf32>
    %417 = arith.addf %400, %416 : vector<16x16xf32>
    %418 = vector.extract_strided_slice %315 {offsets = [2, 0], sizes = [16, 16], strides = [1, 1]} : vector<18x18xf32> to vector<16x16xf32>
    %c24 = arith.constant 24 : index
    %419 = memref.load %arg2[%c24] : memref<144xf32, #tpu.memory_space<smem>>
    %420 = vector.broadcast %419 : f32 to vector<16x16xf32>
    %421 = arith.mulf %420, %418 : vector<16x16xf32>
    %422 = arith.addf %405, %421 : vector<16x16xf32>
    %c60 = arith.constant 60 : index
    %423 = memref.load %arg2[%c60] : memref<144xf32, #tpu.memory_space<smem>>
    %424 = vector.broadcast %423 : f32 to vector<16x16xf32>
    %425 = arith.mulf %424, %418 : vector<16x16xf32>
    %426 = arith.addf %409, %425 : vector<16x16xf32>
    %c96 = arith.constant 96 : index
    %427 = memref.load %arg2[%c96] : memref<144xf32, #tpu.memory_space<smem>>
    %428 = vector.broadcast %427 : f32 to vector<16x16xf32>
    %429 = arith.mulf %428, %418 : vector<16x16xf32>
    %430 = arith.addf %413, %429 : vector<16x16xf32>
    %c132 = arith.constant 132 : index
    %431 = memref.load %arg2[%c132] : memref<144xf32, #tpu.memory_space<smem>>
    %432 = vector.broadcast %431 : f32 to vector<16x16xf32>
    %433 = arith.mulf %432, %418 : vector<16x16xf32>
    %434 = arith.addf %417, %433 : vector<16x16xf32>
    %435 = vector.extract_strided_slice %315 {offsets = [2, 1], sizes = [16, 16], strides = [1, 1]} : vector<18x18xf32> to vector<16x16xf32>
    %c25 = arith.constant 25 : index
    %436 = memref.load %arg2[%c25] : memref<144xf32, #tpu.memory_space<smem>>
    %437 = vector.broadcast %436 : f32 to vector<16x16xf32>
    %438 = arith.mulf %437, %435 : vector<16x16xf32>
    %439 = arith.addf %422, %438 : vector<16x16xf32>
    %c61 = arith.constant 61 : index
    %440 = memref.load %arg2[%c61] : memref<144xf32, #tpu.memory_space<smem>>
    %441 = vector.broadcast %440 : f32 to vector<16x16xf32>
    %442 = arith.mulf %441, %435 : vector<16x16xf32>
    %443 = arith.addf %426, %442 : vector<16x16xf32>
    %c97 = arith.constant 97 : index
    %444 = memref.load %arg2[%c97] : memref<144xf32, #tpu.memory_space<smem>>
    %445 = vector.broadcast %444 : f32 to vector<16x16xf32>
    %446 = arith.mulf %445, %435 : vector<16x16xf32>
    %447 = arith.addf %430, %446 : vector<16x16xf32>
    %c133 = arith.constant 133 : index
    %448 = memref.load %arg2[%c133] : memref<144xf32, #tpu.memory_space<smem>>
    %449 = vector.broadcast %448 : f32 to vector<16x16xf32>
    %450 = arith.mulf %449, %435 : vector<16x16xf32>
    %451 = arith.addf %434, %450 : vector<16x16xf32>
    %452 = vector.extract_strided_slice %315 {offsets = [2, 2], sizes = [16, 16], strides = [1, 1]} : vector<18x18xf32> to vector<16x16xf32>
    %c26 = arith.constant 26 : index
    %453 = memref.load %arg2[%c26] : memref<144xf32, #tpu.memory_space<smem>>
    %454 = vector.broadcast %453 : f32 to vector<16x16xf32>
    %455 = arith.mulf %454, %452 : vector<16x16xf32>
    %456 = arith.addf %439, %455 : vector<16x16xf32>
    %c62 = arith.constant 62 : index
    %457 = memref.load %arg2[%c62] : memref<144xf32, #tpu.memory_space<smem>>
    %458 = vector.broadcast %457 : f32 to vector<16x16xf32>
    %459 = arith.mulf %458, %452 : vector<16x16xf32>
    %460 = arith.addf %443, %459 : vector<16x16xf32>
    %c98 = arith.constant 98 : index
    %461 = memref.load %arg2[%c98] : memref<144xf32, #tpu.memory_space<smem>>
    %462 = vector.broadcast %461 : f32 to vector<16x16xf32>
    %463 = arith.mulf %462, %452 : vector<16x16xf32>
    %464 = arith.addf %447, %463 : vector<16x16xf32>
    %c134 = arith.constant 134 : index
    %465 = memref.load %arg2[%c134] : memref<144xf32, #tpu.memory_space<smem>>
    %466 = vector.broadcast %465 : f32 to vector<16x16xf32>
    %467 = arith.mulf %466, %452 : vector<16x16xf32>
    %468 = arith.addf %451, %467 : vector<16x16xf32>
    %c0_15 = arith.constant 0 : index
    %c3_16 = arith.constant 3 : index
    %c0_17 = arith.constant 0 : index
    %c0_18 = arith.constant 0 : index
    %469 = vector.load %arg1[%c0_15, %c3_16, %c0_17, %c0_18] : memref<1x4x18x18xf32, #tpu.memory_space<vmem>>, vector<1x1x18x18xf32>
    %470 = vector.shape_cast %469 : vector<1x1x18x18xf32> to vector<18x18xf32>
    %471 = vector.extract_strided_slice %470 {offsets = [0, 0], sizes = [16, 16], strides = [1, 1]} : vector<18x18xf32> to vector<16x16xf32>
    %c27 = arith.constant 27 : index
    %472 = memref.load %arg2[%c27] : memref<144xf32, #tpu.memory_space<smem>>
    %473 = vector.broadcast %472 : f32 to vector<16x16xf32>
    %474 = arith.mulf %473, %471 : vector<16x16xf32>
    %475 = arith.addf %456, %474 : vector<16x16xf32>
    %c63 = arith.constant 63 : index
    %476 = memref.load %arg2[%c63] : memref<144xf32, #tpu.memory_space<smem>>
    %477 = vector.broadcast %476 : f32 to vector<16x16xf32>
    %478 = arith.mulf %477, %471 : vector<16x16xf32>
    %479 = arith.addf %460, %478 : vector<16x16xf32>
    %c99 = arith.constant 99 : index
    %480 = memref.load %arg2[%c99] : memref<144xf32, #tpu.memory_space<smem>>
    %481 = vector.broadcast %480 : f32 to vector<16x16xf32>
    %482 = arith.mulf %481, %471 : vector<16x16xf32>
    %483 = arith.addf %464, %482 : vector<16x16xf32>
    %c135 = arith.constant 135 : index
    %484 = memref.load %arg2[%c135] : memref<144xf32, #tpu.memory_space<smem>>
    %485 = vector.broadcast %484 : f32 to vector<16x16xf32>
    %486 = arith.mulf %485, %471 : vector<16x16xf32>
    %487 = arith.addf %468, %486 : vector<16x16xf32>
    %488 = vector.extract_strided_slice %470 {offsets = [0, 1], sizes = [16, 16], strides = [1, 1]} : vector<18x18xf32> to vector<16x16xf32>
    %c28 = arith.constant 28 : index
    %489 = memref.load %arg2[%c28] : memref<144xf32, #tpu.memory_space<smem>>
    %490 = vector.broadcast %489 : f32 to vector<16x16xf32>
    %491 = arith.mulf %490, %488 : vector<16x16xf32>
    %492 = arith.addf %475, %491 : vector<16x16xf32>
    %c64 = arith.constant 64 : index
    %493 = memref.load %arg2[%c64] : memref<144xf32, #tpu.memory_space<smem>>
    %494 = vector.broadcast %493 : f32 to vector<16x16xf32>
    %495 = arith.mulf %494, %488 : vector<16x16xf32>
    %496 = arith.addf %479, %495 : vector<16x16xf32>
    %c100 = arith.constant 100 : index
    %497 = memref.load %arg2[%c100] : memref<144xf32, #tpu.memory_space<smem>>
    %498 = vector.broadcast %497 : f32 to vector<16x16xf32>
    %499 = arith.mulf %498, %488 : vector<16x16xf32>
    %500 = arith.addf %483, %499 : vector<16x16xf32>
    %c136 = arith.constant 136 : index
    %501 = memref.load %arg2[%c136] : memref<144xf32, #tpu.memory_space<smem>>
    %502 = vector.broadcast %501 : f32 to vector<16x16xf32>
    %503 = arith.mulf %502, %488 : vector<16x16xf32>
    %504 = arith.addf %487, %503 : vector<16x16xf32>
    %505 = vector.extract_strided_slice %470 {offsets = [0, 2], sizes = [16, 16], strides = [1, 1]} : vector<18x18xf32> to vector<16x16xf32>
    %c29 = arith.constant 29 : index
    %506 = memref.load %arg2[%c29] : memref<144xf32, #tpu.memory_space<smem>>
    %507 = vector.broadcast %506 : f32 to vector<16x16xf32>
    %508 = arith.mulf %507, %505 : vector<16x16xf32>
    %509 = arith.addf %492, %508 : vector<16x16xf32>
    %c65 = arith.constant 65 : index
    %510 = memref.load %arg2[%c65] : memref<144xf32, #tpu.memory_space<smem>>
    %511 = vector.broadcast %510 : f32 to vector<16x16xf32>
    %512 = arith.mulf %511, %505 : vector<16x16xf32>
    %513 = arith.addf %496, %512 : vector<16x16xf32>
    %c101 = arith.constant 101 : index
    %514 = memref.load %arg2[%c101] : memref<144xf32, #tpu.memory_space<smem>>
    %515 = vector.broadcast %514 : f32 to vector<16x16xf32>
    %516 = arith.mulf %515, %505 : vector<16x16xf32>
    %517 = arith.addf %500, %516 : vector<16x16xf32>
    %c137 = arith.constant 137 : index
    %518 = memref.load %arg2[%c137] : memref<144xf32, #tpu.memory_space<smem>>
    %519 = vector.broadcast %518 : f32 to vector<16x16xf32>
    %520 = arith.mulf %519, %505 : vector<16x16xf32>
    %521 = arith.addf %504, %520 : vector<16x16xf32>
    %522 = vector.extract_strided_slice %470 {offsets = [1, 0], sizes = [16, 16], strides = [1, 1]} : vector<18x18xf32> to vector<16x16xf32>
    %c30 = arith.constant 30 : index
    %523 = memref.load %arg2[%c30] : memref<144xf32, #tpu.memory_space<smem>>
    %524 = vector.broadcast %523 : f32 to vector<16x16xf32>
    %525 = arith.mulf %524, %522 : vector<16x16xf32>
    %526 = arith.addf %509, %525 : vector<16x16xf32>
    %c66 = arith.constant 66 : index
    %527 = memref.load %arg2[%c66] : memref<144xf32, #tpu.memory_space<smem>>
    %528 = vector.broadcast %527 : f32 to vector<16x16xf32>
    %529 = arith.mulf %528, %522 : vector<16x16xf32>
    %530 = arith.addf %513, %529 : vector<16x16xf32>
    %c102 = arith.constant 102 : index
    %531 = memref.load %arg2[%c102] : memref<144xf32, #tpu.memory_space<smem>>
    %532 = vector.broadcast %531 : f32 to vector<16x16xf32>
    %533 = arith.mulf %532, %522 : vector<16x16xf32>
    %534 = arith.addf %517, %533 : vector<16x16xf32>
    %c138 = arith.constant 138 : index
    %535 = memref.load %arg2[%c138] : memref<144xf32, #tpu.memory_space<smem>>
    %536 = vector.broadcast %535 : f32 to vector<16x16xf32>
    %537 = arith.mulf %536, %522 : vector<16x16xf32>
    %538 = arith.addf %521, %537 : vector<16x16xf32>
    %539 = vector.extract_strided_slice %470 {offsets = [1, 1], sizes = [16, 16], strides = [1, 1]} : vector<18x18xf32> to vector<16x16xf32>
    %c31 = arith.constant 31 : index
    %540 = memref.load %arg2[%c31] : memref<144xf32, #tpu.memory_space<smem>>
    %541 = vector.broadcast %540 : f32 to vector<16x16xf32>
    %542 = arith.mulf %541, %539 : vector<16x16xf32>
    %543 = arith.addf %526, %542 : vector<16x16xf32>
    %c67 = arith.constant 67 : index
    %544 = memref.load %arg2[%c67] : memref<144xf32, #tpu.memory_space<smem>>
    %545 = vector.broadcast %544 : f32 to vector<16x16xf32>
    %546 = arith.mulf %545, %539 : vector<16x16xf32>
    %547 = arith.addf %530, %546 : vector<16x16xf32>
    %c103 = arith.constant 103 : index
    %548 = memref.load %arg2[%c103] : memref<144xf32, #tpu.memory_space<smem>>
    %549 = vector.broadcast %548 : f32 to vector<16x16xf32>
    %550 = arith.mulf %549, %539 : vector<16x16xf32>
    %551 = arith.addf %534, %550 : vector<16x16xf32>
    %c139 = arith.constant 139 : index
    %552 = memref.load %arg2[%c139] : memref<144xf32, #tpu.memory_space<smem>>
    %553 = vector.broadcast %552 : f32 to vector<16x16xf32>
    %554 = arith.mulf %553, %539 : vector<16x16xf32>
    %555 = arith.addf %538, %554 : vector<16x16xf32>
    %556 = vector.extract_strided_slice %470 {offsets = [1, 2], sizes = [16, 16], strides = [1, 1]} : vector<18x18xf32> to vector<16x16xf32>
    %c32 = arith.constant 32 : index
    %557 = memref.load %arg2[%c32] : memref<144xf32, #tpu.memory_space<smem>>
    %558 = vector.broadcast %557 : f32 to vector<16x16xf32>
    %559 = arith.mulf %558, %556 : vector<16x16xf32>
    %560 = arith.addf %543, %559 : vector<16x16xf32>
    %c68 = arith.constant 68 : index
    %561 = memref.load %arg2[%c68] : memref<144xf32, #tpu.memory_space<smem>>
    %562 = vector.broadcast %561 : f32 to vector<16x16xf32>
    %563 = arith.mulf %562, %556 : vector<16x16xf32>
    %564 = arith.addf %547, %563 : vector<16x16xf32>
    %c104 = arith.constant 104 : index
    %565 = memref.load %arg2[%c104] : memref<144xf32, #tpu.memory_space<smem>>
    %566 = vector.broadcast %565 : f32 to vector<16x16xf32>
    %567 = arith.mulf %566, %556 : vector<16x16xf32>
    %568 = arith.addf %551, %567 : vector<16x16xf32>
    %c140 = arith.constant 140 : index
    %569 = memref.load %arg2[%c140] : memref<144xf32, #tpu.memory_space<smem>>
    %570 = vector.broadcast %569 : f32 to vector<16x16xf32>
    %571 = arith.mulf %570, %556 : vector<16x16xf32>
    %572 = arith.addf %555, %571 : vector<16x16xf32>
    %573 = vector.extract_strided_slice %470 {offsets = [2, 0], sizes = [16, 16], strides = [1, 1]} : vector<18x18xf32> to vector<16x16xf32>
    %c33 = arith.constant 33 : index
    %574 = memref.load %arg2[%c33] : memref<144xf32, #tpu.memory_space<smem>>
    %575 = vector.broadcast %574 : f32 to vector<16x16xf32>
    %576 = arith.mulf %575, %573 : vector<16x16xf32>
    %577 = arith.addf %560, %576 : vector<16x16xf32>
    %c69 = arith.constant 69 : index
    %578 = memref.load %arg2[%c69] : memref<144xf32, #tpu.memory_space<smem>>
    %579 = vector.broadcast %578 : f32 to vector<16x16xf32>
    %580 = arith.mulf %579, %573 : vector<16x16xf32>
    %581 = arith.addf %564, %580 : vector<16x16xf32>
    %c105 = arith.constant 105 : index
    %582 = memref.load %arg2[%c105] : memref<144xf32, #tpu.memory_space<smem>>
    %583 = vector.broadcast %582 : f32 to vector<16x16xf32>
    %584 = arith.mulf %583, %573 : vector<16x16xf32>
    %585 = arith.addf %568, %584 : vector<16x16xf32>
    %c141 = arith.constant 141 : index
    %586 = memref.load %arg2[%c141] : memref<144xf32, #tpu.memory_space<smem>>
    %587 = vector.broadcast %586 : f32 to vector<16x16xf32>
    %588 = arith.mulf %587, %573 : vector<16x16xf32>
    %589 = arith.addf %572, %588 : vector<16x16xf32>
    %590 = vector.extract_strided_slice %470 {offsets = [2, 1], sizes = [16, 16], strides = [1, 1]} : vector<18x18xf32> to vector<16x16xf32>
    %c34 = arith.constant 34 : index
    %591 = memref.load %arg2[%c34] : memref<144xf32, #tpu.memory_space<smem>>
    %592 = vector.broadcast %591 : f32 to vector<16x16xf32>
    %593 = arith.mulf %592, %590 : vector<16x16xf32>
    %594 = arith.addf %577, %593 : vector<16x16xf32>
    %c70 = arith.constant 70 : index
    %595 = memref.load %arg2[%c70] : memref<144xf32, #tpu.memory_space<smem>>
    %596 = vector.broadcast %595 : f32 to vector<16x16xf32>
    %597 = arith.mulf %596, %590 : vector<16x16xf32>
    %598 = arith.addf %581, %597 : vector<16x16xf32>
    %c106 = arith.constant 106 : index
    %599 = memref.load %arg2[%c106] : memref<144xf32, #tpu.memory_space<smem>>
    %600 = vector.broadcast %599 : f32 to vector<16x16xf32>
    %601 = arith.mulf %600, %590 : vector<16x16xf32>
    %602 = arith.addf %585, %601 : vector<16x16xf32>
    %c142 = arith.constant 142 : index
    %603 = memref.load %arg2[%c142] : memref<144xf32, #tpu.memory_space<smem>>
    %604 = vector.broadcast %603 : f32 to vector<16x16xf32>
    %605 = arith.mulf %604, %590 : vector<16x16xf32>
    %606 = arith.addf %589, %605 : vector<16x16xf32>
    %607 = vector.extract_strided_slice %470 {offsets = [2, 2], sizes = [16, 16], strides = [1, 1]} : vector<18x18xf32> to vector<16x16xf32>
    %c35 = arith.constant 35 : index
    %608 = memref.load %arg2[%c35] : memref<144xf32, #tpu.memory_space<smem>>
    %609 = vector.broadcast %608 : f32 to vector<16x16xf32>
    %610 = arith.mulf %609, %607 : vector<16x16xf32>
    %611 = arith.addf %594, %610 : vector<16x16xf32>
    %c71 = arith.constant 71 : index
    %612 = memref.load %arg2[%c71] : memref<144xf32, #tpu.memory_space<smem>>
    %613 = vector.broadcast %612 : f32 to vector<16x16xf32>
    %614 = arith.mulf %613, %607 : vector<16x16xf32>
    %615 = arith.addf %598, %614 : vector<16x16xf32>
    %c107 = arith.constant 107 : index
    %616 = memref.load %arg2[%c107] : memref<144xf32, #tpu.memory_space<smem>>
    %617 = vector.broadcast %616 : f32 to vector<16x16xf32>
    %618 = arith.mulf %617, %607 : vector<16x16xf32>
    %619 = arith.addf %602, %618 : vector<16x16xf32>
    %c143 = arith.constant 143 : index
    %620 = memref.load %arg2[%c143] : memref<144xf32, #tpu.memory_space<smem>>
    %621 = vector.broadcast %620 : f32 to vector<16x16xf32>
    %622 = arith.mulf %621, %607 : vector<16x16xf32>
    %623 = arith.addf %606, %622 : vector<16x16xf32>
    %cst_19 = arith.constant 0.000000e+00 : f32
    %624 = vector.broadcast %cst_19 : f32 to vector<4x18x18xf32>
    %c0_20 = arith.constant 0 : index
    %c0_21 = arith.constant 0 : index
    %c0_22 = arith.constant 0 : index
    %625 = vector.load %arg5[%c0_20, %c0_21, %c0_22] : memref<4x18x18xf32, #tpu.memory_space<vmem>>, vector<4x18x18xf32>
    tpu.vector_store %arg5[%c0_20, %c0_21, %c0_22], %624 {strides = array<i32>} : memref<4x18x18xf32, #tpu.memory_space<vmem>>, vector<4x18x18xf32>,
    %cst_23 = arith.constant 0.000000e+00 : f32
    %626 = vector.broadcast %cst_23 : f32 to vector<16x16xf32>
    %627 = arith.maximumf %611, %626 : vector<16x16xf32>
    %cst_24 = arith.constant 0.000000e+00 : f32
    %628 = vector.broadcast %cst_24 : f32 to vector<16x16xf32>
    %629 = arith.maximumf %615, %628 : vector<16x16xf32>
    %cst_25 = arith.constant 0.000000e+00 : f32
    %630 = vector.broadcast %cst_25 : f32 to vector<16x16xf32>
    %631 = arith.maximumf %619, %630 : vector<16x16xf32>
    %cst_26 = arith.constant 0.000000e+00 : f32
    %632 = vector.broadcast %cst_26 : f32 to vector<16x16xf32>
    %633 = arith.maximumf %623, %632 : vector<16x16xf32>
    %634 = vector.shape_cast %627 : vector<16x16xf32> to vector<1x16x16xf32>
    %635 = vector.shape_cast %629 : vector<16x16xf32> to vector<1x16x16xf32>
    %636 = vector.shape_cast %631 : vector<16x16xf32> to vector<1x16x16xf32>
    %637 = vector.shape_cast %633 : vector<16x16xf32> to vector<1x16x16xf32>
    %638 = tpu.concatenate %634, %635, %636, %637 in 0 : vector<1x16x16xf32>, vector<1x16x16xf32>, vector<1x16x16xf32>, vector<1x16x16xf32> -> vector<4x16x16xf32>
    %c0_27 = arith.constant 0 : index
    %c1_28 = arith.constant 1 : index
    %c2_29 = arith.constant 2 : index
    %639 = vector.load %arg5[%c0_27, %c1_28, %c2_29] : memref<4x18x18xf32, #tpu.memory_space<vmem>>, vector<4x16x16xf32>
    tpu.vector_store %arg5[%c0_27, %c1_28, %c2_29], %638 {strides = array<i32>} : memref<4x18x18xf32, #tpu.memory_space<vmem>>, vector<4x16x16xf32>,
    %cst_30 = arith.constant 0.000000e+00 : f32
    %640 = vector.broadcast %cst_30 : f32 to vector<16x16xf32>
    %cst_31 = arith.constant 0.000000e+00 : f32
    %641 = vector.broadcast %cst_31 : f32 to vector<16x16xf32>
    %cst_32 = arith.constant 0.000000e+00 : f32
    %642 = vector.broadcast %cst_32 : f32 to vector<16x16xf32>
    %cst_33 = arith.constant 0.000000e+00 : f32
    %643 = vector.broadcast %cst_33 : f32 to vector<16x16xf32>
    %c0_34 = arith.constant 0 : index
    %c0_35 = arith.constant 0 : index
    %c0_36 = arith.constant 0 : index
    %644 = vector.load %arg5[%c0_34, %c0_35, %c0_36] : memref<4x18x18xf32, #tpu.memory_space<vmem>>, vector<1x18x18xf32>
    %645 = vector.shape_cast %644 : vector<1x18x18xf32> to vector<18x18xf32>
    %646 = vector.extract_strided_slice %645 {offsets = [0, 0], sizes = [16, 16], strides = [1, 1]} : vector<18x18xf32> to vector<16x16xf32>
    %c0_37 = arith.constant 0 : index
    %647 = memref.load %arg3[%c0_37] : memref<144xf32, #tpu.memory_space<smem>>
    %648 = vector.broadcast %647 : f32 to vector<16x16xf32>
    %649 = arith.mulf %648, %646 : vector<16x16xf32>
    %650 = arith.addf %640, %649 : vector<16x16xf32>
    %c36_38 = arith.constant 36 : index
    %651 = memref.load %arg3[%c36_38] : memref<144xf32, #tpu.memory_space<smem>>
    %652 = vector.broadcast %651 : f32 to vector<16x16xf32>
    %653 = arith.mulf %652, %646 : vector<16x16xf32>
    %654 = arith.addf %641, %653 : vector<16x16xf32>
    %c72_39 = arith.constant 72 : index
    %655 = memref.load %arg3[%c72_39] : memref<144xf32, #tpu.memory_space<smem>>
    %656 = vector.broadcast %655 : f32 to vector<16x16xf32>
    %657 = arith.mulf %656, %646 : vector<16x16xf32>
    %658 = arith.addf %642, %657 : vector<16x16xf32>
    %c108_40 = arith.constant 108 : index
    %659 = memref.load %arg3[%c108_40] : memref<144xf32, #tpu.memory_space<smem>>
    %660 = vector.broadcast %659 : f32 to vector<16x16xf32>
    %661 = arith.mulf %660, %646 : vector<16x16xf32>
    %662 = arith.addf %643, %661 : vector<16x16xf32>
    %663 = vector.extract_strided_slice %645 {offsets = [0, 1], sizes = [16, 16], strides = [1, 1]} : vector<18x18xf32> to vector<16x16xf32>
    %c1_41 = arith.constant 1 : index
    %664 = memref.load %arg3[%c1_41] : memref<144xf32, #tpu.memory_space<smem>>
    %665 = vector.broadcast %664 : f32 to vector<16x16xf32>
    %666 = arith.mulf %665, %663 : vector<16x16xf32>
    %667 = arith.addf %650, %666 : vector<16x16xf32>
    %c37_42 = arith.constant 37 : index
    %668 = memref.load %arg3[%c37_42] : memref<144xf32, #tpu.memory_space<smem>>
    %669 = vector.broadcast %668 : f32 to vector<16x16xf32>
    %670 = arith.mulf %669, %663 : vector<16x16xf32>
    %671 = arith.addf %654, %670 : vector<16x16xf32>
    %c73_43 = arith.constant 73 : index
    %672 = memref.load %arg3[%c73_43] : memref<144xf32, #tpu.memory_space<smem>>
    %673 = vector.broadcast %672 : f32 to vector<16x16xf32>
    %674 = arith.mulf %673, %663 : vector<16x16xf32>
    %675 = arith.addf %658, %674 : vector<16x16xf32>
    %c109_44 = arith.constant 109 : index
    %676 = memref.load %arg3[%c109_44] : memref<144xf32, #tpu.memory_space<smem>>
    %677 = vector.broadcast %676 : f32 to vector<16x16xf32>
    %678 = arith.mulf %677, %663 : vector<16x16xf32>
    %679 = arith.addf %662, %678 : vector<16x16xf32>
    %680 = vector.extract_strided_slice %645 {offsets = [0, 2], sizes = [16, 16], strides = [1, 1]} : vector<18x18xf32> to vector<16x16xf32>
    %c2_45 = arith.constant 2 : index
    %681 = memref.load %arg3[%c2_45] : memref<144xf32, #tpu.memory_space<smem>>
    %682 = vector.broadcast %681 : f32 to vector<16x16xf32>
    %683 = arith.mulf %682, %680 : vector<16x16xf32>
    %684 = arith.addf %667, %683 : vector<16x16xf32>
    %c38_46 = arith.constant 38 : index
    %685 = memref.load %arg3[%c38_46] : memref<144xf32, #tpu.memory_space<smem>>
    %686 = vector.broadcast %685 : f32 to vector<16x16xf32>
    %687 = arith.mulf %686, %680 : vector<16x16xf32>
    %688 = arith.addf %671, %687 : vector<16x16xf32>
    %c74_47 = arith.constant 74 : index
    %689 = memref.load %arg3[%c74_47] : memref<144xf32, #tpu.memory_space<smem>>
    %690 = vector.broadcast %689 : f32 to vector<16x16xf32>
    %691 = arith.mulf %690, %680 : vector<16x16xf32>
    %692 = arith.addf %675, %691 : vector<16x16xf32>
    %c110_48 = arith.constant 110 : index
    %693 = memref.load %arg3[%c110_48] : memref<144xf32, #tpu.memory_space<smem>>
    %694 = vector.broadcast %693 : f32 to vector<16x16xf32>
    %695 = arith.mulf %694, %680 : vector<16x16xf32>
    %696 = arith.addf %679, %695 : vector<16x16xf32>
    %697 = vector.extract_strided_slice %645 {offsets = [1, 0], sizes = [16, 16], strides = [1, 1]} : vector<18x18xf32> to vector<16x16xf32>
    %c3_49 = arith.constant 3 : index
    %698 = memref.load %arg3[%c3_49] : memref<144xf32, #tpu.memory_space<smem>>
    %699 = vector.broadcast %698 : f32 to vector<16x16xf32>
    %700 = arith.mulf %699, %697 : vector<16x16xf32>
    %701 = arith.addf %684, %700 : vector<16x16xf32>
    %c39_50 = arith.constant 39 : index
    %702 = memref.load %arg3[%c39_50] : memref<144xf32, #tpu.memory_space<smem>>
    %703 = vector.broadcast %702 : f32 to vector<16x16xf32>
    %704 = arith.mulf %703, %697 : vector<16x16xf32>
    %705 = arith.addf %688, %704 : vector<16x16xf32>
    %c75_51 = arith.constant 75 : index
    %706 = memref.load %arg3[%c75_51] : memref<144xf32, #tpu.memory_space<smem>>
    %707 = vector.broadcast %706 : f32 to vector<16x16xf32>
    %708 = arith.mulf %707, %697 : vector<16x16xf32>
    %709 = arith.addf %692, %708 : vector<16x16xf32>
    %c111_52 = arith.constant 111 : index
    %710 = memref.load %arg3[%c111_52] : memref<144xf32, #tpu.memory_space<smem>>
    %711 = vector.broadcast %710 : f32 to vector<16x16xf32>
    %712 = arith.mulf %711, %697 : vector<16x16xf32>
    %713 = arith.addf %696, %712 : vector<16x16xf32>
    %714 = vector.extract_strided_slice %645 {offsets = [1, 1], sizes = [16, 16], strides = [1, 1]} : vector<18x18xf32> to vector<16x16xf32>
    %c4_53 = arith.constant 4 : index
    %715 = memref.load %arg3[%c4_53] : memref<144xf32, #tpu.memory_space<smem>>
    %716 = vector.broadcast %715 : f32 to vector<16x16xf32>
    %717 = arith.mulf %716, %714 : vector<16x16xf32>
    %718 = arith.addf %701, %717 : vector<16x16xf32>
    %c40_54 = arith.constant 40 : index
    %719 = memref.load %arg3[%c40_54] : memref<144xf32, #tpu.memory_space<smem>>
    %720 = vector.broadcast %719 : f32 to vector<16x16xf32>
    %721 = arith.mulf %720, %714 : vector<16x16xf32>
    %722 = arith.addf %705, %721 : vector<16x16xf32>
    %c76_55 = arith.constant 76 : index
    %723 = memref.load %arg3[%c76_55] : memref<144xf32, #tpu.memory_space<smem>>
    %724 = vector.broadcast %723 : f32 to vector<16x16xf32>
    %725 = arith.mulf %724, %714 : vector<16x16xf32>
    %726 = arith.addf %709, %725 : vector<16x16xf32>
    %c112_56 = arith.constant 112 : index
    %727 = memref.load %arg3[%c112_56] : memref<144xf32, #tpu.memory_space<smem>>
    %728 = vector.broadcast %727 : f32 to vector<16x16xf32>
    %729 = arith.mulf %728, %714 : vector<16x16xf32>
    %730 = arith.addf %713, %729 : vector<16x16xf32>
    %731 = vector.extract_strided_slice %645 {offsets = [1, 2], sizes = [16, 16], strides = [1, 1]} : vector<18x18xf32> to vector<16x16xf32>
    %c5_57 = arith.constant 5 : index
    %732 = memref.load %arg3[%c5_57] : memref<144xf32, #tpu.memory_space<smem>>
    %733 = vector.broadcast %732 : f32 to vector<16x16xf32>
    %734 = arith.mulf %733, %731 : vector<16x16xf32>
    %735 = arith.addf %718, %734 : vector<16x16xf32>
    %c41_58 = arith.constant 41 : index
    %736 = memref.load %arg3[%c41_58] : memref<144xf32, #tpu.memory_space<smem>>
    %737 = vector.broadcast %736 : f32 to vector<16x16xf32>
    %738 = arith.mulf %737, %731 : vector<16x16xf32>
    %739 = arith.addf %722, %738 : vector<16x16xf32>
    %c77_59 = arith.constant 77 : index
    %740 = memref.load %arg3[%c77_59] : memref<144xf32, #tpu.memory_space<smem>>
    %741 = vector.broadcast %740 : f32 to vector<16x16xf32>
    %742 = arith.mulf %741, %731 : vector<16x16xf32>
    %743 = arith.addf %726, %742 : vector<16x16xf32>
    %c113_60 = arith.constant 113 : index
    %744 = memref.load %arg3[%c113_60] : memref<144xf32, #tpu.memory_space<smem>>
    %745 = vector.broadcast %744 : f32 to vector<16x16xf32>
    %746 = arith.mulf %745, %731 : vector<16x16xf32>
    %747 = arith.addf %730, %746 : vector<16x16xf32>
    %748 = vector.extract_strided_slice %645 {offsets = [2, 0], sizes = [16, 16], strides = [1, 1]} : vector<18x18xf32> to vector<16x16xf32>
    %c6_61 = arith.constant 6 : index
    %749 = memref.load %arg3[%c6_61] : memref<144xf32, #tpu.memory_space<smem>>
    %750 = vector.broadcast %749 : f32 to vector<16x16xf32>
    %751 = arith.mulf %750, %748 : vector<16x16xf32>
    %752 = arith.addf %735, %751 : vector<16x16xf32>
    %c42_62 = arith.constant 42 : index
    %753 = memref.load %arg3[%c42_62] : memref<144xf32, #tpu.memory_space<smem>>
    %754 = vector.broadcast %753 : f32 to vector<16x16xf32>
    %755 = arith.mulf %754, %748 : vector<16x16xf32>
    %756 = arith.addf %739, %755 : vector<16x16xf32>
    %c78_63 = arith.constant 78 : index
    %757 = memref.load %arg3[%c78_63] : memref<144xf32, #tpu.memory_space<smem>>
    %758 = vector.broadcast %757 : f32 to vector<16x16xf32>
    %759 = arith.mulf %758, %748 : vector<16x16xf32>
    %760 = arith.addf %743, %759 : vector<16x16xf32>
    %c114_64 = arith.constant 114 : index
    %761 = memref.load %arg3[%c114_64] : memref<144xf32, #tpu.memory_space<smem>>
    %762 = vector.broadcast %761 : f32 to vector<16x16xf32>
    %763 = arith.mulf %762, %748 : vector<16x16xf32>
    %764 = arith.addf %747, %763 : vector<16x16xf32>
    %765 = vector.extract_strided_slice %645 {offsets = [2, 1], sizes = [16, 16], strides = [1, 1]} : vector<18x18xf32> to vector<16x16xf32>
    %c7_65 = arith.constant 7 : index
    %766 = memref.load %arg3[%c7_65] : memref<144xf32, #tpu.memory_space<smem>>
    %767 = vector.broadcast %766 : f32 to vector<16x16xf32>
    %768 = arith.mulf %767, %765 : vector<16x16xf32>
    %769 = arith.addf %752, %768 : vector<16x16xf32>
    %c43_66 = arith.constant 43 : index
    %770 = memref.load %arg3[%c43_66] : memref<144xf32, #tpu.memory_space<smem>>
    %771 = vector.broadcast %770 : f32 to vector<16x16xf32>
    %772 = arith.mulf %771, %765 : vector<16x16xf32>
    %773 = arith.addf %756, %772 : vector<16x16xf32>
    %c79_67 = arith.constant 79 : index
    %774 = memref.load %arg3[%c79_67] : memref<144xf32, #tpu.memory_space<smem>>
    %775 = vector.broadcast %774 : f32 to vector<16x16xf32>
    %776 = arith.mulf %775, %765 : vector<16x16xf32>
    %777 = arith.addf %760, %776 : vector<16x16xf32>
    %c115_68 = arith.constant 115 : index
    %778 = memref.load %arg3[%c115_68] : memref<144xf32, #tpu.memory_space<smem>>
    %779 = vector.broadcast %778 : f32 to vector<16x16xf32>
    %780 = arith.mulf %779, %765 : vector<16x16xf32>
    %781 = arith.addf %764, %780 : vector<16x16xf32>
    %782 = vector.extract_strided_slice %645 {offsets = [2, 2], sizes = [16, 16], strides = [1, 1]} : vector<18x18xf32> to vector<16x16xf32>
    %c8_69 = arith.constant 8 : index
    %783 = memref.load %arg3[%c8_69] : memref<144xf32, #tpu.memory_space<smem>>
    %784 = vector.broadcast %783 : f32 to vector<16x16xf32>
    %785 = arith.mulf %784, %782 : vector<16x16xf32>
    %786 = arith.addf %769, %785 : vector<16x16xf32>
    %c44_70 = arith.constant 44 : index
    %787 = memref.load %arg3[%c44_70] : memref<144xf32, #tpu.memory_space<smem>>
    %788 = vector.broadcast %787 : f32 to vector<16x16xf32>
    %789 = arith.mulf %788, %782 : vector<16x16xf32>
    %790 = arith.addf %773, %789 : vector<16x16xf32>
    %c80_71 = arith.constant 80 : index
    %791 = memref.load %arg3[%c80_71] : memref<144xf32, #tpu.memory_space<smem>>
    %792 = vector.broadcast %791 : f32 to vector<16x16xf32>
    %793 = arith.mulf %792, %782 : vector<16x16xf32>
    %794 = arith.addf %777, %793 : vector<16x16xf32>
    %c116_72 = arith.constant 116 : index
    %795 = memref.load %arg3[%c116_72] : memref<144xf32, #tpu.memory_space<smem>>
    %796 = vector.broadcast %795 : f32 to vector<16x16xf32>
    %797 = arith.mulf %796, %782 : vector<16x16xf32>
    %798 = arith.addf %781, %797 : vector<16x16xf32>
    %c1_73 = arith.constant 1 : index
    %c0_74 = arith.constant 0 : index
    %c0_75 = arith.constant 0 : index
    %799 = vector.load %arg5[%c1_73, %c0_74, %c0_75] : memref<4x18x18xf32, #tpu.memory_space<vmem>>, vector<1x18x18xf32>
    %800 = vector.shape_cast %799 : vector<1x18x18xf32> to vector<18x18xf32>
    %801 = vector.extract_strided_slice %800 {offsets = [0, 0], sizes = [16, 16], strides = [1, 1]} : vector<18x18xf32> to vector<16x16xf32>
    %c9_76 = arith.constant 9 : index
    %802 = memref.load %arg3[%c9_76] : memref<144xf32, #tpu.memory_space<smem>>
    %803 = vector.broadcast %802 : f32 to vector<16x16xf32>
    %804 = arith.mulf %803, %801 : vector<16x16xf32>
    %805 = arith.addf %786, %804 : vector<16x16xf32>
    %c45_77 = arith.constant 45 : index
    %806 = memref.load %arg3[%c45_77] : memref<144xf32, #tpu.memory_space<smem>>
    %807 = vector.broadcast %806 : f32 to vector<16x16xf32>
    %808 = arith.mulf %807, %801 : vector<16x16xf32>
    %809 = arith.addf %790, %808 : vector<16x16xf32>
    %c81_78 = arith.constant 81 : index
    %810 = memref.load %arg3[%c81_78] : memref<144xf32, #tpu.memory_space<smem>>
    %811 = vector.broadcast %810 : f32 to vector<16x16xf32>
    %812 = arith.mulf %811, %801 : vector<16x16xf32>
    %813 = arith.addf %794, %812 : vector<16x16xf32>
    %c117_79 = arith.constant 117 : index
    %814 = memref.load %arg3[%c117_79] : memref<144xf32, #tpu.memory_space<smem>>
    %815 = vector.broadcast %814 : f32 to vector<16x16xf32>
    %816 = arith.mulf %815, %801 : vector<16x16xf32>
    %817 = arith.addf %798, %816 : vector<16x16xf32>
    %818 = vector.extract_strided_slice %800 {offsets = [0, 1], sizes = [16, 16], strides = [1, 1]} : vector<18x18xf32> to vector<16x16xf32>
    %c10_80 = arith.constant 10 : index
    %819 = memref.load %arg3[%c10_80] : memref<144xf32, #tpu.memory_space<smem>>
    %820 = vector.broadcast %819 : f32 to vector<16x16xf32>
    %821 = arith.mulf %820, %818 : vector<16x16xf32>
    %822 = arith.addf %805, %821 : vector<16x16xf32>
    %c46_81 = arith.constant 46 : index
    %823 = memref.load %arg3[%c46_81] : memref<144xf32, #tpu.memory_space<smem>>
    %824 = vector.broadcast %823 : f32 to vector<16x16xf32>
    %825 = arith.mulf %824, %818 : vector<16x16xf32>
    %826 = arith.addf %809, %825 : vector<16x16xf32>
    %c82_82 = arith.constant 82 : index
    %827 = memref.load %arg3[%c82_82] : memref<144xf32, #tpu.memory_space<smem>>
    %828 = vector.broadcast %827 : f32 to vector<16x16xf32>
    %829 = arith.mulf %828, %818 : vector<16x16xf32>
    %830 = arith.addf %813, %829 : vector<16x16xf32>
    %c118_83 = arith.constant 118 : index
    %831 = memref.load %arg3[%c118_83] : memref<144xf32, #tpu.memory_space<smem>>
    %832 = vector.broadcast %831 : f32 to vector<16x16xf32>
    %833 = arith.mulf %832, %818 : vector<16x16xf32>
    %834 = arith.addf %817, %833 : vector<16x16xf32>
    %835 = vector.extract_strided_slice %800 {offsets = [0, 2], sizes = [16, 16], strides = [1, 1]} : vector<18x18xf32> to vector<16x16xf32>
    %c11_84 = arith.constant 11 : index
    %836 = memref.load %arg3[%c11_84] : memref<144xf32, #tpu.memory_space<smem>>
    %837 = vector.broadcast %836 : f32 to vector<16x16xf32>
    %838 = arith.mulf %837, %835 : vector<16x16xf32>
    %839 = arith.addf %822, %838 : vector<16x16xf32>
    %c47_85 = arith.constant 47 : index
    %840 = memref.load %arg3[%c47_85] : memref<144xf32, #tpu.memory_space<smem>>
    %841 = vector.broadcast %840 : f32 to vector<16x16xf32>
    %842 = arith.mulf %841, %835 : vector<16x16xf32>
    %843 = arith.addf %826, %842 : vector<16x16xf32>
    %c83_86 = arith.constant 83 : index
    %844 = memref.load %arg3[%c83_86] : memref<144xf32, #tpu.memory_space<smem>>
    %845 = vector.broadcast %844 : f32 to vector<16x16xf32>
    %846 = arith.mulf %845, %835 : vector<16x16xf32>
    %847 = arith.addf %830, %846 : vector<16x16xf32>
    %c119_87 = arith.constant 119 : index
    %848 = memref.load %arg3[%c119_87] : memref<144xf32, #tpu.memory_space<smem>>
    %849 = vector.broadcast %848 : f32 to vector<16x16xf32>
    %850 = arith.mulf %849, %835 : vector<16x16xf32>
    %851 = arith.addf %834, %850 : vector<16x16xf32>
    %852 = vector.extract_strided_slice %800 {offsets = [1, 0], sizes = [16, 16], strides = [1, 1]} : vector<18x18xf32> to vector<16x16xf32>
    %c12_88 = arith.constant 12 : index
    %853 = memref.load %arg3[%c12_88] : memref<144xf32, #tpu.memory_space<smem>>
    %854 = vector.broadcast %853 : f32 to vector<16x16xf32>
    %855 = arith.mulf %854, %852 : vector<16x16xf32>
    %856 = arith.addf %839, %855 : vector<16x16xf32>
    %c48_89 = arith.constant 48 : index
    %857 = memref.load %arg3[%c48_89] : memref<144xf32, #tpu.memory_space<smem>>
    %858 = vector.broadcast %857 : f32 to vector<16x16xf32>
    %859 = arith.mulf %858, %852 : vector<16x16xf32>
    %860 = arith.addf %843, %859 : vector<16x16xf32>
    %c84_90 = arith.constant 84 : index
    %861 = memref.load %arg3[%c84_90] : memref<144xf32, #tpu.memory_space<smem>>
    %862 = vector.broadcast %861 : f32 to vector<16x16xf32>
    %863 = arith.mulf %862, %852 : vector<16x16xf32>
    %864 = arith.addf %847, %863 : vector<16x16xf32>
    %c120_91 = arith.constant 120 : index
    %865 = memref.load %arg3[%c120_91] : memref<144xf32, #tpu.memory_space<smem>>
    %866 = vector.broadcast %865 : f32 to vector<16x16xf32>
    %867 = arith.mulf %866, %852 : vector<16x16xf32>
    %868 = arith.addf %851, %867 : vector<16x16xf32>
    %869 = vector.extract_strided_slice %800 {offsets = [1, 1], sizes = [16, 16], strides = [1, 1]} : vector<18x18xf32> to vector<16x16xf32>
    %c13_92 = arith.constant 13 : index
    %870 = memref.load %arg3[%c13_92] : memref<144xf32, #tpu.memory_space<smem>>
    %871 = vector.broadcast %870 : f32 to vector<16x16xf32>
    %872 = arith.mulf %871, %869 : vector<16x16xf32>
    %873 = arith.addf %856, %872 : vector<16x16xf32>
    %c49_93 = arith.constant 49 : index
    %874 = memref.load %arg3[%c49_93] : memref<144xf32, #tpu.memory_space<smem>>
    %875 = vector.broadcast %874 : f32 to vector<16x16xf32>
    %876 = arith.mulf %875, %869 : vector<16x16xf32>
    %877 = arith.addf %860, %876 : vector<16x16xf32>
    %c85_94 = arith.constant 85 : index
    %878 = memref.load %arg3[%c85_94] : memref<144xf32, #tpu.memory_space<smem>>
    %879 = vector.broadcast %878 : f32 to vector<16x16xf32>
    %880 = arith.mulf %879, %869 : vector<16x16xf32>
    %881 = arith.addf %864, %880 : vector<16x16xf32>
    %c121_95 = arith.constant 121 : index
    %882 = memref.load %arg3[%c121_95] : memref<144xf32, #tpu.memory_space<smem>>
    %883 = vector.broadcast %882 : f32 to vector<16x16xf32>
    %884 = arith.mulf %883, %869 : vector<16x16xf32>
    %885 = arith.addf %868, %884 : vector<16x16xf32>
    %886 = vector.extract_strided_slice %800 {offsets = [1, 2], sizes = [16, 16], strides = [1, 1]} : vector<18x18xf32> to vector<16x16xf32>
    %c14_96 = arith.constant 14 : index
    %887 = memref.load %arg3[%c14_96] : memref<144xf32, #tpu.memory_space<smem>>
    %888 = vector.broadcast %887 : f32 to vector<16x16xf32>
    %889 = arith.mulf %888, %886 : vector<16x16xf32>
    %890 = arith.addf %873, %889 : vector<16x16xf32>
    %c50_97 = arith.constant 50 : index
    %891 = memref.load %arg3[%c50_97] : memref<144xf32, #tpu.memory_space<smem>>
    %892 = vector.broadcast %891 : f32 to vector<16x16xf32>
    %893 = arith.mulf %892, %886 : vector<16x16xf32>
    %894 = arith.addf %877, %893 : vector<16x16xf32>
    %c86_98 = arith.constant 86 : index
    %895 = memref.load %arg3[%c86_98] : memref<144xf32, #tpu.memory_space<smem>>
    %896 = vector.broadcast %895 : f32 to vector<16x16xf32>
    %897 = arith.mulf %896, %886 : vector<16x16xf32>
    %898 = arith.addf %881, %897 : vector<16x16xf32>
    %c122_99 = arith.constant 122 : index
    %899 = memref.load %arg3[%c122_99] : memref<144xf32, #tpu.memory_space<smem>>
    %900 = vector.broadcast %899 : f32 to vector<16x16xf32>
    %901 = arith.mulf %900, %886 : vector<16x16xf32>
    %902 = arith.addf %885, %901 : vector<16x16xf32>
    %903 = vector.extract_strided_slice %800 {offsets = [2, 0], sizes = [16, 16], strides = [1, 1]} : vector<18x18xf32> to vector<16x16xf32>
    %c15_100 = arith.constant 15 : index
    %904 = memref.load %arg3[%c15_100] : memref<144xf32, #tpu.memory_space<smem>>
    %905 = vector.broadcast %904 : f32 to vector<16x16xf32>
    %906 = arith.mulf %905, %903 : vector<16x16xf32>
    %907 = arith.addf %890, %906 : vector<16x16xf32>
    %c51_101 = arith.constant 51 : index
    %908 = memref.load %arg3[%c51_101] : memref<144xf32, #tpu.memory_space<smem>>
    %909 = vector.broadcast %908 : f32 to vector<16x16xf32>
    %910 = arith.mulf %909, %903 : vector<16x16xf32>
    %911 = arith.addf %894, %910 : vector<16x16xf32>
    %c87_102 = arith.constant 87 : index
    %912 = memref.load %arg3[%c87_102] : memref<144xf32, #tpu.memory_space<smem>>
    %913 = vector.broadcast %912 : f32 to vector<16x16xf32>
    %914 = arith.mulf %913, %903 : vector<16x16xf32>
    %915 = arith.addf %898, %914 : vector<16x16xf32>
    %c123_103 = arith.constant 123 : index
    %916 = memref.load %arg3[%c123_103] : memref<144xf32, #tpu.memory_space<smem>>
    %917 = vector.broadcast %916 : f32 to vector<16x16xf32>
    %918 = arith.mulf %917, %903 : vector<16x16xf32>
    %919 = arith.addf %902, %918 : vector<16x16xf32>
    %920 = vector.extract_strided_slice %800 {offsets = [2, 1], sizes = [16, 16], strides = [1, 1]} : vector<18x18xf32> to vector<16x16xf32>
    %c16_104 = arith.constant 16 : index
    %921 = memref.load %arg3[%c16_104] : memref<144xf32, #tpu.memory_space<smem>>
    %922 = vector.broadcast %921 : f32 to vector<16x16xf32>
    %923 = arith.mulf %922, %920 : vector<16x16xf32>
    %924 = arith.addf %907, %923 : vector<16x16xf32>
    %c52_105 = arith.constant 52 : index
    %925 = memref.load %arg3[%c52_105] : memref<144xf32, #tpu.memory_space<smem>>
    %926 = vector.broadcast %925 : f32 to vector<16x16xf32>
    %927 = arith.mulf %926, %920 : vector<16x16xf32>
    %928 = arith.addf %911, %927 : vector<16x16xf32>
    %c88_106 = arith.constant 88 : index
    %929 = memref.load %arg3[%c88_106] : memref<144xf32, #tpu.memory_space<smem>>
    %930 = vector.broadcast %929 : f32 to vector<16x16xf32>
    %931 = arith.mulf %930, %920 : vector<16x16xf32>
    %932 = arith.addf %915, %931 : vector<16x16xf32>
    %c124_107 = arith.constant 124 : index
    %933 = memref.load %arg3[%c124_107] : memref<144xf32, #tpu.memory_space<smem>>
    %934 = vector.broadcast %933 : f32 to vector<16x16xf32>
    %935 = arith.mulf %934, %920 : vector<16x16xf32>
    %936 = arith.addf %919, %935 : vector<16x16xf32>
    %937 = vector.extract_strided_slice %800 {offsets = [2, 2], sizes = [16, 16], strides = [1, 1]} : vector<18x18xf32> to vector<16x16xf32>
    %c17_108 = arith.constant 17 : index
    %938 = memref.load %arg3[%c17_108] : memref<144xf32, #tpu.memory_space<smem>>
    %939 = vector.broadcast %938 : f32 to vector<16x16xf32>
    %940 = arith.mulf %939, %937 : vector<16x16xf32>
    %941 = arith.addf %924, %940 : vector<16x16xf32>
    %c53_109 = arith.constant 53 : index
    %942 = memref.load %arg3[%c53_109] : memref<144xf32, #tpu.memory_space<smem>>
    %943 = vector.broadcast %942 : f32 to vector<16x16xf32>
    %944 = arith.mulf %943, %937 : vector<16x16xf32>
    %945 = arith.addf %928, %944 : vector<16x16xf32>
    %c89_110 = arith.constant 89 : index
    %946 = memref.load %arg3[%c89_110] : memref<144xf32, #tpu.memory_space<smem>>
    %947 = vector.broadcast %946 : f32 to vector<16x16xf32>
    %948 = arith.mulf %947, %937 : vector<16x16xf32>
    %949 = arith.addf %932, %948 : vector<16x16xf32>
    %c125_111 = arith.constant 125 : index
    %950 = memref.load %arg3[%c125_111] : memref<144xf32, #tpu.memory_space<smem>>
    %951 = vector.broadcast %950 : f32 to vector<16x16xf32>
    %952 = arith.mulf %951, %937 : vector<16x16xf32>
    %953 = arith.addf %936, %952 : vector<16x16xf32>
    %c2_112 = arith.constant 2 : index
    %c0_113 = arith.constant 0 : index
    %c0_114 = arith.constant 0 : index
    %954 = vector.load %arg5[%c2_112, %c0_113, %c0_114] : memref<4x18x18xf32, #tpu.memory_space<vmem>>, vector<1x18x18xf32>
    %955 = vector.shape_cast %954 : vector<1x18x18xf32> to vector<18x18xf32>
    %956 = vector.extract_strided_slice %955 {offsets = [0, 0], sizes = [16, 16], strides = [1, 1]} : vector<18x18xf32> to vector<16x16xf32>
    %c18_115 = arith.constant 18 : index
    %957 = memref.load %arg3[%c18_115] : memref<144xf32, #tpu.memory_space<smem>>
    %958 = vector.broadcast %957 : f32 to vector<16x16xf32>
    %959 = arith.mulf %958, %956 : vector<16x16xf32>
    %960 = arith.addf %941, %959 : vector<16x16xf32>
    %c54_116 = arith.constant 54 : index
    %961 = memref.load %arg3[%c54_116] : memref<144xf32, #tpu.memory_space<smem>>
    %962 = vector.broadcast %961 : f32 to vector<16x16xf32>
    %963 = arith.mulf %962, %956 : vector<16x16xf32>
    %964 = arith.addf %945, %963 : vector<16x16xf32>
    %c90_117 = arith.constant 90 : index
    %965 = memref.load %arg3[%c90_117] : memref<144xf32, #tpu.memory_space<smem>>
    %966 = vector.broadcast %965 : f32 to vector<16x16xf32>
    %967 = arith.mulf %966, %956 : vector<16x16xf32>
    %968 = arith.addf %949, %967 : vector<16x16xf32>
    %c126_118 = arith.constant 126 : index
    %969 = memref.load %arg3[%c126_118] : memref<144xf32, #tpu.memory_space<smem>>
    %970 = vector.broadcast %969 : f32 to vector<16x16xf32>
    %971 = arith.mulf %970, %956 : vector<16x16xf32>
    %972 = arith.addf %953, %971 : vector<16x16xf32>
    %973 = vector.extract_strided_slice %955 {offsets = [0, 1], sizes = [16, 16], strides = [1, 1]} : vector<18x18xf32> to vector<16x16xf32>
    %c19_119 = arith.constant 19 : index
    %974 = memref.load %arg3[%c19_119] : memref<144xf32, #tpu.memory_space<smem>>
    %975 = vector.broadcast %974 : f32 to vector<16x16xf32>
    %976 = arith.mulf %975, %973 : vector<16x16xf32>
    %977 = arith.addf %960, %976 : vector<16x16xf32>
    %c55_120 = arith.constant 55 : index
    %978 = memref.load %arg3[%c55_120] : memref<144xf32, #tpu.memory_space<smem>>
    %979 = vector.broadcast %978 : f32 to vector<16x16xf32>
    %980 = arith.mulf %979, %973 : vector<16x16xf32>
    %981 = arith.addf %964, %980 : vector<16x16xf32>
    %c91_121 = arith.constant 91 : index
    %982 = memref.load %arg3[%c91_121] : memref<144xf32, #tpu.memory_space<smem>>
    %983 = vector.broadcast %982 : f32 to vector<16x16xf32>
    %984 = arith.mulf %983, %973 : vector<16x16xf32>
    %985 = arith.addf %968, %984 : vector<16x16xf32>
    %c127_122 = arith.constant 127 : index
    %986 = memref.load %arg3[%c127_122] : memref<144xf32, #tpu.memory_space<smem>>
    %987 = vector.broadcast %986 : f32 to vector<16x16xf32>
    %988 = arith.mulf %987, %973 : vector<16x16xf32>
    %989 = arith.addf %972, %988 : vector<16x16xf32>
    %990 = vector.extract_strided_slice %955 {offsets = [0, 2], sizes = [16, 16], strides = [1, 1]} : vector<18x18xf32> to vector<16x16xf32>
    %c20_123 = arith.constant 20 : index
    %991 = memref.load %arg3[%c20_123] : memref<144xf32, #tpu.memory_space<smem>>
    %992 = vector.broadcast %991 : f32 to vector<16x16xf32>
    %993 = arith.mulf %992, %990 : vector<16x16xf32>
    %994 = arith.addf %977, %993 : vector<16x16xf32>
    %c56_124 = arith.constant 56 : index
    %995 = memref.load %arg3[%c56_124] : memref<144xf32, #tpu.memory_space<smem>>
    %996 = vector.broadcast %995 : f32 to vector<16x16xf32>
    %997 = arith.mulf %996, %990 : vector<16x16xf32>
    %998 = arith.addf %981, %997 : vector<16x16xf32>
    %c92_125 = arith.constant 92 : index
    %999 = memref.load %arg3[%c92_125] : memref<144xf32, #tpu.memory_space<smem>>
    %1000 = vector.broadcast %999 : f32 to vector<16x16xf32>
    %1001 = arith.mulf %1000, %990 : vector<16x16xf32>
    %1002 = arith.addf %985, %1001 : vector<16x16xf32>
    %c128_126 = arith.constant 128 : index
    %1003 = memref.load %arg3[%c128_126] : memref<144xf32, #tpu.memory_space<smem>>
    %1004 = vector.broadcast %1003 : f32 to vector<16x16xf32>
    %1005 = arith.mulf %1004, %990 : vector<16x16xf32>
    %1006 = arith.addf %989, %1005 : vector<16x16xf32>
    %1007 = vector.extract_strided_slice %955 {offsets = [1, 0], sizes = [16, 16], strides = [1, 1]} : vector<18x18xf32> to vector<16x16xf32>
    %c21_127 = arith.constant 21 : index
    %1008 = memref.load %arg3[%c21_127] : memref<144xf32, #tpu.memory_space<smem>>
    %1009 = vector.broadcast %1008 : f32 to vector<16x16xf32>
    %1010 = arith.mulf %1009, %1007 : vector<16x16xf32>
    %1011 = arith.addf %994, %1010 : vector<16x16xf32>
    %c57_128 = arith.constant 57 : index
    %1012 = memref.load %arg3[%c57_128] : memref<144xf32, #tpu.memory_space<smem>>
    %1013 = vector.broadcast %1012 : f32 to vector<16x16xf32>
    %1014 = arith.mulf %1013, %1007 : vector<16x16xf32>
    %1015 = arith.addf %998, %1014 : vector<16x16xf32>
    %c93_129 = arith.constant 93 : index
    %1016 = memref.load %arg3[%c93_129] : memref<144xf32, #tpu.memory_space<smem>>
    %1017 = vector.broadcast %1016 : f32 to vector<16x16xf32>
    %1018 = arith.mulf %1017, %1007 : vector<16x16xf32>
    %1019 = arith.addf %1002, %1018 : vector<16x16xf32>
    %c129_130 = arith.constant 129 : index
    %1020 = memref.load %arg3[%c129_130] : memref<144xf32, #tpu.memory_space<smem>>
    %1021 = vector.broadcast %1020 : f32 to vector<16x16xf32>
    %1022 = arith.mulf %1021, %1007 : vector<16x16xf32>
    %1023 = arith.addf %1006, %1022 : vector<16x16xf32>
    %1024 = vector.extract_strided_slice %955 {offsets = [1, 1], sizes = [16, 16], strides = [1, 1]} : vector<18x18xf32> to vector<16x16xf32>
    %c22_131 = arith.constant 22 : index
    %1025 = memref.load %arg3[%c22_131] : memref<144xf32, #tpu.memory_space<smem>>
    %1026 = vector.broadcast %1025 : f32 to vector<16x16xf32>
    %1027 = arith.mulf %1026, %1024 : vector<16x16xf32>
    %1028 = arith.addf %1011, %1027 : vector<16x16xf32>
    %c58_132 = arith.constant 58 : index
    %1029 = memref.load %arg3[%c58_132] : memref<144xf32, #tpu.memory_space<smem>>
    %1030 = vector.broadcast %1029 : f32 to vector<16x16xf32>
    %1031 = arith.mulf %1030, %1024 : vector<16x16xf32>
    %1032 = arith.addf %1015, %1031 : vector<16x16xf32>
    %c94_133 = arith.constant 94 : index
    %1033 = memref.load %arg3[%c94_133] : memref<144xf32, #tpu.memory_space<smem>>
    %1034 = vector.broadcast %1033 : f32 to vector<16x16xf32>
    %1035 = arith.mulf %1034, %1024 : vector<16x16xf32>
    %1036 = arith.addf %1019, %1035 : vector<16x16xf32>
    %c130_134 = arith.constant 130 : index
    %1037 = memref.load %arg3[%c130_134] : memref<144xf32, #tpu.memory_space<smem>>
    %1038 = vector.broadcast %1037 : f32 to vector<16x16xf32>
    %1039 = arith.mulf %1038, %1024 : vector<16x16xf32>
    %1040 = arith.addf %1023, %1039 : vector<16x16xf32>
    %1041 = vector.extract_strided_slice %955 {offsets = [1, 2], sizes = [16, 16], strides = [1, 1]} : vector<18x18xf32> to vector<16x16xf32>
    %c23_135 = arith.constant 23 : index
    %1042 = memref.load %arg3[%c23_135] : memref<144xf32, #tpu.memory_space<smem>>
    %1043 = vector.broadcast %1042 : f32 to vector<16x16xf32>
    %1044 = arith.mulf %1043, %1041 : vector<16x16xf32>
    %1045 = arith.addf %1028, %1044 : vector<16x16xf32>
    %c59_136 = arith.constant 59 : index
    %1046 = memref.load %arg3[%c59_136] : memref<144xf32, #tpu.memory_space<smem>>
    %1047 = vector.broadcast %1046 : f32 to vector<16x16xf32>
    %1048 = arith.mulf %1047, %1041 : vector<16x16xf32>
    %1049 = arith.addf %1032, %1048 : vector<16x16xf32>
    %c95_137 = arith.constant 95 : index
    %1050 = memref.load %arg3[%c95_137] : memref<144xf32, #tpu.memory_space<smem>>
    %1051 = vector.broadcast %1050 : f32 to vector<16x16xf32>
    %1052 = arith.mulf %1051, %1041 : vector<16x16xf32>
    %1053 = arith.addf %1036, %1052 : vector<16x16xf32>
    %c131_138 = arith.constant 131 : index
    %1054 = memref.load %arg3[%c131_138] : memref<144xf32, #tpu.memory_space<smem>>
    %1055 = vector.broadcast %1054 : f32 to vector<16x16xf32>
    %1056 = arith.mulf %1055, %1041 : vector<16x16xf32>
    %1057 = arith.addf %1040, %1056 : vector<16x16xf32>
    %1058 = vector.extract_strided_slice %955 {offsets = [2, 0], sizes = [16, 16], strides = [1, 1]} : vector<18x18xf32> to vector<16x16xf32>
    %c24_139 = arith.constant 24 : index
    %1059 = memref.load %arg3[%c24_139] : memref<144xf32, #tpu.memory_space<smem>>
    %1060 = vector.broadcast %1059 : f32 to vector<16x16xf32>
    %1061 = arith.mulf %1060, %1058 : vector<16x16xf32>
    %1062 = arith.addf %1045, %1061 : vector<16x16xf32>
    %c60_140 = arith.constant 60 : index
    %1063 = memref.load %arg3[%c60_140] : memref<144xf32, #tpu.memory_space<smem>>
    %1064 = vector.broadcast %1063 : f32 to vector<16x16xf32>
    %1065 = arith.mulf %1064, %1058 : vector<16x16xf32>
    %1066 = arith.addf %1049, %1065 : vector<16x16xf32>
    %c96_141 = arith.constant 96 : index
    %1067 = memref.load %arg3[%c96_141] : memref<144xf32, #tpu.memory_space<smem>>
    %1068 = vector.broadcast %1067 : f32 to vector<16x16xf32>
    %1069 = arith.mulf %1068, %1058 : vector<16x16xf32>
    %1070 = arith.addf %1053, %1069 : vector<16x16xf32>
    %c132_142 = arith.constant 132 : index
    %1071 = memref.load %arg3[%c132_142] : memref<144xf32, #tpu.memory_space<smem>>
    %1072 = vector.broadcast %1071 : f32 to vector<16x16xf32>
    %1073 = arith.mulf %1072, %1058 : vector<16x16xf32>
    %1074 = arith.addf %1057, %1073 : vector<16x16xf32>
    %1075 = vector.extract_strided_slice %955 {offsets = [2, 1], sizes = [16, 16], strides = [1, 1]} : vector<18x18xf32> to vector<16x16xf32>
    %c25_143 = arith.constant 25 : index
    %1076 = memref.load %arg3[%c25_143] : memref<144xf32, #tpu.memory_space<smem>>
    %1077 = vector.broadcast %1076 : f32 to vector<16x16xf32>
    %1078 = arith.mulf %1077, %1075 : vector<16x16xf32>
    %1079 = arith.addf %1062, %1078 : vector<16x16xf32>
    %c61_144 = arith.constant 61 : index
    %1080 = memref.load %arg3[%c61_144] : memref<144xf32, #tpu.memory_space<smem>>
    %1081 = vector.broadcast %1080 : f32 to vector<16x16xf32>
    %1082 = arith.mulf %1081, %1075 : vector<16x16xf32>
    %1083 = arith.addf %1066, %1082 : vector<16x16xf32>
    %c97_145 = arith.constant 97 : index
    %1084 = memref.load %arg3[%c97_145] : memref<144xf32, #tpu.memory_space<smem>>
    %1085 = vector.broadcast %1084 : f32 to vector<16x16xf32>
    %1086 = arith.mulf %1085, %1075 : vector<16x16xf32>
    %1087 = arith.addf %1070, %1086 : vector<16x16xf32>
    %c133_146 = arith.constant 133 : index
    %1088 = memref.load %arg3[%c133_146] : memref<144xf32, #tpu.memory_space<smem>>
    %1089 = vector.broadcast %1088 : f32 to vector<16x16xf32>
    %1090 = arith.mulf %1089, %1075 : vector<16x16xf32>
    %1091 = arith.addf %1074, %1090 : vector<16x16xf32>
    %1092 = vector.extract_strided_slice %955 {offsets = [2, 2], sizes = [16, 16], strides = [1, 1]} : vector<18x18xf32> to vector<16x16xf32>
    %c26_147 = arith.constant 26 : index
    %1093 = memref.load %arg3[%c26_147] : memref<144xf32, #tpu.memory_space<smem>>
    %1094 = vector.broadcast %1093 : f32 to vector<16x16xf32>
    %1095 = arith.mulf %1094, %1092 : vector<16x16xf32>
    %1096 = arith.addf %1079, %1095 : vector<16x16xf32>
    %c62_148 = arith.constant 62 : index
    %1097 = memref.load %arg3[%c62_148] : memref<144xf32, #tpu.memory_space<smem>>
    %1098 = vector.broadcast %1097 : f32 to vector<16x16xf32>
    %1099 = arith.mulf %1098, %1092 : vector<16x16xf32>
    %1100 = arith.addf %1083, %1099 : vector<16x16xf32>
    %c98_149 = arith.constant 98 : index
    %1101 = memref.load %arg3[%c98_149] : memref<144xf32, #tpu.memory_space<smem>>
    %1102 = vector.broadcast %1101 : f32 to vector<16x16xf32>
    %1103 = arith.mulf %1102, %1092 : vector<16x16xf32>
    %1104 = arith.addf %1087, %1103 : vector<16x16xf32>
    %c134_150 = arith.constant 134 : index
    %1105 = memref.load %arg3[%c134_150] : memref<144xf32, #tpu.memory_space<smem>>
    %1106 = vector.broadcast %1105 : f32 to vector<16x16xf32>
    %1107 = arith.mulf %1106, %1092 : vector<16x16xf32>
    %1108 = arith.addf %1091, %1107 : vector<16x16xf32>
    %c3_151 = arith.constant 3 : index
    %c0_152 = arith.constant 0 : index
    %c0_153 = arith.constant 0 : index
    %1109 = vector.load %arg5[%c3_151, %c0_152, %c0_153] : memref<4x18x18xf32, #tpu.memory_space<vmem>>, vector<1x18x18xf32>
    %1110 = vector.shape_cast %1109 : vector<1x18x18xf32> to vector<18x18xf32>
    %1111 = vector.extract_strided_slice %1110 {offsets = [0, 0], sizes = [16, 16], strides = [1, 1]} : vector<18x18xf32> to vector<16x16xf32>
    %c27_154 = arith.constant 27 : index
    %1112 = memref.load %arg3[%c27_154] : memref<144xf32, #tpu.memory_space<smem>>
    %1113 = vector.broadcast %1112 : f32 to vector<16x16xf32>
    %1114 = arith.mulf %1113, %1111 : vector<16x16xf32>
    %1115 = arith.addf %1096, %1114 : vector<16x16xf32>
    %c63_155 = arith.constant 63 : index
    %1116 = memref.load %arg3[%c63_155] : memref<144xf32, #tpu.memory_space<smem>>
    %1117 = vector.broadcast %1116 : f32 to vector<16x16xf32>
    %1118 = arith.mulf %1117, %1111 : vector<16x16xf32>
    %1119 = arith.addf %1100, %1118 : vector<16x16xf32>
    %c99_156 = arith.constant 99 : index
    %1120 = memref.load %arg3[%c99_156] : memref<144xf32, #tpu.memory_space<smem>>
    %1121 = vector.broadcast %1120 : f32 to vector<16x16xf32>
    %1122 = arith.mulf %1121, %1111 : vector<16x16xf32>
    %1123 = arith.addf %1104, %1122 : vector<16x16xf32>
    %c135_157 = arith.constant 135 : index
    %1124 = memref.load %arg3[%c135_157] : memref<144xf32, #tpu.memory_space<smem>>
    %1125 = vector.broadcast %1124 : f32 to vector<16x16xf32>
    %1126 = arith.mulf %1125, %1111 : vector<16x16xf32>
    %1127 = arith.addf %1108, %1126 : vector<16x16xf32>
    %1128 = vector.extract_strided_slice %1110 {offsets = [0, 1], sizes = [16, 16], strides = [1, 1]} : vector<18x18xf32> to vector<16x16xf32>
    %c28_158 = arith.constant 28 : index
    %1129 = memref.load %arg3[%c28_158] : memref<144xf32, #tpu.memory_space<smem>>
    %1130 = vector.broadcast %1129 : f32 to vector<16x16xf32>
    %1131 = arith.mulf %1130, %1128 : vector<16x16xf32>
    %1132 = arith.addf %1115, %1131 : vector<16x16xf32>
    %c64_159 = arith.constant 64 : index
    %1133 = memref.load %arg3[%c64_159] : memref<144xf32, #tpu.memory_space<smem>>
    %1134 = vector.broadcast %1133 : f32 to vector<16x16xf32>
    %1135 = arith.mulf %1134, %1128 : vector<16x16xf32>
    %1136 = arith.addf %1119, %1135 : vector<16x16xf32>
    %c100_160 = arith.constant 100 : index
    %1137 = memref.load %arg3[%c100_160] : memref<144xf32, #tpu.memory_space<smem>>
    %1138 = vector.broadcast %1137 : f32 to vector<16x16xf32>
    %1139 = arith.mulf %1138, %1128 : vector<16x16xf32>
    %1140 = arith.addf %1123, %1139 : vector<16x16xf32>
    %c136_161 = arith.constant 136 : index
    %1141 = memref.load %arg3[%c136_161] : memref<144xf32, #tpu.memory_space<smem>>
    %1142 = vector.broadcast %1141 : f32 to vector<16x16xf32>
    %1143 = arith.mulf %1142, %1128 : vector<16x16xf32>
    %1144 = arith.addf %1127, %1143 : vector<16x16xf32>
    %1145 = vector.extract_strided_slice %1110 {offsets = [0, 2], sizes = [16, 16], strides = [1, 1]} : vector<18x18xf32> to vector<16x16xf32>
    %c29_162 = arith.constant 29 : index
    %1146 = memref.load %arg3[%c29_162] : memref<144xf32, #tpu.memory_space<smem>>
    %1147 = vector.broadcast %1146 : f32 to vector<16x16xf32>
    %1148 = arith.mulf %1147, %1145 : vector<16x16xf32>
    %1149 = arith.addf %1132, %1148 : vector<16x16xf32>
    %c65_163 = arith.constant 65 : index
    %1150 = memref.load %arg3[%c65_163] : memref<144xf32, #tpu.memory_space<smem>>
    %1151 = vector.broadcast %1150 : f32 to vector<16x16xf32>
    %1152 = arith.mulf %1151, %1145 : vector<16x16xf32>
    %1153 = arith.addf %1136, %1152 : vector<16x16xf32>
    %c101_164 = arith.constant 101 : index
    %1154 = memref.load %arg3[%c101_164] : memref<144xf32, #tpu.memory_space<smem>>
    %1155 = vector.broadcast %1154 : f32 to vector<16x16xf32>
    %1156 = arith.mulf %1155, %1145 : vector<16x16xf32>
    %1157 = arith.addf %1140, %1156 : vector<16x16xf32>
    %c137_165 = arith.constant 137 : index
    %1158 = memref.load %arg3[%c137_165] : memref<144xf32, #tpu.memory_space<smem>>
    %1159 = vector.broadcast %1158 : f32 to vector<16x16xf32>
    %1160 = arith.mulf %1159, %1145 : vector<16x16xf32>
    %1161 = arith.addf %1144, %1160 : vector<16x16xf32>
    %1162 = vector.extract_strided_slice %1110 {offsets = [1, 0], sizes = [16, 16], strides = [1, 1]} : vector<18x18xf32> to vector<16x16xf32>
    %c30_166 = arith.constant 30 : index
    %1163 = memref.load %arg3[%c30_166] : memref<144xf32, #tpu.memory_space<smem>>
    %1164 = vector.broadcast %1163 : f32 to vector<16x16xf32>
    %1165 = arith.mulf %1164, %1162 : vector<16x16xf32>
    %1166 = arith.addf %1149, %1165 : vector<16x16xf32>
    %c66_167 = arith.constant 66 : index
    %1167 = memref.load %arg3[%c66_167] : memref<144xf32, #tpu.memory_space<smem>>
    %1168 = vector.broadcast %1167 : f32 to vector<16x16xf32>
    %1169 = arith.mulf %1168, %1162 : vector<16x16xf32>
    %1170 = arith.addf %1153, %1169 : vector<16x16xf32>
    %c102_168 = arith.constant 102 : index
    %1171 = memref.load %arg3[%c102_168] : memref<144xf32, #tpu.memory_space<smem>>
    %1172 = vector.broadcast %1171 : f32 to vector<16x16xf32>
    %1173 = arith.mulf %1172, %1162 : vector<16x16xf32>
    %1174 = arith.addf %1157, %1173 : vector<16x16xf32>
    %c138_169 = arith.constant 138 : index
    %1175 = memref.load %arg3[%c138_169] : memref<144xf32, #tpu.memory_space<smem>>
    %1176 = vector.broadcast %1175 : f32 to vector<16x16xf32>
    %1177 = arith.mulf %1176, %1162 : vector<16x16xf32>
    %1178 = arith.addf %1161, %1177 : vector<16x16xf32>
    %1179 = vector.extract_strided_slice %1110 {offsets = [1, 1], sizes = [16, 16], strides = [1, 1]} : vector<18x18xf32> to vector<16x16xf32>
    %c31_170 = arith.constant 31 : index
    %1180 = memref.load %arg3[%c31_170] : memref<144xf32, #tpu.memory_space<smem>>
    %1181 = vector.broadcast %1180 : f32 to vector<16x16xf32>
    %1182 = arith.mulf %1181, %1179 : vector<16x16xf32>
    %1183 = arith.addf %1166, %1182 : vector<16x16xf32>
    %c67_171 = arith.constant 67 : index
    %1184 = memref.load %arg3[%c67_171] : memref<144xf32, #tpu.memory_space<smem>>
    %1185 = vector.broadcast %1184 : f32 to vector<16x16xf32>
    %1186 = arith.mulf %1185, %1179 : vector<16x16xf32>
    %1187 = arith.addf %1170, %1186 : vector<16x16xf32>
    %c103_172 = arith.constant 103 : index
    %1188 = memref.load %arg3[%c103_172] : memref<144xf32, #tpu.memory_space<smem>>
    %1189 = vector.broadcast %1188 : f32 to vector<16x16xf32>
    %1190 = arith.mulf %1189, %1179 : vector<16x16xf32>
    %1191 = arith.addf %1174, %1190 : vector<16x16xf32>
    %c139_173 = arith.constant 139 : index
    %1192 = memref.load %arg3[%c139_173] : memref<144xf32, #tpu.memory_space<smem>>
    %1193 = vector.broadcast %1192 : f32 to vector<16x16xf32>
    %1194 = arith.mulf %1193, %1179 : vector<16x16xf32>
    %1195 = arith.addf %1178, %1194 : vector<16x16xf32>
    %1196 = vector.extract_strided_slice %1110 {offsets = [1, 2], sizes = [16, 16], strides = [1, 1]} : vector<18x18xf32> to vector<16x16xf32>
    %c32_174 = arith.constant 32 : index
    %1197 = memref.load %arg3[%c32_174] : memref<144xf32, #tpu.memory_space<smem>>
    %1198 = vector.broadcast %1197 : f32 to vector<16x16xf32>
    %1199 = arith.mulf %1198, %1196 : vector<16x16xf32>
    %1200 = arith.addf %1183, %1199 : vector<16x16xf32>
    %c68_175 = arith.constant 68 : index
    %1201 = memref.load %arg3[%c68_175] : memref<144xf32, #tpu.memory_space<smem>>
    %1202 = vector.broadcast %1201 : f32 to vector<16x16xf32>
    %1203 = arith.mulf %1202, %1196 : vector<16x16xf32>
    %1204 = arith.addf %1187, %1203 : vector<16x16xf32>
    %c104_176 = arith.constant 104 : index
    %1205 = memref.load %arg3[%c104_176] : memref<144xf32, #tpu.memory_space<smem>>
    %1206 = vector.broadcast %1205 : f32 to vector<16x16xf32>
    %1207 = arith.mulf %1206, %1196 : vector<16x16xf32>
    %1208 = arith.addf %1191, %1207 : vector<16x16xf32>
    %c140_177 = arith.constant 140 : index
    %1209 = memref.load %arg3[%c140_177] : memref<144xf32, #tpu.memory_space<smem>>
    %1210 = vector.broadcast %1209 : f32 to vector<16x16xf32>
    %1211 = arith.mulf %1210, %1196 : vector<16x16xf32>
    %1212 = arith.addf %1195, %1211 : vector<16x16xf32>
    %1213 = vector.extract_strided_slice %1110 {offsets = [2, 0], sizes = [16, 16], strides = [1, 1]} : vector<18x18xf32> to vector<16x16xf32>
    %c33_178 = arith.constant 33 : index
    %1214 = memref.load %arg3[%c33_178] : memref<144xf32, #tpu.memory_space<smem>>
    %1215 = vector.broadcast %1214 : f32 to vector<16x16xf32>
    %1216 = arith.mulf %1215, %1213 : vector<16x16xf32>
    %1217 = arith.addf %1200, %1216 : vector<16x16xf32>
    %c69_179 = arith.constant 69 : index
    %1218 = memref.load %arg3[%c69_179] : memref<144xf32, #tpu.memory_space<smem>>
    %1219 = vector.broadcast %1218 : f32 to vector<16x16xf32>
    %1220 = arith.mulf %1219, %1213 : vector<16x16xf32>
    %1221 = arith.addf %1204, %1220 : vector<16x16xf32>
    %c105_180 = arith.constant 105 : index
    %1222 = memref.load %arg3[%c105_180] : memref<144xf32, #tpu.memory_space<smem>>
    %1223 = vector.broadcast %1222 : f32 to vector<16x16xf32>
    %1224 = arith.mulf %1223, %1213 : vector<16x16xf32>
    %1225 = arith.addf %1208, %1224 : vector<16x16xf32>
    %c141_181 = arith.constant 141 : index
    %1226 = memref.load %arg3[%c141_181] : memref<144xf32, #tpu.memory_space<smem>>
    %1227 = vector.broadcast %1226 : f32 to vector<16x16xf32>
    %1228 = arith.mulf %1227, %1213 : vector<16x16xf32>
    %1229 = arith.addf %1212, %1228 : vector<16x16xf32>
    %1230 = vector.extract_strided_slice %1110 {offsets = [2, 1], sizes = [16, 16], strides = [1, 1]} : vector<18x18xf32> to vector<16x16xf32>
    %c34_182 = arith.constant 34 : index
    %1231 = memref.load %arg3[%c34_182] : memref<144xf32, #tpu.memory_space<smem>>
    %1232 = vector.broadcast %1231 : f32 to vector<16x16xf32>
    %1233 = arith.mulf %1232, %1230 : vector<16x16xf32>
    %1234 = arith.addf %1217, %1233 : vector<16x16xf32>
    %c70_183 = arith.constant 70 : index
    %1235 = memref.load %arg3[%c70_183] : memref<144xf32, #tpu.memory_space<smem>>
    %1236 = vector.broadcast %1235 : f32 to vector<16x16xf32>
    %1237 = arith.mulf %1236, %1230 : vector<16x16xf32>
    %1238 = arith.addf %1221, %1237 : vector<16x16xf32>
    %c106_184 = arith.constant 106 : index
    %1239 = memref.load %arg3[%c106_184] : memref<144xf32, #tpu.memory_space<smem>>
    %1240 = vector.broadcast %1239 : f32 to vector<16x16xf32>
    %1241 = arith.mulf %1240, %1230 : vector<16x16xf32>
    %1242 = arith.addf %1225, %1241 : vector<16x16xf32>
    %c142_185 = arith.constant 142 : index
    %1243 = memref.load %arg3[%c142_185] : memref<144xf32, #tpu.memory_space<smem>>
    %1244 = vector.broadcast %1243 : f32 to vector<16x16xf32>
    %1245 = arith.mulf %1244, %1230 : vector<16x16xf32>
    %1246 = arith.addf %1229, %1245 : vector<16x16xf32>
    %1247 = vector.extract_strided_slice %1110 {offsets = [2, 2], sizes = [16, 16], strides = [1, 1]} : vector<18x18xf32> to vector<16x16xf32>
    %c35_186 = arith.constant 35 : index
    %1248 = memref.load %arg3[%c35_186] : memref<144xf32, #tpu.memory_space<smem>>
    %1249 = vector.broadcast %1248 : f32 to vector<16x16xf32>
    %1250 = arith.mulf %1249, %1247 : vector<16x16xf32>
    %1251 = arith.addf %1234, %1250 : vector<16x16xf32>
    %c71_187 = arith.constant 71 : index
    %1252 = memref.load %arg3[%c71_187] : memref<144xf32, #tpu.memory_space<smem>>
    %1253 = vector.broadcast %1252 : f32 to vector<16x16xf32>
    %1254 = arith.mulf %1253, %1247 : vector<16x16xf32>
    %1255 = arith.addf %1238, %1254 : vector<16x16xf32>
    %c107_188 = arith.constant 107 : index
    %1256 = memref.load %arg3[%c107_188] : memref<144xf32, #tpu.memory_space<smem>>
    %1257 = vector.broadcast %1256 : f32 to vector<16x16xf32>
    %1258 = arith.mulf %1257, %1247 : vector<16x16xf32>
    %1259 = arith.addf %1242, %1258 : vector<16x16xf32>
    %c143_189 = arith.constant 143 : index
    %1260 = memref.load %arg3[%c143_189] : memref<144xf32, #tpu.memory_space<smem>>
    %1261 = vector.broadcast %1260 : f32 to vector<16x16xf32>
    %1262 = arith.mulf %1261, %1247 : vector<16x16xf32>
    %1263 = arith.addf %1246, %1262 : vector<16x16xf32>
    %c0_190 = arith.constant 0 : index
    %c0_191 = arith.constant 0 : index
    %c1_192 = arith.constant 1 : index
    %c2_193 = arith.constant 2 : index
    %1264 = vector.load %arg1[%c0_190, %c0_191, %c1_192, %c2_193] : memref<1x4x18x18xf32, #tpu.memory_space<vmem>>, vector<1x4x16x16xf32>
    %1265 = vector.shape_cast %1264 : vector<1x4x16x16xf32> to vector<4x16x16xf32>
    %1266 = vector.shape_cast %1251 : vector<16x16xf32> to vector<1x16x16xf32>
    %1267 = vector.shape_cast %1255 : vector<16x16xf32> to vector<1x16x16xf32>
    %1268 = vector.shape_cast %1259 : vector<16x16xf32> to vector<1x16x16xf32>
    %1269 = vector.shape_cast %1263 : vector<16x16xf32> to vector<1x16x16xf32>
    %1270 = tpu.concatenate %1266, %1267, %1268, %1269 in 0 : vector<1x16x16xf32>, vector<1x16x16xf32>, vector<1x16x16xf32>, vector<1x16x16xf32> -> vector<4x16x16xf32>
    %1271 = arith.addf %1270, %1265 : vector<4x16x16xf32>
    %cst_194 = arith.constant 0.000000e+00 : f32
    %1272 = vector.broadcast %cst_194 : f32 to vector<4x16x16xf32>
    %1273 = arith.maximumf %1271, %1272 : vector<4x16x16xf32>
    %c0_195 = arith.constant 0 : index
    %c0_196 = arith.constant 0 : index
    %c0_197 = arith.constant 0 : index
    %c0_198 = arith.constant 0 : index
    %1274 = vector.load %arg4[%c0_195, %c0_196, %c0_197, %c0_198] : memref<1x4x16x16xf32, #tpu.memory_space<vmem>>, vector<1x4x16x16xf32>
    %1275 = vector.shape_cast %1274 : vector<1x4x16x16xf32> to vector<4x16x16xf32>
    %1276 = vector.shape_cast %1273 : vector<4x16x16xf32> to vector<1x4x16x16xf32>
    tpu.vector_store %arg4[%c0_195, %c0_196, %c0_197, %c0_198], %1276 {strides = array<i32>} : memref<1x4x16x16xf32, #tpu.memory_space<vmem>>, vector<1x4x16x16xf32>,
    return
  }
  func.func @transform_0(%arg0: i32) -> (i32, i32, i32, i32) {
    %c0_i32 = arith.constant 0 : i32
    %c0_i32_0 = arith.constant 0 : i32
    %c0_i32_1 = arith.constant 0 : i32
    %c0_i32_2 = arith.constant 0 : i32
    return %arg0, %c0_i32, %c0_i32_0, %c0_i32_1 : i32, i32, i32, i32
  }
  func.func @transform_1(%arg0: i32) -> i32 {
    %c0_i32 = arith.constant 0 : i32
    %c0_i32_0 = arith.constant 0 : i32
    return %c0_i32 : i32
  }
  func.func @transform_2(%arg0: i32) -> i32 {
    %c0_i32 = arith.constant 0 : i32
    %c0_i32_0 = arith.constant 0 : i32
    return %c0_i32 : i32
  }
  func.func @transform_3(%arg0: i32) -> (i32, i32, i32, i32) {
    %c0_i32 = arith.constant 0 : i32
    %c0_i32_0 = arith.constant 0 : i32
    %c0_i32_1 = arith.constant 0 : i32
    %c0_i32_2 = arith.constant 0 : i32
    return %arg0, %c0_i32, %c0_i32_0, %c0_i32_1 : i32, i32, i32, i32
  }
}

</mosaic_0001>

<llo_original>
// kernel: tpu_custom_call.1
$region0: #{tpu_custom_call.1}
  #allocation0 [shape = 'u32[]', space=smem, size = 0x4, offset = 0x4, fixed_abs, tag = 'smem constant byte address 0x4 - core index']
  #allocation1 [shape = 'u32[72,128]{1,0:T(1,128)}', space=vmem, size = 0x9000, scoped, tag = 'internal scratch']
  #allocation2 [shape = 'f32[4,18,18]{2,1,0:T(8,128)}', space=vmem, size = 0xc000, scoped, tag = 'scratch operand']
  %s0 = inlined_call_operand.vmem [shape: f32[2,4,18,18], index: 0, kind: input, shape index: {}]
  %s1 = inlined_call_operand.vmem [shape: f32[144], index: 1, kind: input, shape index: {}]
  %s2 = inlined_call_operand.vmem [shape: f32[144], index: 2, kind: input, shape index: {}]
  %s3 = inlined_call_operand.hbm [shape: f32[2,4,16,16], index: 3, kind: output, shape index: {}]
  %s4 = sld [smem:[#allocation0]]
  $region53: #{tpu_custom_call.1} parent=0
    _
  %s6 = ssub.s32 1, %s4
  %s7 = scalar_select 0, %s6, %s4
  $region1: #{tpu_custom_call.1} parent=0
    #allocation3 [shape = 'u8[1024]{0}', space=smem, size = 0x400, scoped, tag = 'input window, operand 1, single buffered']
    #allocation4 [shape = 's32[2]{0}', space=sflag, size = 0x8, scoped, tag = 'scoped memory for tpu_custom_call.1']
    #allocation5 [shape = 's32[2]{0}', space=sflag, size = 0x8, scoped, tag = 'scoped memory for tpu_custom_call.1']
    #allocation6 [shape = 'u8[1024]{0}', space=smem, size = 0x400, scoped, tag = 'input window, operand 2, single buffered']
    #allocation7 [shape = 's32[1]{0}', space=sflag, size = 0x4, scoped, tag = 'scoped memory for tpu_custom_call.1']
    #allocation8 [shape = 'u8[65536]{0}', space=vmem, size = 0x10000, scoped, tag = 'output window, operand 0']
    %8 = vsyncpa [#allocation5], 0
    %9 = vsyncpa [#allocation7], 0
    %10 = vsyncpa [#allocation4], 0
    %s11 = scalar_lea.sflag [#allocation4], 1
    %12 = vsyncpa %s11, 0
    loop: start=0, step=1, limit=4
    $region2: #{tpu_custom_call.1} parent=1 // loop_pre_header
      _
    $region3: #{tpu_custom_call.1} parent=1 // loop_header
      %s14 = sphi 0, %s18
      %p15 = scmp.ge.s32.totalorder %s14, 4
      %s24 = sphi 0, %s26
      %s27 = sphi 0, %s24
      %s28 = sphi 0, %s27
      %s44 = sphi 0, %s28
      %s48 = sphi 0, %s48
      %s50 = sphi 0, %s48
      %s51 = sphi 0, %s50
      %s65 = sphi 0, %s51
      %s69 = sphi 0, %s69
      %s71 = sphi 0, %s69
      %s72 = sphi 0, %s71
      %s86 = sphi 0, %s72
      %s92 = sphi 0, %s94
      %s95 = sphi 0, %s92
      %s96 = sphi 0, %s95
      %s112 = sphi 0, %s96
    $region4: #{tpu_custom_call.1} parent=1 // loop_header_branch
      %17 = sbr.rel (%p15) target = $region8
    $region5: #{tpu_custom_call.1} parent=1 // loop_body
      %s19 = ssub.s32 %s14, 1
      %s20 = ssub.s32 %s14, 2
      %s21 = sadd.s32 %s14, 1
      %s22 = ssub.s32 %s14, %s21
      %p23 = scmp.eq.s32.totalorder %s22, 0
      %s25 = sadd.s32 %s24, 1
      %s26 = scalar_select %p23, %s24, %s25
      %p29 = pneg %p23
      %p30 = scmp.eq.s32.totalorder %s14, 1
      %p31 = por %p29, %p30
      %p32 = scmp.ne.s32.totalorder %s24, %s27
      %p33 = scmp.eq.s32.totalorder %s14, 0
      %p34 = por %p32, %p33
      %p35 = scmp.ne.s32.totalorder %s24, %s27
      %p36 = scmp.eq.s32.totalorder %s19, 1
      %p37 = por %p35, %p36
      %p38 = scmp.ne.s32.totalorder %s27, %s28
      %p39 = scmp.eq.s32.totalorder %s19, 0
      %p40 = por %p38, %p39
      %p41 = scmp.ne.s32.totalorder %s27, %s28
      %p42 = scmp.eq.s32.totalorder %s20, 1
      %p43 = por %p41, %p42
      %p45 = scmp.ne.s32.totalorder %s28, %s44
      %p46 = scmp.eq.s32.totalorder %s20, 0
      %p47 = por %p45, %p46
      %s49 = sadd.s32 %s48, 1
      %p52 = scmp.eq.s32.totalorder %s14, 1
      %p53 = scmp.ne.s32.totalorder %s48, %s50
      %p54 = scmp.eq.s32.totalorder %s14, 0
      %p55 = por %p53, %p54
      %p56 = scmp.ne.s32.totalorder %s48, %s50
      %p57 = scmp.eq.s32.totalorder %s19, 1
      %p58 = por %p56, %p57
      %p59 = scmp.ne.s32.totalorder %s50, %s51
      %p60 = scmp.eq.s32.totalorder %s19, 0
      %p61 = por %p59, %p60
      %p62 = scmp.ne.s32.totalorder %s50, %s51
      %p63 = scmp.eq.s32.totalorder %s20, 1
      %p64 = por %p62, %p63
      %p66 = scmp.ne.s32.totalorder %s51, %s65
      %p67 = scmp.eq.s32.totalorder %s20, 0
      %p68 = por %p66, %p67
      %s70 = sadd.s32 %s69, 1
      %p73 = scmp.eq.s32.totalorder %s14, 1
      %p74 = scmp.ne.s32.totalorder %s69, %s71
      %p75 = scmp.eq.s32.totalorder %s14, 0
      %p76 = por %p74, %p75
      %p77 = scmp.ne.s32.totalorder %s69, %s71
      %p78 = scmp.eq.s32.totalorder %s19, 1
      %p79 = por %p77, %p78
      %p80 = scmp.ne.s32.totalorder %s71, %s72
      %p81 = scmp.eq.s32.totalorder %s19, 0
      %p82 = por %p80, %p81
      %p83 = scmp.ne.s32.totalorder %s71, %s72
      %p84 = scmp.eq.s32.totalorder %s20, 1
      %p85 = por %p83, %p84
      %p87 = scmp.ne.s32.totalorder %s72, %s86
      %p88 = scmp.eq.s32.totalorder %s20, 0
      %p89 = por %p87, %p88
      %s90 = ssub.s32 %s14, %s21
      %p91 = scmp.eq.s32.totalorder %s90, 0
      %s93 = sadd.s32 %s92, 1
      %s94 = scalar_select %p91, %s92, %s93
      %p97 = pneg %p91
      %p98 = scmp.eq.s32.totalorder %s14, 1
      %p99 = por %p97, %p98
      %p100 = scmp.ne.s32.totalorder %s92, %s95
      %p101 = scmp.eq.s32.totalorder %s14, 0
      %p102 = por %p100, %p101
      %p103 = scmp.ne.s32.totalorder %s92, %s95
      %p104 = scmp.eq.s32.totalorder %s19, 1
      %p105 = por %p103, %p104
      %p106 = scmp.ne.s32.totalorder %s95, %s96
      %p107 = scmp.eq.s32.totalorder %s19, 0
      %p108 = por %p106, %p107
      %p109 = scmp.ne.s32.totalorder %s95, %s96
      %p110 = scmp.eq.s32.totalorder %s20, 1
      %p111 = por %p109, %p110
      %p113 = scmp.ne.s32.totalorder %s96, %s112
      %p114 = scmp.eq.s32.totalorder %s20, 0
      %p115 = por %p113, %p114
      %p116 = scmp.le.s32.totalorder 1, %s14
      %p117 = scmp.lt.s32.totalorder %s14, 3
      %p118 = pnand %p116, %p117
      %p119 = pneg %p118
      // Predicated region
      $region9: #{tpu_custom_call.1} parent=5 // pred_check
        _
      $region10: #{tpu_custom_call.1} parent=5 // pred_check_branch
        %121 = sbr.rel (%p118) target = $region12
      $region11: #{tpu_custom_call.1} parent=5 // pred_region
        %s122 = ssub.s32 %s14, 1
        // Predicated region
        $region13: #{tpu_custom_call.1} parent=11 // pred_check
          %p123 = pneg %p61
        $region14: #{tpu_custom_call.1} parent=11 // pred_check_branch
          %125 = sbr.rel (%p123) target = $region16
        $region15: #{tpu_custom_call.1} parent=11 // pred_region
          %127 = vsyncadd [#allocation5], 0
          %s129 = sshll.u32 %s1, 4
          %s130 = int_to_ptr.vmem [resolvable:$true] %s129
          %132 = dma.vmem_to_smem %s130, 32, [#allocation3], [#allocation5]
        $region16: #{tpu_custom_call.1} parent=11 // pred_fallthru
          _
        // Predicated region
        $region17: #{tpu_custom_call.1} parent=11 // pred_check
          %p133 = pneg %p82
        $region18: #{tpu_custom_call.1} parent=11 // pred_check_branch
          %135 = sbr.rel (%p133) target = $region20
        $region19: #{tpu_custom_call.1} parent=11 // pred_region
          %137 = vsyncadd [#allocation7], 0
          %s139 = sshll.u32 %s2, 4
          %s140 = int_to_ptr.vmem [resolvable:$true] %s139
          %142 = dma.vmem_to_smem %s140, 32, [#allocation6], [#allocation7]
        $region20: #{tpu_custom_call.1} parent=11 // pred_fallthru
          _
      $region12: #{tpu_custom_call.1} parent=5 // pred_fallthru
        _
      %p143 = scmp.lt.s32.totalorder %s14, 2
      // Predicated region
      $region21: #{tpu_custom_call.1} parent=5 // pred_check
        %p144 = pneg %p143
      $region22: #{tpu_custom_call.1} parent=5 // pred_check_branch
        %146 = sbr.rel (%p144) target = $region24
      $region23: #{tpu_custom_call.1} parent=5 // pred_region
        // Predicated region
        $region25: #{tpu_custom_call.1} parent=23 // pred_check
          %p147 = pneg %p34
        $region26: #{tpu_custom_call.1} parent=23 // pred_check_branch
          %149 = sbr.rel (%p147) target = $region28
        $region27: #{tpu_custom_call.1} parent=23 // pred_region
          %p150 = scmp.lt.s32.totalorder %s14, 1
          %s151 = scalar_select %p150, %s14, 1
          %s152 = smul.addr %s151, 12
          %s153 = smul.addr %s152, 8
          %s154 = scalar_lea.vmem %s0, %s153
        $region28: #{tpu_custom_call.1} parent=23 // pred_fallthru
          _
      $region24: #{tpu_custom_call.1} parent=5 // pred_fallthru
        _
      %p155 = scmp.le.s32.totalorder 1, %s14
      %p156 = scmp.lt.s32.totalorder %s14, 3
      %p157 = pnand %p155, %p156
      %p158 = pneg %p157
      // Predicated region
      $region29: #{tpu_custom_call.1} parent=5 // pred_check
        _
      $region30: #{tpu_custom_call.1} parent=5 // pred_check_branch
        %160 = sbr.rel (%p157) target = $region32
      $region31: #{tpu_custom_call.1} parent=5 // pred_region
        %s161 = ssub.s32 %s14, 1
        // Predicated region
        $region33: #{tpu_custom_call.1} parent=31 // pred_check
          %p162 = pneg %p61
        $region34: #{tpu_custom_call.1} parent=31 // pred_check_branch
          %164 = sbr.rel (%p162) target = $region36
        $region35: #{tpu_custom_call.1} parent=31 // pred_region
          %166 = dma.done [#allocation5], 32
        $region36: #{tpu_custom_call.1} parent=31 // pred_fallthru
          _
        // Predicated region
        $region37: #{tpu_custom_call.1} parent=31 // pred_check
          %p167 = pneg %p82
        $region38: #{tpu_custom_call.1} parent=31 // pred_check_branch
          %169 = sbr.rel (%p167) target = $region40
        $region39: #{tpu_custom_call.1} parent=31 // pred_region
          %171 = dma.done [#allocation7], 32
        $region40: #{tpu_custom_call.1} parent=31 // pred_fallthru
          _
        %172 = sfence
        %p173 = scmp.lt.s32.totalorder %s19, 1
        %s174 = scalar_select %p173, %s19, 1
        %s175 = smul.addr %s174, 12
        %s176 = smul.addr %s175, 8
        %s177 = scalar_lea.vmem %s0, %s176
        %p178 = pneg %p40
        %p179 = pneg %p37
        %p180 = pneg %p61
        %p181 = pneg %p58
        %p182 = pneg %p82
        %p183 = pneg %p79
        %p184 = pneg %p108
        %p185 = pneg %p105
        %s186 = sand.u32 %s95, 1
        %s187 = scalar_lea.sflag [#allocation4], %s186
        %s188 = sand.u32 %s95, 1
        %s189 = smul.addr %s188, 64
        %s190 = scalar_lea.vmem [#allocation8], %s189
        %p191 = scmp.lt.s32.totalorder %s19, 1
        %s192 = scalar_select %p191, %s19, 1
        %s193 = smul.addr %s192, 12
        %s194 = smul.addr %s193, 8
        %s195 = scalar_lea.vmem %s0, %s194
        %v196 = vld [vmem:[%s195] sm:$0xff]
        %v197 = vld [vmem:[%s195 + $0x8] sm:$0xff]
        %v198 = vld [vmem:[%s195 + $0x10] sm:$0x3]
        %s199 = sld [smem:[#allocation3]]
        %v200 = vstv %s199
        %v201 = vmul.f32 %v200, %v196
        %v202 = vmul.f32 %v200, %v197
        %v203 = vadd.f32 %v201, 0.0
        %v204 = vadd.f32 %v202, 0.0
        %s205 = sld [smem:[#allocation3 + $0x24]]
        %v206 = vstv %s205
        %v207 = vmul.f32 %v206, %v196
        %v208 = vmul.f32 %v206, %v197
        %v209 = vadd.f32 %v207, 0.0
        %v210 = vadd.f32 %v208, 0.0
        %s211 = sld [smem:[#allocation3 + $0x48]]
        %v212 = vstv %s211
        %v213 = vmul.f32 %v212, %v196
        %v214 = vmul.f32 %v212, %v197
        %v215 = vadd.f32 %v213, 0.0
        %v216 = vadd.f32 %v214, 0.0
        %s217 = sld [smem:[#allocation3 + $0x6c]]
        %v218 = vstv %s217
        %v219 = vmul.f32 %v218, %v196
        %v220 = vmul.f32 %v218, %v197
        %v221 = vadd.f32 %v219, 0.0
        %v222 = vadd.f32 %v220, 0.0
        %s223 = sld [smem:[#allocation3 + $0x1]]
        %v224 = vstv %s223
        %v225 = vmul.f32 %v224, %v196
        %v226 = vmul.f32 %v224, %v197
        %229 = vrot.lane.b32.xlu0 %v225, 127
        %v230 = vpop.permute.xlu0 %229
        %231 = vrot.lane.b32.xlu0 %v226, 127
        %v232 = vpop.permute.xlu0 %231
        %v235 = vadd.f32 %v203, %v230
        %v236 = vadd.f32 %v204, %v232
        %s237 = sld [smem:[#allocation3 + $0x25]]
        %v238 = vstv %s237
        %v239 = vmul.f32 %v238, %v196
        %v240 = vmul.f32 %v238, %v197
        %243 = vrot.lane.b32.xlu0 %v239, 127
        %v244 = vpop.permute.xlu0 %243
        %245 = vrot.lane.b32.xlu0 %v240, 127
        %v246 = vpop.permute.xlu0 %245
        %v249 = vadd.f32 %v209, %v244
        %v250 = vadd.f32 %v210, %v246
        %s251 = sld [smem:[#allocation3 + $0x49]]
        %v252 = vstv %s251
        %v253 = vmul.f32 %v252, %v196
        %v254 = vmul.f32 %v252, %v197
        %257 = vrot.lane.b32.xlu0 %v253, 127
        %v258 = vpop.permute.xlu0 %257
        %259 = vrot.lane.b32.xlu0 %v254, 127
        %v260 = vpop.permute.xlu0 %259
        %v263 = vadd.f32 %v215, %v258
        %v264 = vadd.f32 %v216, %v260
        %s265 = sld [smem:[#allocation3 + $0x6d]]
        %v266 = vstv %s265
        %v267 = vmul.f32 %v266, %v196
        %v268 = vmul.f32 %v266, %v197
        %271 = vrot.lane.b32.xlu0 %v267, 127
        %v272 = vpop.permute.xlu0 %271
        %273 = vrot.lane.b32.xlu0 %v268, 127
        %v274 = vpop.permute.xlu0 %273
        %v277 = vadd.f32 %v221, %v272
        %v278 = vadd.f32 %v222, %v274
        %s279 = sld [smem:[#allocation3 + $0x2]]
        %v280 = vstv %s279
        %v281 = vmul.f32 %v280, %v196
        %v282 = vmul.f32 %v280, %v197
        %285 = vrot.lane.b32.xlu0 %v281, 126
        %v286 = vpop.permute.xlu0 %285
        %287 = vrot.lane.b32.xlu0 %v282, 126
        %v288 = vpop.permute.xlu0 %287
        %v291 = vadd.f32 %v235, %v286
        %v292 = vadd.f32 %v236, %v288
        %s293 = sld [smem:[#allocation3 + $0x26]]
        %v294 = vstv %s293
        %v295 = vmul.f32 %v294, %v196
        %v296 = vmul.f32 %v294, %v197
        %299 = vrot.lane.b32.xlu0 %v295, 126
        %v300 = vpop.permute.xlu0 %299
        %301 = vrot.lane.b32.xlu0 %v296, 126
        %v302 = vpop.permute.xlu0 %301
        %v305 = vadd.f32 %v249, %v300
        %v306 = vadd.f32 %v250, %v302
        %s307 = sld [smem:[#allocation3 + $0x4a]]
        %v308 = vstv %s307
        %v309 = vmul.f32 %v308, %v196
        %v310 = vmul.f32 %v308, %v197
        %313 = vrot.lane.b32.xlu0 %v309, 126
        %v314 = vpop.permute.xlu0 %313
        %315 = vrot.lane.b32.xlu0 %v310, 126
        %v316 = vpop.permute.xlu0 %315
        %v319 = vadd.f32 %v263, %v314
        %v320 = vadd.f32 %v264, %v316
        %s321 = sld [smem:[#allocation3 + $0x6e]]
        %v322 = vstv %s321
        %v323 = vmul.f32 %v322, %v196
        %v324 = vmul.f32 %v322, %v197
        %327 = vrot.lane.b32.xlu0 %v323, 126
        %v328 = vpop.permute.xlu0 %327
        %329 = vrot.lane.b32.xlu0 %v324, 126
        %v330 = vpop.permute.xlu0 %329
        %v333 = vadd.f32 %v277, %v328
        %v334 = vadd.f32 %v278, %v330
        %s335 = sld [smem:[#allocation3 + $0x3]]
        %v336 = vstv %s335
        %v337 = vmul.f32 %v336, %v196
        %v338 = vmul.f32 %v336, %v197
        %v339 = vmul.f32 %v336, %v198
        %vm343 = vcmask 1046528
        %v344 = vrot.slane %v337, 1
        %v345 = vrot.slane %v338, 1
        %v346 = vsel %vm343, %v344, %v345
        %v347 = vrot.slane %v339, 1
        %v348 = vsel %vm343, %v345, %v347
        %v351 = vadd.f32 %v291, %v346
        %v352 = vadd.f32 %v292, %v348
        %s353 = sld [smem:[#allocation3 + $0x27]]
        %v354 = vstv %s353
        %v355 = vmul.f32 %v354, %v196
        %v356 = vmul.f32 %v354, %v197
        %v357 = vmul.f32 %v354, %v198
        %v361 = vrot.slane %v355, 1
        %v362 = vrot.slane %v356, 1
        %v363 = vsel %vm343, %v361, %v362
        %v364 = vrot.slane %v357, 1
        %v365 = vsel %vm343, %v362, %v364
        %v368 = vadd.f32 %v305, %v363
        %v369 = vadd.f32 %v306, %v365
        %s370 = sld [smem:[#allocation3 + $0x4b]]
        %v371 = vstv %s370
        %v372 = vmul.f32 %v371, %v196
        %v373 = vmul.f32 %v371, %v197
        %v374 = vmul.f32 %v371, %v198
        %v378 = vrot.slane %v372, 1
        %v379 = vrot.slane %v373, 1
        %v380 = vsel %vm343, %v378, %v379
        %v381 = vrot.slane %v374, 1
        %v382 = vsel %vm343, %v379, %v381
        %v385 = vadd.f32 %v319, %v380
        %v386 = vadd.f32 %v320, %v382
        %s387 = sld [smem:[#allocation3 + $0x6f]]
        %v388 = vstv %s387
        %v389 = vmul.f32 %v388, %v196
        %v390 = vmul.f32 %v388, %v197
        %v391 = vmul.f32 %v388, %v198
        %v395 = vrot.slane %v389, 1
        %v396 = vrot.slane %v390, 1
        %v397 = vsel %vm343, %v395, %v396
        %v398 = vrot.slane %v391, 1
        %v399 = vsel %vm343, %v396, %v398
        %v402 = vadd.f32 %v333, %v397
        %v403 = vadd.f32 %v334, %v399
        %s404 = sld [smem:[#allocation3 + $0x4]]
        %v405 = vstv %s404
        %v406 = vmul.f32 %v405, %v196
        %v407 = vmul.f32 %v405, %v197
        %v408 = vmul.f32 %v405, %v198
        %v412 = vrot.slane %v406, 1
        %v413 = vrot.slane %v407, 1
        %v414 = vsel %vm343, %v412, %v413
        %v415 = vrot.slane %v408, 1
        %v416 = vsel %vm343, %v413, %v415
        %417 = vrot.lane.b32.xlu0 %v414, 127
        %v418 = vpop.permute.xlu0 %417
        %419 = vrot.lane.b32.xlu0 %v416, 127
        %v420 = vpop.permute.xlu0 %419
        %v423 = vadd.f32 %v351, %v418
        %v424 = vadd.f32 %v352, %v420
        %s425 = sld [smem:[#allocation3 + $0x28]]
        %v426 = vstv %s425
        %v427 = vmul.f32 %v426, %v196
        %v428 = vmul.f32 %v426, %v197
        %v429 = vmul.f32 %v426, %v198
        %v433 = vrot.slane %v427, 1
        %v434 = vrot.slane %v428, 1
        %v435 = vsel %vm343, %v433, %v434
        %v436 = vrot.slane %v429, 1
        %v437 = vsel %vm343, %v434, %v436
        %438 = vrot.lane.b32.xlu0 %v435, 127
        %v439 = vpop.permute.xlu0 %438
        %440 = vrot.lane.b32.xlu0 %v437, 127
        %v441 = vpop.permute.xlu0 %440
        %v444 = vadd.f32 %v368, %v439
        %v445 = vadd.f32 %v369, %v441
        %s446 = sld [smem:[#allocation3 + $0x4c]]
        %v447 = vstv %s446
        %v448 = vmul.f32 %v447, %v196
        %v449 = vmul.f32 %v447, %v197
        %v450 = vmul.f32 %v447, %v198
        %v454 = vrot.slane %v448, 1
        %v455 = vrot.slane %v449, 1
        %v456 = vsel %vm343, %v454, %v455
        %v457 = vrot.slane %v450, 1
        %v458 = vsel %vm343, %v455, %v457
        %459 = vrot.lane.b32.xlu0 %v456, 127
        %v460 = vpop.permute.xlu0 %459
        %461 = vrot.lane.b32.xlu0 %v458, 127
        %v462 = vpop.permute.xlu0 %461
        %v465 = vadd.f32 %v385, %v460
        %v466 = vadd.f32 %v386, %v462
        %s467 = sld [smem:[#allocation3 + $0x70]]
        %v468 = vstv %s467
        %v469 = vmul.f32 %v468, %v196
        %v470 = vmul.f32 %v468, %v197
        %v471 = vmul.f32 %v468, %v198
        %v475 = vrot.slane %v469, 1
        %v476 = vrot.slane %v470, 1
        %v477 = vsel %vm343, %v475, %v476
        %v478 = vrot.slane %v471, 1
        %v479 = vsel %vm343, %v476, %v478
        %480 = vrot.lane.b32.xlu0 %v477, 127
        %v481 = vpop.permute.xlu0 %480
        %482 = vrot.lane.b32.xlu0 %v479, 127
        %v483 = vpop.permute.xlu0 %482
        %v486 = vadd.f32 %v402, %v481
        %v487 = vadd.f32 %v403, %v483
        %s488 = sld [smem:[#allocation3 + $0x5]]
        %v489 = vstv %s488
        %v490 = vmul.f32 %v489, %v196
        %v491 = vmul.f32 %v489, %v197
        %v492 = vmul.f32 %v489, %v198
        %v496 = vrot.slane %v490, 1
        %v497 = vrot.slane %v491, 1
        %v498 = vsel %vm343, %v496, %v497
        %v499 = vrot.slane %v492, 1
        %v500 = vsel %vm343, %v497, %v499
        %501 = vrot.lane.b32.xlu0 %v498, 126
        %v502 = vpop.permute.xlu0 %501
        %503 = vrot.lane.b32.xlu0 %v500, 126
        %v504 = vpop.permute.xlu0 %503
        %v507 = vadd.f32 %v423, %v502
        %v508 = vadd.f32 %v424, %v504
        %s509 = sld [smem:[#allocation3 + $0x29]]
        %v510 = vstv %s509
        %v511 = vmul.f32 %v510, %v196
        %v512 = vmul.f32 %v510, %v197
        %v513 = vmul.f32 %v510, %v198
        %v517 = vrot.slane %v511, 1
        %v518 = vrot.slane %v512, 1
        %v519 = vsel %vm343, %v517, %v518
        %v520 = vrot.slane %v513, 1
        %v521 = vsel %vm343, %v518, %v520
        %522 = vrot.lane.b32.xlu0 %v519, 126
        %v523 = vpop.permute.xlu0 %522
        %524 = vrot.lane.b32.xlu0 %v521, 126
        %v525 = vpop.permute.xlu0 %524
        %v528 = vadd.f32 %v444, %v523
        %v529 = vadd.f32 %v445, %v525
        %s530 = sld [smem:[#allocation3 + $0x4d]]
        %v531 = vstv %s530
        %v532 = vmul.f32 %v531, %v196
        %v533 = vmul.f32 %v531, %v197
        %v534 = vmul.f32 %v531, %v198
        %v538 = vrot.slane %v532, 1
        %v539 = vrot.slane %v533, 1
        %v540 = vsel %vm343, %v538, %v539
        %v541 = vrot.slane %v534, 1
        %v542 = vsel %vm343, %v539, %v541
        %543 = vrot.lane.b32.xlu0 %v540, 126
        %v544 = vpop.permute.xlu0 %543
        %545 = vrot.lane.b32.xlu0 %v542, 126
        %v546 = vpop.permute.xlu0 %545
        %v549 = vadd.f32 %v465, %v544
        %v550 = vadd.f32 %v466, %v546
        %s551 = sld [smem:[#allocation3 + $0x71]]
        %v552 = vstv %s551
        %v553 = vmul.f32 %v552, %v196
        %v554 = vmul.f32 %v552, %v197
        %v555 = vmul.f32 %v552, %v198
        %v559 = vrot.slane %v553, 1
        %v560 = vrot.slane %v554, 1
        %v561 = vsel %vm343, %v559, %v560
        %v562 = vrot.slane %v555, 1
        %v563 = vsel %vm343, %v560, %v562
        %564 = vrot.lane.b32.xlu0 %v561, 126
        %v565 = vpop.permute.xlu0 %564
        %566 = vrot.lane.b32.xlu0 %v563, 126
        %v567 = vpop.permute.xlu0 %566
        %v570 = vadd.f32 %v486, %v565
        %v571 = vadd.f32 %v487, %v567
        %s572 = sld [smem:[#allocation3 + $0x6]]
        %v573 = vstv %s572
        %v574 = vmul.f32 %v573, %v196
        %v575 = vmul.f32 %v573, %v197
        %v576 = vmul.f32 %v573, %v198
        %vm580 = vcmask 1045504
        %v581 = vrot.slane %v574, 2
        %v582 = vrot.slane %v575, 2
        %v583 = vsel %vm580, %v581, %v582
        %v584 = vrot.slane %v576, 2
        %v585 = vsel %vm580, %v582, %v584
        %v588 = vadd.f32 %v507, %v583
        %v589 = vadd.f32 %v508, %v585
        %s590 = sld [smem:[#allocation3 + $0x2a]]
        %v591 = vstv %s590
        %v592 = vmul.f32 %v591, %v196
        %v593 = vmul.f32 %v591, %v197
        %v594 = vmul.f32 %v591, %v198
        %v598 = vrot.slane %v592, 2
        %v599 = vrot.slane %v593, 2
        %v600 = vsel %vm580, %v598, %v599
        %v601 = vrot.slane %v594, 2
        %v602 = vsel %vm580, %v599, %v601
        %v605 = vadd.f32 %v528, %v600
        %v606 = vadd.f32 %v529, %v602
        %s607 = sld [smem:[#allocation3 + $0x4e]]
        %v608 = vstv %s607
        %v609 = vmul.f32 %v608, %v196
        %v610 = vmul.f32 %v608, %v197
        %v611 = vmul.f32 %v608, %v198
        %v615 = vrot.slane %v609, 2
        %v616 = vrot.slane %v610, 2
        %v617 = vsel %vm580, %v615, %v616
        %v618 = vrot.slane %v611, 2
        %v619 = vsel %vm580, %v616, %v618
        %v622 = vadd.f32 %v549, %v617
        %v623 = vadd.f32 %v550, %v619
        %s624 = sld [smem:[#allocation3 + $0x72]]
        %v625 = vstv %s624
        %v626 = vmul.f32 %v625, %v196
        %v627 = vmul.f32 %v625, %v197
        %v628 = vmul.f32 %v625, %v198
        %v632 = vrot.slane %v626, 2
        %v633 = vrot.slane %v627, 2
        %v634 = vsel %vm580, %v632, %v633
        %v635 = vrot.slane %v628, 2
        %v636 = vsel %vm580, %v633, %v635
        %v639 = vadd.f32 %v570, %v634
        %v640 = vadd.f32 %v571, %v636
        %s641 = sld [smem:[#allocation3 + $0x7]]
        %v642 = vstv %s641
        %v643 = vmul.f32 %v642, %v196
        %v644 = vmul.f32 %v642, %v197
        %v645 = vmul.f32 %v642, %v198
        %v649 = vrot.slane %v643, 2
        %v650 = vrot.slane %v644, 2
        %v651 = vsel %vm580, %v649, %v650
        %v652 = vrot.slane %v645, 2
        %v653 = vsel %vm580, %v650, %v652
        %654 = vrot.lane.b32.xlu0 %v651, 127
        %v655 = vpop.permute.xlu0 %654
        %656 = vrot.lane.b32.xlu0 %v653, 127
        %v657 = vpop.permute.xlu0 %656
        %v660 = vadd.f32 %v588, %v655
        %v661 = vadd.f32 %v589, %v657
        %s662 = sld [smem:[#allocation3 + $0x2b]]
        %v663 = vstv %s662
        %v664 = vmul.f32 %v663, %v196
        %v665 = vmul.f32 %v663, %v197
        %v666 = vmul.f32 %v663, %v198
        %v670 = vrot.slane %v664, 2
        %v671 = vrot.slane %v665, 2
        %v672 = vsel %vm580, %v670, %v671
        %v673 = vrot.slane %v666, 2
        %v674 = vsel %vm580, %v671, %v673
        %675 = vrot.lane.b32.xlu0 %v672, 127
        %v676 = vpop.permute.xlu0 %675
        %677 = vrot.lane.b32.xlu0 %v674, 127
        %v678 = vpop.permute.xlu0 %677
        %v681 = vadd.f32 %v605, %v676
        %v682 = vadd.f32 %v606, %v678
        %s683 = sld [smem:[#allocation3 + $0x4f]]
        %v684 = vstv %s683
        %v685 = vmul.f32 %v684, %v196
        %v686 = vmul.f32 %v684, %v197
        %v687 = vmul.f32 %v684, %v198
        %v691 = vrot.slane %v685, 2
        %v692 = vrot.slane %v686, 2
        %v693 = vsel %vm580, %v691, %v692
        %v694 = vrot.slane %v687, 2
        %v695 = vsel %vm580, %v692, %v694
        %696 = vrot.lane.b32.xlu0 %v693, 127
        %v697 = vpop.permute.xlu0 %696
        %698 = vrot.lane.b32.xlu0 %v695, 127
        %v699 = vpop.permute.xlu0 %698
        %v702 = vadd.f32 %v622, %v697
        %v703 = vadd.f32 %v623, %v699
        %s704 = sld [smem:[#allocation3 + $0x73]]
        %v705 = vstv %s704
        %v706 = vmul.f32 %v705, %v196
        %v707 = vmul.f32 %v705, %v197
        %v708 = vmul.f32 %v705, %v198
        %v712 = vrot.slane %v706, 2
        %v713 = vrot.slane %v707, 2
        %v714 = vsel %vm580, %v712, %v713
        %v715 = vrot.slane %v708, 2
        %v716 = vsel %vm580, %v713, %v715
        %717 = vrot.lane.b32.xlu0 %v714, 127
        %v718 = vpop.permute.xlu0 %717
        %719 = vrot.lane.b32.xlu0 %v716, 127
        %v720 = vpop.permute.xlu0 %719
        %v723 = vadd.f32 %v639, %v718
        %v724 = vadd.f32 %v640, %v720
        %s725 = sld [smem:[#allocation3 + $0x8]]
        %v726 = vstv %s725
        %v727 = vmul.f32 %v726, %v196
        %v728 = vmul.f32 %v726, %v197
        %v729 = vmul.f32 %v726, %v198
        %v733 = vrot.slane %v727, 2
        %v734 = vrot.slane %v728, 2
        %v735 = vsel %vm580, %v733, %v734
        %v736 = vrot.slane %v729, 2
        %v737 = vsel %vm580, %v734, %v736
        %738 = vrot.lane.b32.xlu0 %v735, 126
        %v739 = vpop.permute.xlu0 %738
        %740 = vrot.lane.b32.xlu0 %v737, 126
        %v741 = vpop.permute.xlu0 %740
        %v744 = vadd.f32 %v660, %v739
        %v745 = vadd.f32 %v661, %v741
        %s746 = sld [smem:[#allocation3 + $0x2c]]
        %v747 = vstv %s746
        %v748 = vmul.f32 %v747, %v196
        %v749 = vmul.f32 %v747, %v197
        %v750 = vmul.f32 %v747, %v198
        %v754 = vrot.slane %v748, 2
        %v755 = vrot.slane %v749, 2
        %v756 = vsel %vm580, %v754, %v755
        %v757 = vrot.slane %v750, 2
        %v758 = vsel %vm580, %v755, %v757
        %759 = vrot.lane.b32.xlu0 %v756, 126
        %v760 = vpop.permute.xlu0 %759
        %761 = vrot.lane.b32.xlu0 %v758, 126
        %v762 = vpop.permute.xlu0 %761
        %v765 = vadd.f32 %v681, %v760
        %v766 = vadd.f32 %v682, %v762
        %s767 = sld [smem:[#allocation3 + $0x50]]
        %v768 = vstv %s767
        %v769 = vmul.f32 %v768, %v196
        %v770 = vmul.f32 %v768, %v197
        %v771 = vmul.f32 %v768, %v198
        %v775 = vrot.slane %v769, 2
        %v776 = vrot.slane %v770, 2
        %v777 = vsel %vm580, %v775, %v776
        %v778 = vrot.slane %v771, 2
        %v779 = vsel %vm580, %v776, %v778
        %780 = vrot.lane.b32.xlu0 %v777, 126
        %v781 = vpop.permute.xlu0 %780
        %782 = vrot.lane.b32.xlu0 %v779, 126
        %v783 = vpop.permute.xlu0 %782
        %v786 = vadd.f32 %v702, %v781
        %v787 = vadd.f32 %v703, %v783
        %s788 = sld [smem:[#allocation3 + $0x74]]
        %v789 = vstv %s788
        %v790 = vmul.f32 %v789, %v196
        %v791 = vmul.f32 %v789, %v197
        %v792 = vmul.f32 %v789, %v198
        %v796 = vrot.slane %v790, 2
        %v797 = vrot.slane %v791, 2
        %v798 = vsel %vm580, %v796, %v797
        %v799 = vrot.slane %v792, 2
        %v800 = vsel %vm580, %v797, %v799
        %801 = vrot.lane.b32.xlu0 %v798, 126
        %v802 = vpop.permute.xlu0 %801
        %803 = vrot.lane.b32.xlu0 %v800, 126
        %v804 = vpop.permute.xlu0 %803
        %v807 = vadd.f32 %v723, %v802
        %v808 = vadd.f32 %v724, %v804
        %s809 = scalar_lea.vmem %s195, 24
        %v810 = vld [vmem:[%s809] sm:$0xff]
        %v811 = vld [vmem:[%s809 + $0x8] sm:$0xff]
        %v812 = vld [vmem:[%s809 + $0x10] sm:$0x3]
        %s813 = sld [smem:[#allocation3 + $0x9]]
        %v814 = vstv %s813
        %v815 = vmul.f32 %v814, %v810
        %v816 = vmul.f32 %v814, %v811
        %v817 = vadd.f32 %v744, %v815
        %v818 = vadd.f32 %v745, %v816
        %s819 = sld [smem:[#allocation3 + $0x2d]]
        %v820 = vstv %s819
        %v821 = vmul.f32 %v820, %v810
        %v822 = vmul.f32 %v820, %v811
        %v823 = vadd.f32 %v765, %v821
        %v824 = vadd.f32 %v766, %v822
        %s825 = sld [smem:[#allocation3 + $0x51]]
        %v826 = vstv %s825
        %v827 = vmul.f32 %v826, %v810
        %v828 = vmul.f32 %v826, %v811
        %v829 = vadd.f32 %v786, %v827
        %v830 = vadd.f32 %v787, %v828
        %s831 = sld [smem:[#allocation3 + $0x75]]
        %v832 = vstv %s831
        %v833 = vmul.f32 %v832, %v810
        %v834 = vmul.f32 %v832, %v811
        %v835 = vadd.f32 %v807, %v833
        %v836 = vadd.f32 %v808, %v834
        %s837 = sld [smem:[#allocation3 + $0xa]]
        %v838 = vstv %s837
        %v839 = vmul.f32 %v838, %v810
        %v840 = vmul.f32 %v838, %v811
        %843 = vrot.lane.b32.xlu0 %v839, 127
        %v844 = vpop.permute.xlu0 %843
        %845 = vrot.lane.b32.xlu0 %v840, 127
        %v846 = vpop.permute.xlu0 %845
        %v849 = vadd.f32 %v817, %v844
        %v850 = vadd.f32 %v818, %v846
        %s851 = sld [smem:[#allocation3 + $0x2e]]
        %v852 = vstv %s851
        %v853 = vmul.f32 %v852, %v810
        %v854 = vmul.f32 %v852, %v811
        %857 = vrot.lane.b32.xlu0 %v853, 127
        %v858 = vpop.permute.xlu0 %857
        %859 = vrot.lane.b32.xlu0 %v854, 127
        %v860 = vpop.permute.xlu0 %859
        %v863 = vadd.f32 %v823, %v858
        %v864 = vadd.f32 %v824, %v860
        %s865 = sld [smem:[#allocation3 + $0x52]]
        %v866 = vstv %s865
        %v867 = vmul.f32 %v866, %v810
        %v868 = vmul.f32 %v866, %v811
        %871 = vrot.lane.b32.xlu0 %v867, 127
        %v872 = vpop.permute.xlu0 %871
        %873 = vrot.lane.b32.xlu0 %v868, 127
        %v874 = vpop.permute.xlu0 %873
        %v877 = vadd.f32 %v829, %v872
        %v878 = vadd.f32 %v830, %v874
        %s879 = sld [smem:[#allocation3 + $0x76]]
        %v880 = vstv %s879
        %v881 = vmul.f32 %v880, %v810
        %v882 = vmul.f32 %v880, %v811
        %885 = vrot.lane.b32.xlu0 %v881, 127
        %v886 = vpop.permute.xlu0 %885
        %887 = vrot.lane.b32.xlu0 %v882, 127
        %v888 = vpop.permute.xlu0 %887
        %v891 = vadd.f32 %v835, %v886
        %v892 = vadd.f32 %v836, %v888
        %s893 = sld [smem:[#allocation3 + $0xb]]
        %v894 = vstv %s893
        %v895 = vmul.f32 %v894, %v810
        %v896 = vmul.f32 %v894, %v811
        %899 = vrot.lane.b32.xlu0 %v895, 126
        %v900 = vpop.permute.xlu0 %899
        %901 = vrot.lane.b32.xlu0 %v896, 126
        %v902 = vpop.permute.xlu0 %901
        %v905 = vadd.f32 %v849, %v900
        %v906 = vadd.f32 %v850, %v902
        %s907 = sld [smem:[#allocation3 + $0x2f]]
        %v908 = vstv %s907
        %v909 = vmul.f32 %v908, %v810
        %v910 = vmul.f32 %v908, %v811
        %913 = vrot.lane.b32.xlu0 %v909, 126
        %v914 = vpop.permute.xlu0 %913
        %915 = vrot.lane.b32.xlu0 %v910, 126
        %v916 = vpop.permute.xlu0 %915
        %v919 = vadd.f32 %v863, %v914
        %v920 = vadd.f32 %v864, %v916
        %s921 = sld [smem:[#allocation3 + $0x53]]
        %v922 = vstv %s921
        %v923 = vmul.f32 %v922, %v810
        %v924 = vmul.f32 %v922, %v811
        %927 = vrot.lane.b32.xlu0 %v923, 126
        %v928 = vpop.permute.xlu0 %927
        %929 = vrot.lane.b32.xlu0 %v924, 126
        %v930 = vpop.permute.xlu0 %929
        %v933 = vadd.f32 %v877, %v928
        %v934 = vadd.f32 %v878, %v930
        %s935 = sld [smem:[#allocation3 + $0x77]]
        %v936 = vstv %s935
        %v937 = vmul.f32 %v936, %v810
        %v938 = vmul.f32 %v936, %v811
        %941 = vrot.lane.b32.xlu0 %v937, 126
        %v942 = vpop.permute.xlu0 %941
        %943 = vrot.lane.b32.xlu0 %v938, 126
        %v944 = vpop.permute.xlu0 %943
        %v947 = vadd.f32 %v891, %v942
        %v948 = vadd.f32 %v892, %v944
        %s949 = sld [smem:[#allocation3 + $0xc]]
        %v950 = vstv %s949
        %v951 = vmul.f32 %v950, %v810
        %v952 = vmul.f32 %v950, %v811
        %v953 = vmul.f32 %v950, %v812
        %v957 = vrot.slane %v951, 1
        %v958 = vrot.slane %v952, 1
        %v959 = vsel %vm343, %v957, %v958
        %v960 = vrot.slane %v953, 1
        %v961 = vsel %vm343, %v958, %v960
        %v964 = vadd.f32 %v905, %v959
        %v965 = vadd.f32 %v906, %v961
        %s966 = sld [smem:[#allocation3 + $0x30]]
        %v967 = vstv %s966
        %v968 = vmul.f32 %v967, %v810
        %v969 = vmul.f32 %v967, %v811
        %v970 = vmul.f32 %v967, %v812
        %v974 = vrot.slane %v968, 1
        %v975 = vrot.slane %v969, 1
        %v976 = vsel %vm343, %v974, %v975
        %v977 = vrot.slane %v970, 1
        %v978 = vsel %vm343, %v975, %v977
        %v981 = vadd.f32 %v919, %v976
        %v982 = vadd.f32 %v920, %v978
        %s983 = sld [smem:[#allocation3 + $0x54]]
        %v984 = vstv %s983
        %v985 = vmul.f32 %v984, %v810
        %v986 = vmul.f32 %v984, %v811
        %v987 = vmul.f32 %v984, %v812
        %v991 = vrot.slane %v985, 1
        %v992 = vrot.slane %v986, 1
        %v993 = vsel %vm343, %v991, %v992
        %v994 = vrot.slane %v987, 1
        %v995 = vsel %vm343, %v992, %v994
        %v998 = vadd.f32 %v933, %v993
        %v999 = vadd.f32 %v934, %v995
        %s1000 = sld [smem:[#allocation3 + $0x78]]
        %v1001 = vstv %s1000
        %v1002 = vmul.f32 %v1001, %v810
        %v1003 = vmul.f32 %v1001, %v811
        %v1004 = vmul.f32 %v1001, %v812
        %v1008 = vrot.slane %v1002, 1
        %v1009 = vrot.slane %v1003, 1
        %v1010 = vsel %vm343, %v1008, %v1009
        %v1011 = vrot.slane %v1004, 1
        %v1012 = vsel %vm343, %v1009, %v1011
        %v1015 = vadd.f32 %v947, %v1010
        %v1016 = vadd.f32 %v948, %v1012
        %s1017 = sld [smem:[#allocation3 + $0xd]]
        %v1018 = vstv %s1017
        %v1019 = vmul.f32 %v1018, %v810
        %v1020 = vmul.f32 %v1018, %v811
        %v1021 = vmul.f32 %v1018, %v812
        %v1025 = vrot.slane %v1019, 1
        %v1026 = vrot.slane %v1020, 1
        %v1027 = vsel %vm343, %v1025, %v1026
        %v1028 = vrot.slane %v1021, 1
        %v1029 = vsel %vm343, %v1026, %v1028
        %1030 = vrot.lane.b32.xlu0 %v1027, 127
        %v1031 = vpop.permute.xlu0 %1030
        %1032 = vrot.lane.b32.xlu0 %v1029, 127
        %v1033 = vpop.permute.xlu0 %1032
        %v1036 = vadd.f32 %v964, %v1031
        %v1037 = vadd.f32 %v965, %v1033
        %s1038 = sld [smem:[#allocation3 + $0x31]]
        %v1039 = vstv %s1038
        %v1040 = vmul.f32 %v1039, %v810
        %v1041 = vmul.f32 %v1039, %v811
        %v1042 = vmul.f32 %v1039, %v812
        %v1046 = vrot.slane %v1040, 1
        %v1047 = vrot.slane %v1041, 1
        %v1048 = vsel %vm343, %v1046, %v1047
        %v1049 = vrot.slane %v1042, 1
        %v1050 = vsel %vm343, %v1047, %v1049
        %1051 = vrot.lane.b32.xlu0 %v1048, 127
        %v1052 = vpop.permute.xlu0 %1051
        %1053 = vrot.lane.b32.xlu0 %v1050, 127
        %v1054 = vpop.permute.xlu0 %1053
        %v1057 = vadd.f32 %v981, %v1052
        %v1058 = vadd.f32 %v982, %v1054
        %s1059 = sld [smem:[#allocation3 + $0x55]]
        %v1060 = vstv %s1059
        %v1061 = vmul.f32 %v1060, %v810
        %v1062 = vmul.f32 %v1060, %v811
        %v1063 = vmul.f32 %v1060, %v812
        %v1067 = vrot.slane %v1061, 1
        %v1068 = vrot.slane %v1062, 1
        %v1069 = vsel %vm343, %v1067, %v1068
        %v1070 = vrot.slane %v1063, 1
        %v1071 = vsel %vm343, %v1068, %v1070
        %1072 = vrot.lane.b32.xlu0 %v1069, 127
        %v1073 = vpop.permute.xlu0 %1072
        %1074 = vrot.lane.b32.xlu0 %v1071, 127
        %v1075 = vpop.permute.xlu0 %1074
        %v1078 = vadd.f32 %v998, %v1073
        %v1079 = vadd.f32 %v999, %v1075
        %s1080 = sld [smem:[#allocation3 + $0x79]]
        %v1081 = vstv %s1080
        %v1082 = vmul.f32 %v1081, %v810
        %v1083 = vmul.f32 %v1081, %v811
        %v1084 = vmul.f32 %v1081, %v812
        %v1088 = vrot.slane %v1082, 1
        %v1089 = vrot.slane %v1083, 1
        %v1090 = vsel %vm343, %v1088, %v1089
        %v1091 = vrot.slane %v1084, 1
        %v1092 = vsel %vm343, %v1089, %v1091
        %1093 = vrot.lane.b32.xlu0 %v1090, 127
        %v1094 = vpop.permute.xlu0 %1093
        %1095 = vrot.lane.b32.xlu0 %v1092, 127
        %v1096 = vpop.permute.xlu0 %1095
        %v1099 = vadd.f32 %v1015, %v1094
        %v1100 = vadd.f32 %v1016, %v1096
        %s1101 = sld [smem:[#allocation3 + $0xe]]
        %v1102 = vstv %s1101
        %v1103 = vmul.f32 %v1102, %v810
        %v1104 = vmul.f32 %v1102, %v811
        %v1105 = vmul.f32 %v1102, %v812
        %v1109 = vrot.slane %v1103, 1
        %v1110 = vrot.slane %v1104, 1
        %v1111 = vsel %vm343, %v1109, %v1110
        %v1112 = vrot.slane %v1105, 1
        %v1113 = vsel %vm343, %v1110, %v1112
        %1114 = vrot.lane.b32.xlu0 %v1111, 126
        %v1115 = vpop.permute.xlu0 %1114
        %1116 = vrot.lane.b32.xlu0 %v1113, 126
        %v1117 = vpop.permute.xlu0 %1116
        %v1120 = vadd.f32 %v1036, %v1115
        %v1121 = vadd.f32 %v1037, %v1117
        %s1122 = sld [smem:[#allocation3 + $0x32]]
        %v1123 = vstv %s1122
        %v1124 = vmul.f32 %v1123, %v810
        %v1125 = vmul.f32 %v1123, %v811
        %v1126 = vmul.f32 %v1123, %v812
        %v1130 = vrot.slane %v1124, 1
        %v1131 = vrot.slane %v1125, 1
        %v1132 = vsel %vm343, %v1130, %v1131
        %v1133 = vrot.slane %v1126, 1
        %v1134 = vsel %vm343, %v1131, %v1133
        %1135 = vrot.lane.b32.xlu0 %v1132, 126
        %v1136 = vpop.permute.xlu0 %1135
        %1137 = vrot.lane.b32.xlu0 %v1134, 126
        %v1138 = vpop.permute.xlu0 %1137
        %v1141 = vadd.f32 %v1057, %v1136
        %v1142 = vadd.f32 %v1058, %v1138
        %s1143 = sld [smem:[#allocation3 + $0x56]]
        %v1144 = vstv %s1143
        %v1145 = vmul.f32 %v1144, %v810
        %v1146 = vmul.f32 %v1144, %v811
        %v1147 = vmul.f32 %v1144, %v812
        %v1151 = vrot.slane %v1145, 1
        %v1152 = vrot.slane %v1146, 1
        %v1153 = vsel %vm343, %v1151, %v1152
        %v1154 = vrot.slane %v1147, 1
        %v1155 = vsel %vm343, %v1152, %v1154
        %1156 = vrot.lane.b32.xlu0 %v1153, 126
        %v1157 = vpop.permute.xlu0 %1156
        %1158 = vrot.lane.b32.xlu0 %v1155, 126
        %v1159 = vpop.permute.xlu0 %1158
        %v1162 = vadd.f32 %v1078, %v1157
        %v1163 = vadd.f32 %v1079, %v1159
        %s1164 = sld [smem:[#allocation3 + $0x7a]]
        %v1165 = vstv %s1164
        %v1166 = vmul.f32 %v1165, %v810
        %v1167 = vmul.f32 %v1165, %v811
        %v1168 = vmul.f32 %v1165, %v812
        %v1172 = vrot.slane %v1166, 1
        %v1173 = vrot.slane %v1167, 1
        %v1174 = vsel %vm343, %v1172, %v1173
        %v1175 = vrot.slane %v1168, 1
        %v1176 = vsel %vm343, %v1173, %v1175
        %1177 = vrot.lane.b32.xlu0 %v1174, 126
        %v1178 = vpop.permute.xlu0 %1177
        %1179 = vrot.lane.b32.xlu0 %v1176, 126
        %v1180 = vpop.permute.xlu0 %1179
        %v1183 = vadd.f32 %v1099, %v1178
        %v1184 = vadd.f32 %v1100, %v1180
        %s1185 = sld [smem:[#allocation3 + $0xf]]
        %v1186 = vstv %s1185
        %v1187 = vmul.f32 %v1186, %v810
        %v1188 = vmul.f32 %v1186, %v811
        %v1189 = vmul.f32 %v1186, %v812
        %v1193 = vrot.slane %v1187, 2
        %v1194 = vrot.slane %v1188, 2
        %v1195 = vsel %vm580, %v1193, %v1194
        %v1196 = vrot.slane %v1189, 2
        %v1197 = vsel %vm580, %v1194, %v1196
        %v1200 = vadd.f32 %v1120, %v1195
        %v1201 = vadd.f32 %v1121, %v1197
        %s1202 = sld [smem:[#allocation3 + $0x33]]
        %v1203 = vstv %s1202
        %v1204 = vmul.f32 %v1203, %v810
        %v1205 = vmul.f32 %v1203, %v811
        %v1206 = vmul.f32 %v1203, %v812
        %v1210 = vrot.slane %v1204, 2
        %v1211 = vrot.slane %v1205, 2
        %v1212 = vsel %vm580, %v1210, %v1211
        %v1213 = vrot.slane %v1206, 2
        %v1214 = vsel %vm580, %v1211, %v1213
        %v1217 = vadd.f32 %v1141, %v1212
        %v1218 = vadd.f32 %v1142, %v1214
        %s1219 = sld [smem:[#allocation3 + $0x57]]
        %v1220 = vstv %s1219
        %v1221 = vmul.f32 %v1220, %v810
        %v1222 = vmul.f32 %v1220, %v811
        %v1223 = vmul.f32 %v1220, %v812
        %v1227 = vrot.slane %v1221, 2
        %v1228 = vrot.slane %v1222, 2
        %v1229 = vsel %vm580, %v1227, %v1228
        %v1230 = vrot.slane %v1223, 2
        %v1231 = vsel %vm580, %v1228, %v1230
        %v1234 = vadd.f32 %v1162, %v1229
        %v1235 = vadd.f32 %v1163, %v1231
        %s1236 = sld [smem:[#allocation3 + $0x7b]]
        %v1237 = vstv %s1236
        %v1238 = vmul.f32 %v1237, %v810
        %v1239 = vmul.f32 %v1237, %v811
        %v1240 = vmul.f32 %v1237, %v812
        %v1244 = vrot.slane %v1238, 2
        %v1245 = vrot.slane %v1239, 2
        %v1246 = vsel %vm580, %v1244, %v1245
        %v1247 = vrot.slane %v1240, 2
        %v1248 = vsel %vm580, %v1245, %v1247
        %v1251 = vadd.f32 %v1183, %v1246
        %v1252 = vadd.f32 %v1184, %v1248
        %s1253 = sld [smem:[#allocation3 + $0x10]]
        %v1254 = vstv %s1253
        %v1255 = vmul.f32 %v1254, %v810
        %v1256 = vmul.f32 %v1254, %v811
        %v1257 = vmul.f32 %v1254, %v812
        %v1261 = vrot.slane %v1255, 2
        %v1262 = vrot.slane %v1256, 2
        %v1263 = vsel %vm580, %v1261, %v1262
        %v1264 = vrot.slane %v1257, 2
        %v1265 = vsel %vm580, %v1262, %v1264
        %1266 = vrot.lane.b32.xlu0 %v1263, 127
        %v1267 = vpop.permute.xlu0 %1266
        %1268 = vrot.lane.b32.xlu0 %v1265, 127
        %v1269 = vpop.permute.xlu0 %1268
        %v1272 = vadd.f32 %v1200, %v1267
        %v1273 = vadd.f32 %v1201, %v1269
        %s1274 = sld [smem:[#allocation3 + $0x34]]
        %v1275 = vstv %s1274
        %v1276 = vmul.f32 %v1275, %v810
        %v1277 = vmul.f32 %v1275, %v811
        %v1278 = vmul.f32 %v1275, %v812
        %v1282 = vrot.slane %v1276, 2
        %v1283 = vrot.slane %v1277, 2
        %v1284 = vsel %vm580, %v1282, %v1283
        %v1285 = vrot.slane %v1278, 2
        %v1286 = vsel %vm580, %v1283, %v1285
        %1287 = vrot.lane.b32.xlu0 %v1284, 127
        %v1288 = vpop.permute.xlu0 %1287
        %1289 = vrot.lane.b32.xlu0 %v1286, 127
        %v1290 = vpop.permute.xlu0 %1289
        %v1293 = vadd.f32 %v1217, %v1288
        %v1294 = vadd.f32 %v1218, %v1290
        %s1295 = sld [smem:[#allocation3 + $0x58]]
        %v1296 = vstv %s1295
        %v1297 = vmul.f32 %v1296, %v810
        %v1298 = vmul.f32 %v1296, %v811
        %v1299 = vmul.f32 %v1296, %v812
        %v1303 = vrot.slane %v1297, 2
        %v1304 = vrot.slane %v1298, 2
        %v1305 = vsel %vm580, %v1303, %v1304
        %v1306 = vrot.slane %v1299, 2
        %v1307 = vsel %vm580, %v1304, %v1306
        %1308 = vrot.lane.b32.xlu0 %v1305, 127
        %v1309 = vpop.permute.xlu0 %1308
        %1310 = vrot.lane.b32.xlu0 %v1307, 127
        %v1311 = vpop.permute.xlu0 %1310
        %v1314 = vadd.f32 %v1234, %v1309
        %v1315 = vadd.f32 %v1235, %v1311
        %s1316 = sld [smem:[#allocation3 + $0x7c]]
        %v1317 = vstv %s1316
        %v1318 = vmul.f32 %v1317, %v810
        %v1319 = vmul.f32 %v1317, %v811
        %v1320 = vmul.f32 %v1317, %v812
        %v1324 = vrot.slane %v1318, 2
        %v1325 = vrot.slane %v1319, 2
        %v1326 = vsel %vm580, %v1324, %v1325
        %v1327 = vrot.slane %v1320, 2
        %v1328 = vsel %vm580, %v1325, %v1327
        %1329 = vrot.lane.b32.xlu0 %v1326, 127
        %v1330 = vpop.permute.xlu0 %1329
        %1331 = vrot.lane.b32.xlu0 %v1328, 127
        %v1332 = vpop.permute.xlu0 %1331
        %v1335 = vadd.f32 %v1251, %v1330
        %v1336 = vadd.f32 %v1252, %v1332
        %s1337 = sld [smem:[#allocation3 + $0x11]]
        %v1338 = vstv %s1337
        %v1339 = vmul.f32 %v1338, %v810
        %v1340 = vmul.f32 %v1338, %v811
        %v1341 = vmul.f32 %v1338, %v812
        %v1345 = vrot.slane %v1339, 2
        %v1346 = vrot.slane %v1340, 2
        %v1347 = vsel %vm580, %v1345, %v1346
        %v1348 = vrot.slane %v1341, 2
        %v1349 = vsel %vm580, %v1346, %v1348
        %1350 = vrot.lane.b32.xlu0 %v1347, 126
        %v1351 = vpop.permute.xlu0 %1350
        %1352 = vrot.lane.b32.xlu0 %v1349, 126
        %v1353 = vpop.permute.xlu0 %1352
        %v1356 = vadd.f32 %v1272, %v1351
        %v1357 = vadd.f32 %v1273, %v1353
        %s1358 = sld [smem:[#allocation3 + $0x35]]
        %v1359 = vstv %s1358
        %v1360 = vmul.f32 %v1359, %v810
        %v1361 = vmul.f32 %v1359, %v811
        %v1362 = vmul.f32 %v1359, %v812
        %v1366 = vrot.slane %v1360, 2
        %v1367 = vrot.slane %v1361, 2
        %v1368 = vsel %vm580, %v1366, %v1367
        %v1369 = vrot.slane %v1362, 2
        %v1370 = vsel %vm580, %v1367, %v1369
        %1371 = vrot.lane.b32.xlu0 %v1368, 126
        %v1372 = vpop.permute.xlu0 %1371
        %1373 = vrot.lane.b32.xlu0 %v1370, 126
        %v1374 = vpop.permute.xlu0 %1373
        %v1377 = vadd.f32 %v1293, %v1372
        %v1378 = vadd.f32 %v1294, %v1374
        %s1379 = sld [smem:[#allocation3 + $0x59]]
        %v1380 = vstv %s1379
        %v1381 = vmul.f32 %v1380, %v810
        %v1382 = vmul.f32 %v1380, %v811
        %v1383 = vmul.f32 %v1380, %v812
        %v1387 = vrot.slane %v1381, 2
        %v1388 = vrot.slane %v1382, 2
        %v1389 = vsel %vm580, %v1387, %v1388
        %v1390 = vrot.slane %v1383, 2
        %v1391 = vsel %vm580, %v1388, %v1390
        %1392 = vrot.lane.b32.xlu0 %v1389, 126
        %v1393 = vpop.permute.xlu0 %1392
        %1394 = vrot.lane.b32.xlu0 %v1391, 126
        %v1395 = vpop.permute.xlu0 %1394
        %v1398 = vadd.f32 %v1314, %v1393
        %v1399 = vadd.f32 %v1315, %v1395
        %s1400 = sld [smem:[#allocation3 + $0x7d]]
        %v1401 = vstv %s1400
        %v1402 = vmul.f32 %v1401, %v810
        %v1403 = vmul.f32 %v1401, %v811
        %v1404 = vmul.f32 %v1401, %v812
        %v1408 = vrot.slane %v1402, 2
        %v1409 = vrot.slane %v1403, 2
        %v1410 = vsel %vm580, %v1408, %v1409
        %v1411 = vrot.slane %v1404, 2
        %v1412 = vsel %vm580, %v1409, %v1411
        %1413 = vrot.lane.b32.xlu0 %v1410, 126
        %v1414 = vpop.permute.xlu0 %1413
        %1415 = vrot.lane.b32.xlu0 %v1412, 126
        %v1416 = vpop.permute.xlu0 %1415
        %v1419 = vadd.f32 %v1335, %v1414
        %v1420 = vadd.f32 %v1336, %v1416
        %s1421 = scalar_lea.vmem %s195, 48
        %v1422 = vld [vmem:[%s1421] sm:$0xff]
        %v1423 = vld [vmem:[%s1421 + $0x8] sm:$0xff]
        %v1424 = vld [vmem:[%s1421 + $0x10] sm:$0x3]
        %s1425 = sld [smem:[#allocation3 + $0x12]]
        %v1426 = vstv %s1425
        %v1427 = vmul.f32 %v1426, %v1422
        %v1428 = vmul.f32 %v1426, %v1423
        %v1429 = vadd.f32 %v1356, %v1427
        %v1430 = vadd.f32 %v1357, %v1428
        %s1431 = sld [smem:[#allocation3 + $0x36]]
        %v1432 = vstv %s1431
        %v1433 = vmul.f32 %v1432, %v1422
        %v1434 = vmul.f32 %v1432, %v1423
        %v1435 = vadd.f32 %v1377, %v1433
        %v1436 = vadd.f32 %v1378, %v1434
        %s1437 = sld [smem:[#allocation3 + $0x5a]]
        %v1438 = vstv %s1437
        %v1439 = vmul.f32 %v1438, %v1422
        %v1440 = vmul.f32 %v1438, %v1423
        %v1441 = vadd.f32 %v1398, %v1439
        %v1442 = vadd.f32 %v1399, %v1440
        %s1443 = sld [smem:[#allocation3 + $0x7e]]
        %v1444 = vstv %s1443
        %v1445 = vmul.f32 %v1444, %v1422
        %v1446 = vmul.f32 %v1444, %v1423
        %v1447 = vadd.f32 %v1419, %v1445
        %v1448 = vadd.f32 %v1420, %v1446
        %s1449 = sld [smem:[#allocation3 + $0x13]]
        %v1450 = vstv %s1449
        %v1451 = vmul.f32 %v1450, %v1422
        %v1452 = vmul.f32 %v1450, %v1423
        %1455 = vrot.lane.b32.xlu0 %v1451, 127
        %v1456 = vpop.permute.xlu0 %1455
        %1457 = vrot.lane.b32.xlu0 %v1452, 127
        %v1458 = vpop.permute.xlu0 %1457
        %v1461 = vadd.f32 %v1429, %v1456
        %v1462 = vadd.f32 %v1430, %v1458
        %s1463 = sld [smem:[#allocation3 + $0x37]]
        %v1464 = vstv %s1463
        %v1465 = vmul.f32 %v1464, %v1422
        %v1466 = vmul.f32 %v1464, %v1423
        %1469 = vrot.lane.b32.xlu0 %v1465, 127
        %v1470 = vpop.permute.xlu0 %1469
        %1471 = vrot.lane.b32.xlu0 %v1466, 127
        %v1472 = vpop.permute.xlu0 %1471
        %v1475 = vadd.f32 %v1435, %v1470
        %v1476 = vadd.f32 %v1436, %v1472
        %s1477 = sld [smem:[#allocation3 + $0x5b]]
        %v1478 = vstv %s1477
        %v1479 = vmul.f32 %v1478, %v1422
        %v1480 = vmul.f32 %v1478, %v1423
        %1483 = vrot.lane.b32.xlu0 %v1479, 127
        %v1484 = vpop.permute.xlu0 %1483
        %1485 = vrot.lane.b32.xlu0 %v1480, 127
        %v1486 = vpop.permute.xlu0 %1485
        %v1489 = vadd.f32 %v1441, %v1484
        %v1490 = vadd.f32 %v1442, %v1486
        %s1491 = sld [smem:[#allocation3 + $0x7f]]
        %v1492 = vstv %s1491
        %v1493 = vmul.f32 %v1492, %v1422
        %v1494 = vmul.f32 %v1492, %v1423
        %1497 = vrot.lane.b32.xlu0 %v1493, 127
        %v1498 = vpop.permute.xlu0 %1497
        %1499 = vrot.lane.b32.xlu0 %v1494, 127
        %v1500 = vpop.permute.xlu0 %1499
        %v1503 = vadd.f32 %v1447, %v1498
        %v1504 = vadd.f32 %v1448, %v1500
        %s1505 = sld [smem:[#allocation3 + $0x14]]
        %v1506 = vstv %s1505
        %v1507 = vmul.f32 %v1506, %v1422
        %v1508 = vmul.f32 %v1506, %v1423
        %1511 = vrot.lane.b32.xlu0 %v1507, 126
        %v1512 = vpop.permute.xlu0 %1511
        %1513 = vrot.lane.b32.xlu0 %v1508, 126
        %v1514 = vpop.permute.xlu0 %1513
        %v1517 = vadd.f32 %v1461, %v1512
        %v1518 = vadd.f32 %v1462, %v1514
        %s1519 = sld [smem:[#allocation3 + $0x38]]
        %v1520 = vstv %s1519
        %v1521 = vmul.f32 %v1520, %v1422
        %v1522 = vmul.f32 %v1520, %v1423
        %1525 = vrot.lane.b32.xlu0 %v1521, 126
        %v1526 = vpop.permute.xlu0 %1525
        %1527 = vrot.lane.b32.xlu0 %v1522, 126
        %v1528 = vpop.permute.xlu0 %1527
        %v1531 = vadd.f32 %v1475, %v1526
        %v1532 = vadd.f32 %v1476, %v1528
        %s1533 = sld [smem:[#allocation3 + $0x5c]]
        %v1534 = vstv %s1533
        %v1535 = vmul.f32 %v1534, %v1422
        %v1536 = vmul.f32 %v1534, %v1423
        %1539 = vrot.lane.b32.xlu0 %v1535, 126
        %v1540 = vpop.permute.xlu0 %1539
        %1541 = vrot.lane.b32.xlu0 %v1536, 126
        %v1542 = vpop.permute.xlu0 %1541
        %v1545 = vadd.f32 %v1489, %v1540
        %v1546 = vadd.f32 %v1490, %v1542
        %s1547 = sld [smem:[#allocation3 + $0x80]]
        %v1548 = vstv %s1547
        %v1549 = vmul.f32 %v1548, %v1422
        %v1550 = vmul.f32 %v1548, %v1423
        %1553 = vrot.lane.b32.xlu0 %v1549, 126
        %v1554 = vpop.permute.xlu0 %1553
        %1555 = vrot.lane.b32.xlu0 %v1550, 126
        %v1556 = vpop.permute.xlu0 %1555
        %v1559 = vadd.f32 %v1503, %v1554
        %v1560 = vadd.f32 %v1504, %v1556
        %s1561 = sld [smem:[#allocation3 + $0x15]]
        %v1562 = vstv %s1561
        %v1563 = vmul.f32 %v1562, %v1422
        %v1564 = vmul.f32 %v1562, %v1423
        %v1565 = vmul.f32 %v1562, %v1424
        %v1569 = vrot.slane %v1563, 1
        %v1570 = vrot.slane %v1564, 1
        %v1571 = vsel %vm343, %v1569, %v1570
        %v1572 = vrot.slane %v1565, 1
        %v1573 = vsel %vm343, %v1570, %v1572
        %v1576 = vadd.f32 %v1517, %v1571
        %v1577 = vadd.f32 %v1518, %v1573
        %s1578 = sld [smem:[#allocation3 + $0x39]]
        %v1579 = vstv %s1578
        %v1580 = vmul.f32 %v1579, %v1422
        %v1581 = vmul.f32 %v1579, %v1423
        %v1582 = vmul.f32 %v1579, %v1424
        %v1586 = vrot.slane %v1580, 1
        %v1587 = vrot.slane %v1581, 1
        %v1588 = vsel %vm343, %v1586, %v1587
        %v1589 = vrot.slane %v1582, 1
        %v1590 = vsel %vm343, %v1587, %v1589
        %v1593 = vadd.f32 %v1531, %v1588
        %v1594 = vadd.f32 %v1532, %v1590
        %s1595 = sld [smem:[#allocation3 + $0x5d]]
        %v1596 = vstv %s1595
        %v1597 = vmul.f32 %v1596, %v1422
        %v1598 = vmul.f32 %v1596, %v1423
        %v1599 = vmul.f32 %v1596, %v1424
        %v1603 = vrot.slane %v1597, 1
        %v1604 = vrot.slane %v1598, 1
        %v1605 = vsel %vm343, %v1603, %v1604
        %v1606 = vrot.slane %v1599, 1
        %v1607 = vsel %vm343, %v1604, %v1606
        %v1610 = vadd.f32 %v1545, %v1605
        %v1611 = vadd.f32 %v1546, %v1607
        %s1612 = sld [smem:[#allocation3 + $0x81]]
        %v1613 = vstv %s1612
        %v1614 = vmul.f32 %v1613, %v1422
        %v1615 = vmul.f32 %v1613, %v1423
        %v1616 = vmul.f32 %v1613, %v1424
        %v1620 = vrot.slane %v1614, 1
        %v1621 = vrot.slane %v1615, 1
        %v1622 = vsel %vm343, %v1620, %v1621
        %v1623 = vrot.slane %v1616, 1
        %v1624 = vsel %vm343, %v1621, %v1623
        %v1627 = vadd.f32 %v1559, %v1622
        %v1628 = vadd.f32 %v1560, %v1624
        %s1629 = sld [smem:[#allocation3 + $0x16]]
        %v1630 = vstv %s1629
        %v1631 = vmul.f32 %v1630, %v1422
        %v1632 = vmul.f32 %v1630, %v1423
        %v1633 = vmul.f32 %v1630, %v1424
        %v1637 = vrot.slane %v1631, 1
        %v1638 = vrot.slane %v1632, 1
        %v1639 = vsel %vm343, %v1637, %v1638
        %v1640 = vrot.slane %v1633, 1
        %v1641 = vsel %vm343, %v1638, %v1640
        %1642 = vrot.lane.b32.xlu0 %v1639, 127
        %v1643 = vpop.permute.xlu0 %1642
        %1644 = vrot.lane.b32.xlu0 %v1641, 127
        %v1645 = vpop.permute.xlu0 %1644
        %v1648 = vadd.f32 %v1576, %v1643
        %v1649 = vadd.f32 %v1577, %v1645
        %s1650 = sld [smem:[#allocation3 + $0x3a]]
        %v1651 = vstv %s1650
        %v1652 = vmul.f32 %v1651, %v1422
        %v1653 = vmul.f32 %v1651, %v1423
        %v1654 = vmul.f32 %v1651, %v1424
        %v1658 = vrot.slane %v1652, 1
        %v1659 = vrot.slane %v1653, 1
        %v1660 = vsel %vm343, %v1658, %v1659
        %v1661 = vrot.slane %v1654, 1
        %v1662 = vsel %vm343, %v1659, %v1661
        %1663 = vrot.lane.b32.xlu0 %v1660, 127
        %v1664 = vpop.permute.xlu0 %1663
        %1665 = vrot.lane.b32.xlu0 %v1662, 127
        %v1666 = vpop.permute.xlu0 %1665
        %v1669 = vadd.f32 %v1593, %v1664
        %v1670 = vadd.f32 %v1594, %v1666
        %s1671 = sld [smem:[#allocation3 + $0x5e]]
        %v1672 = vstv %s1671
        %v1673 = vmul.f32 %v1672, %v1422
        %v1674 = vmul.f32 %v1672, %v1423
        %v1675 = vmul.f32 %v1672, %v1424
        %v1679 = vrot.slane %v1673, 1
        %v1680 = vrot.slane %v1674, 1
        %v1681 = vsel %vm343, %v1679, %v1680
        %v1682 = vrot.slane %v1675, 1
        %v1683 = vsel %vm343, %v1680, %v1682
        %1684 = vrot.lane.b32.xlu0 %v1681, 127
        %v1685 = vpop.permute.xlu0 %1684
        %1686 = vrot.lane.b32.xlu0 %v1683, 127
        %v1687 = vpop.permute.xlu0 %1686
        %v1690 = vadd.f32 %v1610, %v1685
        %v1691 = vadd.f32 %v1611, %v1687
        %s1692 = sld [smem:[#allocation3 + $0x82]]
        %v1693 = vstv %s1692
        %v1694 = vmul.f32 %v1693, %v1422
        %v1695 = vmul.f32 %v1693, %v1423
        %v1696 = vmul.f32 %v1693, %v1424
        %v1700 = vrot.slane %v1694, 1
        %v1701 = vrot.slane %v1695, 1
        %v1702 = vsel %vm343, %v1700, %v1701
        %v1703 = vrot.slane %v1696, 1
        %v1704 = vsel %vm343, %v1701, %v1703
        %1705 = vrot.lane.b32.xlu0 %v1702, 127
        %v1706 = vpop.permute.xlu0 %1705
        %1707 = vrot.lane.b32.xlu0 %v1704, 127
        %v1708 = vpop.permute.xlu0 %1707
        %v1711 = vadd.f32 %v1627, %v1706
        %v1712 = vadd.f32 %v1628, %v1708
        %s1713 = sld [smem:[#allocation3 + $0x17]]
        %v1714 = vstv %s1713
        %v1715 = vmul.f32 %v1714, %v1422
        %v1716 = vmul.f32 %v1714, %v1423
        %v1717 = vmul.f32 %v1714, %v1424
        %v1721 = vrot.slane %v1715, 1
        %v1722 = vrot.slane %v1716, 1
        %v1723 = vsel %vm343, %v1721, %v1722
        %v1724 = vrot.slane %v1717, 1
        %v1725 = vsel %vm343, %v1722, %v1724
        %1726 = vrot.lane.b32.xlu0 %v1723, 126
        %v1727 = vpop.permute.xlu0 %1726
        %1728 = vrot.lane.b32.xlu0 %v1725, 126
        %v1729 = vpop.permute.xlu0 %1728
        %v1732 = vadd.f32 %v1648, %v1727
        %v1733 = vadd.f32 %v1649, %v1729
        %s1734 = sld [smem:[#allocation3 + $0x3b]]
        %v1735 = vstv %s1734
        %v1736 = vmul.f32 %v1735, %v1422
        %v1737 = vmul.f32 %v1735, %v1423
        %v1738 = vmul.f32 %v1735, %v1424
        %v1742 = vrot.slane %v1736, 1
        %v1743 = vrot.slane %v1737, 1
        %v1744 = vsel %vm343, %v1742, %v1743
        %v1745 = vrot.slane %v1738, 1
        %v1746 = vsel %vm343, %v1743, %v1745
        %1747 = vrot.lane.b32.xlu0 %v1744, 126
        %v1748 = vpop.permute.xlu0 %1747
        %1749 = vrot.lane.b32.xlu0 %v1746, 126
        %v1750 = vpop.permute.xlu0 %1749
        %v1753 = vadd.f32 %v1669, %v1748
        %v1754 = vadd.f32 %v1670, %v1750
        %s1755 = sld [smem:[#allocation3 + $0x5f]]
        %v1756 = vstv %s1755
        %v1757 = vmul.f32 %v1756, %v1422
        %v1758 = vmul.f32 %v1756, %v1423
        %v1759 = vmul.f32 %v1756, %v1424
        %v1763 = vrot.slane %v1757, 1
        %v1764 = vrot.slane %v1758, 1
        %v1765 = vsel %vm343, %v1763, %v1764
        %v1766 = vrot.slane %v1759, 1
        %v1767 = vsel %vm343, %v1764, %v1766
        %1768 = vrot.lane.b32.xlu0 %v1765, 126
        %v1769 = vpop.permute.xlu0 %1768
        %1770 = vrot.lane.b32.xlu0 %v1767, 126
        %v1771 = vpop.permute.xlu0 %1770
        %v1774 = vadd.f32 %v1690, %v1769
        %v1775 = vadd.f32 %v1691, %v1771
        %s1776 = sld [smem:[#allocation3 + $0x83]]
        %v1777 = vstv %s1776
        %v1778 = vmul.f32 %v1777, %v1422
        %v1779 = vmul.f32 %v1777, %v1423
        %v1780 = vmul.f32 %v1777, %v1424
        %v1784 = vrot.slane %v1778, 1
        %v1785 = vrot.slane %v1779, 1
        %v1786 = vsel %vm343, %v1784, %v1785
        %v1787 = vrot.slane %v1780, 1
        %v1788 = vsel %vm343, %v1785, %v1787
        %1789 = vrot.lane.b32.xlu0 %v1786, 126
        %v1790 = vpop.permute.xlu0 %1789
        %1791 = vrot.lane.b32.xlu0 %v1788, 126
        %v1792 = vpop.permute.xlu0 %1791
        %v1795 = vadd.f32 %v1711, %v1790
        %v1796 = vadd.f32 %v1712, %v1792
        %s1797 = sld [smem:[#allocation3 + $0x18]]
        %v1798 = vstv %s1797
        %v1799 = vmul.f32 %v1798, %v1422
        %v1800 = vmul.f32 %v1798, %v1423
        %v1801 = vmul.f32 %v1798, %v1424
        %v1805 = vrot.slane %v1799, 2
        %v1806 = vrot.slane %v1800, 2
        %v1807 = vsel %vm580, %v1805, %v1806
        %v1808 = vrot.slane %v1801, 2
        %v1809 = vsel %vm580, %v1806, %v1808
        %v1812 = vadd.f32 %v1732, %v1807
        %v1813 = vadd.f32 %v1733, %v1809
        %s1814 = sld [smem:[#allocation3 + $0x3c]]
        %v1815 = vstv %s1814
        %v1816 = vmul.f32 %v1815, %v1422
        %v1817 = vmul.f32 %v1815, %v1423
        %v1818 = vmul.f32 %v1815, %v1424
        %v1822 = vrot.slane %v1816, 2
        %v1823 = vrot.slane %v1817, 2
        %v1824 = vsel %vm580, %v1822, %v1823
        %v1825 = vrot.slane %v1818, 2
        %v1826 = vsel %vm580, %v1823, %v1825
        %v1829 = vadd.f32 %v1753, %v1824
        %v1830 = vadd.f32 %v1754, %v1826
        %s1831 = sld [smem:[#allocation3 + $0x60]]
        %v1832 = vstv %s1831
        %v1833 = vmul.f32 %v1832, %v1422
        %v1834 = vmul.f32 %v1832, %v1423
        %v1835 = vmul.f32 %v1832, %v1424
        %v1839 = vrot.slane %v1833, 2
        %v1840 = vrot.slane %v1834, 2
        %v1841 = vsel %vm580, %v1839, %v1840
        %v1842 = vrot.slane %v1835, 2
        %v1843 = vsel %vm580, %v1840, %v1842
        %v1846 = vadd.f32 %v1774, %v1841
        %v1847 = vadd.f32 %v1775, %v1843
        %s1848 = sld [smem:[#allocation3 + $0x84]]
        %v1849 = vstv %s1848
        %v1850 = vmul.f32 %v1849, %v1422
        %v1851 = vmul.f32 %v1849, %v1423
        %v1852 = vmul.f32 %v1849, %v1424
        %v1856 = vrot.slane %v1850, 2
        %v1857 = vrot.slane %v1851, 2
        %v1858 = vsel %vm580, %v1856, %v1857
        %v1859 = vrot.slane %v1852, 2
        %v1860 = vsel %vm580, %v1857, %v1859
        %v1863 = vadd.f32 %v1795, %v1858
        %v1864 = vadd.f32 %v1796, %v1860
        %s1865 = sld [smem:[#allocation3 + $0x19]]
        %v1866 = vstv %s1865
        %v1867 = vmul.f32 %v1866, %v1422
        %v1868 = vmul.f32 %v1866, %v1423
        %v1869 = vmul.f32 %v1866, %v1424
        %v1873 = vrot.slane %v1867, 2
        %v1874 = vrot.slane %v1868, 2
        %v1875 = vsel %vm580, %v1873, %v1874
        %v1876 = vrot.slane %v1869, 2
        %v1877 = vsel %vm580, %v1874, %v1876
        %1878 = vrot.lane.b32.xlu0 %v1875, 127
        %v1879 = vpop.permute.xlu0 %1878
        %1880 = vrot.lane.b32.xlu0 %v1877, 127
        %v1881 = vpop.permute.xlu0 %1880
        %v1884 = vadd.f32 %v1812, %v1879
        %v1885 = vadd.f32 %v1813, %v1881
        %s1886 = sld [smem:[#allocation3 + $0x3d]]
        %v1887 = vstv %s1886
        %v1888 = vmul.f32 %v1887, %v1422
        %v1889 = vmul.f32 %v1887, %v1423
        %v1890 = vmul.f32 %v1887, %v1424
        %v1894 = vrot.slane %v1888, 2
        %v1895 = vrot.slane %v1889, 2
        %v1896 = vsel %vm580, %v1894, %v1895
        %v1897 = vrot.slane %v1890, 2
        %v1898 = vsel %vm580, %v1895, %v1897
        %1899 = vrot.lane.b32.xlu0 %v1896, 127
        %v1900 = vpop.permute.xlu0 %1899
        %1901 = vrot.lane.b32.xlu0 %v1898, 127
        %v1902 = vpop.permute.xlu0 %1901
        %v1905 = vadd.f32 %v1829, %v1900
        %v1906 = vadd.f32 %v1830, %v1902
        %s1907 = sld [smem:[#allocation3 + $0x61]]
        %v1908 = vstv %s1907
        %v1909 = vmul.f32 %v1908, %v1422
        %v1910 = vmul.f32 %v1908, %v1423
        %v1911 = vmul.f32 %v1908, %v1424
        %v1915 = vrot.slane %v1909, 2
        %v1916 = vrot.slane %v1910, 2
        %v1917 = vsel %vm580, %v1915, %v1916
        %v1918 = vrot.slane %v1911, 2
        %v1919 = vsel %vm580, %v1916, %v1918
        %1920 = vrot.lane.b32.xlu0 %v1917, 127
        %v1921 = vpop.permute.xlu0 %1920
        %1922 = vrot.lane.b32.xlu0 %v1919, 127
        %v1923 = vpop.permute.xlu0 %1922
        %v1926 = vadd.f32 %v1846, %v1921
        %v1927 = vadd.f32 %v1847, %v1923
        %s1928 = sld [smem:[#allocation3 + $0x85]]
        %v1929 = vstv %s1928
        %v1930 = vmul.f32 %v1929, %v1422
        %v1931 = vmul.f32 %v1929, %v1423
        %v1932 = vmul.f32 %v1929, %v1424
        %v1936 = vrot.slane %v1930, 2
        %v1937 = vrot.slane %v1931, 2
        %v1938 = vsel %vm580, %v1936, %v1937
        %v1939 = vrot.slane %v1932, 2
        %v1940 = vsel %vm580, %v1937, %v1939
        %1941 = vrot.lane.b32.xlu0 %v1938, 127
        %v1942 = vpop.permute.xlu0 %1941
        %1943 = vrot.lane.b32.xlu0 %v1940, 127
        %v1944 = vpop.permute.xlu0 %1943
        %v1947 = vadd.f32 %v1863, %v1942
        %v1948 = vadd.f32 %v1864, %v1944
        %s1949 = sld [smem:[#allocation3 + $0x1a]]
        %v1950 = vstv %s1949
        %v1951 = vmul.f32 %v1950, %v1422
        %v1952 = vmul.f32 %v1950, %v1423
        %v1953 = vmul.f32 %v1950, %v1424
        %v1957 = vrot.slane %v1951, 2
        %v1958 = vrot.slane %v1952, 2
        %v1959 = vsel %vm580, %v1957, %v1958
        %v1960 = vrot.slane %v1953, 2
        %v1961 = vsel %vm580, %v1958, %v1960
        %1962 = vrot.lane.b32.xlu0 %v1959, 126
        %v1963 = vpop.permute.xlu0 %1962
        %1964 = vrot.lane.b32.xlu0 %v1961, 126
        %v1965 = vpop.permute.xlu0 %1964
        %v1968 = vadd.f32 %v1884, %v1963
        %v1969 = vadd.f32 %v1885, %v1965
        %s1970 = sld [smem:[#allocation3 + $0x3e]]
        %v1971 = vstv %s1970
        %v1972 = vmul.f32 %v1971, %v1422
        %v1973 = vmul.f32 %v1971, %v1423
        %v1974 = vmul.f32 %v1971, %v1424
        %v1978 = vrot.slane %v1972, 2
        %v1979 = vrot.slane %v1973, 2
        %v1980 = vsel %vm580, %v1978, %v1979
        %v1981 = vrot.slane %v1974, 2
        %v1982 = vsel %vm580, %v1979, %v1981
        %1983 = vrot.lane.b32.xlu0 %v1980, 126
        %v1984 = vpop.permute.xlu0 %1983
        %1985 = vrot.lane.b32.xlu0 %v1982, 126
        %v1986 = vpop.permute.xlu0 %1985
        %v1989 = vadd.f32 %v1905, %v1984
        %v1990 = vadd.f32 %v1906, %v1986
        %s1991 = sld [smem:[#allocation3 + $0x62]]
        %v1992 = vstv %s1991
        %v1993 = vmul.f32 %v1992, %v1422
        %v1994 = vmul.f32 %v1992, %v1423
        %v1995 = vmul.f32 %v1992, %v1424
        %v1999 = vrot.slane %v1993, 2
        %v2000 = vrot.slane %v1994, 2
        %v2001 = vsel %vm580, %v1999, %v2000
        %v2002 = vrot.slane %v1995, 2
        %v2003 = vsel %vm580, %v2000, %v2002
        %2004 = vrot.lane.b32.xlu0 %v2001, 126
        %v2005 = vpop.permute.xlu0 %2004
        %2006 = vrot.lane.b32.xlu0 %v2003, 126
        %v2007 = vpop.permute.xlu0 %2006
        %v2010 = vadd.f32 %v1926, %v2005
        %v2011 = vadd.f32 %v1927, %v2007
        %s2012 = sld [smem:[#allocation3 + $0x86]]
        %v2013 = vstv %s2012
        %v2014 = vmul.f32 %v2013, %v1422
        %v2015 = vmul.f32 %v2013, %v1423
        %v2016 = vmul.f32 %v2013, %v1424
        %v2020 = vrot.slane %v2014, 2
        %v2021 = vrot.slane %v2015, 2
        %v2022 = vsel %vm580, %v2020, %v2021
        %v2023 = vrot.slane %v2016, 2
        %v2024 = vsel %vm580, %v2021, %v2023
        %2025 = vrot.lane.b32.xlu0 %v2022, 126
        %v2026 = vpop.permute.xlu0 %2025
        %2027 = vrot.lane.b32.xlu0 %v2024, 126
        %v2028 = vpop.permute.xlu0 %2027
        %v2031 = vadd.f32 %v1947, %v2026
        %v2032 = vadd.f32 %v1948, %v2028
        %s2033 = scalar_lea.vmem %s195, 72
        %v2034 = vld [vmem:[%s2033] sm:$0xff]
        %v2035 = vld [vmem:[%s2033 + $0x8] sm:$0xff]
        %v2036 = vld [vmem:[%s2033 + $0x10] sm:$0x3]
        %s2037 = sld [smem:[#allocation3 + $0x1b]]
        %v2038 = vstv %s2037
        %v2039 = vmul.f32 %v2038, %v2034
        %v2040 = vmul.f32 %v2038, %v2035
        %v2041 = vadd.f32 %v1968, %v2039
        %v2042 = vadd.f32 %v1969, %v2040
        %s2043 = sld [smem:[#allocation3 + $0x3f]]
        %v2044 = vstv %s2043
        %v2045 = vmul.f32 %v2044, %v2034
        %v2046 = vmul.f32 %v2044, %v2035
        %v2047 = vadd.f32 %v1989, %v2045
        %v2048 = vadd.f32 %v1990, %v2046
        %s2049 = sld [smem:[#allocation3 + $0x63]]
        %v2050 = vstv %s2049
        %v2051 = vmul.f32 %v2050, %v2034
        %v2052 = vmul.f32 %v2050, %v2035
        %v2053 = vadd.f32 %v2010, %v2051
        %v2054 = vadd.f32 %v2011, %v2052
        %s2055 = sld [smem:[#allocation3 + $0x87]]
        %v2056 = vstv %s2055
        %v2057 = vmul.f32 %v2056, %v2034
        %v2058 = vmul.f32 %v2056, %v2035
        %v2059 = vadd.f32 %v2031, %v2057
        %v2060 = vadd.f32 %v2032, %v2058
        %s2061 = sld [smem:[#allocation3 + $0x1c]]
        %v2062 = vstv %s2061
        %v2063 = vmul.f32 %v2062, %v2034
        %v2064 = vmul.f32 %v2062, %v2035
        %2067 = vrot.lane.b32.xlu0 %v2063, 127
        %v2068 = vpop.permute.xlu0 %2067
        %2069 = vrot.lane.b32.xlu0 %v2064, 127
        %v2070 = vpop.permute.xlu0 %2069
        %v2073 = vadd.f32 %v2041, %v2068
        %v2074 = vadd.f32 %v2042, %v2070
        %s2075 = sld [smem:[#allocation3 + $0x40]]
        %v2076 = vstv %s2075
        %v2077 = vmul.f32 %v2076, %v2034
        %v2078 = vmul.f32 %v2076, %v2035
        %2081 = vrot.lane.b32.xlu0 %v2077, 127
        %v2082 = vpop.permute.xlu0 %2081
        %2083 = vrot.lane.b32.xlu0 %v2078, 127
        %v2084 = vpop.permute.xlu0 %2083
        %v2087 = vadd.f32 %v2047, %v2082
        %v2088 = vadd.f32 %v2048, %v2084
        %s2089 = sld [smem:[#allocation3 + $0x64]]
        %v2090 = vstv %s2089
        %v2091 = vmul.f32 %v2090, %v2034
        %v2092 = vmul.f32 %v2090, %v2035
        %2095 = vrot.lane.b32.xlu0 %v2091, 127
        %v2096 = vpop.permute.xlu0 %2095
        %2097 = vrot.lane.b32.xlu0 %v2092, 127
        %v2098 = vpop.permute.xlu0 %2097
        %v2101 = vadd.f32 %v2053, %v2096
        %v2102 = vadd.f32 %v2054, %v2098
        %s2103 = sld [smem:[#allocation3 + $0x88]]
        %v2104 = vstv %s2103
        %v2105 = vmul.f32 %v2104, %v2034
        %v2106 = vmul.f32 %v2104, %v2035
        %2109 = vrot.lane.b32.xlu0 %v2105, 127
        %v2110 = vpop.permute.xlu0 %2109
        %2111 = vrot.lane.b32.xlu0 %v2106, 127
        %v2112 = vpop.permute.xlu0 %2111
        %v2115 = vadd.f32 %v2059, %v2110
        %v2116 = vadd.f32 %v2060, %v2112
        %s2117 = sld [smem:[#allocation3 + $0x1d]]
        %v2118 = vstv %s2117
        %v2119 = vmul.f32 %v2118, %v2034
        %v2120 = vmul.f32 %v2118, %v2035
        %2123 = vrot.lane.b32.xlu0 %v2119, 126
        %v2124 = vpop.permute.xlu0 %2123
        %2125 = vrot.lane.b32.xlu0 %v2120, 126
        %v2126 = vpop.permute.xlu0 %2125
        %v2129 = vadd.f32 %v2073, %v2124
        %v2130 = vadd.f32 %v2074, %v2126
        %s2131 = sld [smem:[#allocation3 + $0x41]]
        %v2132 = vstv %s2131
        %v2133 = vmul.f32 %v2132, %v2034
        %v2134 = vmul.f32 %v2132, %v2035
        %2137 = vrot.lane.b32.xlu0 %v2133, 126
        %v2138 = vpop.permute.xlu0 %2137
        %2139 = vrot.lane.b32.xlu0 %v2134, 126
        %v2140 = vpop.permute.xlu0 %2139
        %v2143 = vadd.f32 %v2087, %v2138
        %v2144 = vadd.f32 %v2088, %v2140
        %s2145 = sld [smem:[#allocation3 + $0x65]]
        %v2146 = vstv %s2145
        %v2147 = vmul.f32 %v2146, %v2034
        %v2148 = vmul.f32 %v2146, %v2035
        %2151 = vrot.lane.b32.xlu0 %v2147, 126
        %v2152 = vpop.permute.xlu0 %2151
        %2153 = vrot.lane.b32.xlu0 %v2148, 126
        %v2154 = vpop.permute.xlu0 %2153
        %v2157 = vadd.f32 %v2101, %v2152
        %v2158 = vadd.f32 %v2102, %v2154
        %s2159 = sld [smem:[#allocation3 + $0x89]]
        %v2160 = vstv %s2159
        %v2161 = vmul.f32 %v2160, %v2034
        %v2162 = vmul.f32 %v2160, %v2035
        %2165 = vrot.lane.b32.xlu0 %v2161, 126
        %v2166 = vpop.permute.xlu0 %2165
        %2167 = vrot.lane.b32.xlu0 %v2162, 126
        %v2168 = vpop.permute.xlu0 %2167
        %v2171 = vadd.f32 %v2115, %v2166
        %v2172 = vadd.f32 %v2116, %v2168
        %s2173 = sld [smem:[#allocation3 + $0x1e]]
        %v2174 = vstv %s2173
        %v2175 = vmul.f32 %v2174, %v2034
        %v2176 = vmul.f32 %v2174, %v2035
        %v2177 = vmul.f32 %v2174, %v2036
        %v2181 = vrot.slane %v2175, 1
        %v2182 = vrot.slane %v2176, 1
        %v2183 = vsel %vm343, %v2181, %v2182
        %v2184 = vrot.slane %v2177, 1
        %v2185 = vsel %vm343, %v2182, %v2184
        %v2188 = vadd.f32 %v2129, %v2183
        %v2189 = vadd.f32 %v2130, %v2185
        %s2190 = sld [smem:[#allocation3 + $0x42]]
        %v2191 = vstv %s2190
        %v2192 = vmul.f32 %v2191, %v2034
        %v2193 = vmul.f32 %v2191, %v2035
        %v2194 = vmul.f32 %v2191, %v2036
        %v2198 = vrot.slane %v2192, 1
        %v2199 = vrot.slane %v2193, 1
        %v2200 = vsel %vm343, %v2198, %v2199
        %v2201 = vrot.slane %v2194, 1
        %v2202 = vsel %vm343, %v2199, %v2201
        %v2205 = vadd.f32 %v2143, %v2200
        %v2206 = vadd.f32 %v2144, %v2202
        %s2207 = sld [smem:[#allocation3 + $0x66]]
        %v2208 = vstv %s2207
        %v2209 = vmul.f32 %v2208, %v2034
        %v2210 = vmul.f32 %v2208, %v2035
        %v2211 = vmul.f32 %v2208, %v2036
        %v2215 = vrot.slane %v2209, 1
        %v2216 = vrot.slane %v2210, 1
        %v2217 = vsel %vm343, %v2215, %v2216
        %v2218 = vrot.slane %v2211, 1
        %v2219 = vsel %vm343, %v2216, %v2218
        %v2222 = vadd.f32 %v2157, %v2217
        %v2223 = vadd.f32 %v2158, %v2219
        %s2224 = sld [smem:[#allocation3 + $0x8a]]
        %v2225 = vstv %s2224
        %v2226 = vmul.f32 %v2225, %v2034
        %v2227 = vmul.f32 %v2225, %v2035
        %v2228 = vmul.f32 %v2225, %v2036
        %v2232 = vrot.slane %v2226, 1
        %v2233 = vrot.slane %v2227, 1
        %v2234 = vsel %vm343, %v2232, %v2233
        %v2235 = vrot.slane %v2228, 1
        %v2236 = vsel %vm343, %v2233, %v2235
        %v2239 = vadd.f32 %v2171, %v2234
        %v2240 = vadd.f32 %v2172, %v2236
        %s2241 = sld [smem:[#allocation3 + $0x1f]]
        %v2242 = vstv %s2241
        %v2243 = vmul.f32 %v2242, %v2034
        %v2244 = vmul.f32 %v2242, %v2035
        %v2245 = vmul.f32 %v2242, %v2036
        %v2249 = vrot.slane %v2243, 1
        %v2250 = vrot.slane %v2244, 1
        %v2251 = vsel %vm343, %v2249, %v2250
        %v2252 = vrot.slane %v2245, 1
        %v2253 = vsel %vm343, %v2250, %v2252
        %2254 = vrot.lane.b32.xlu0 %v2251, 127
        %v2255 = vpop.permute.xlu0 %2254
        %2256 = vrot.lane.b32.xlu0 %v2253, 127
        %v2257 = vpop.permute.xlu0 %2256
        %v2260 = vadd.f32 %v2188, %v2255
        %v2261 = vadd.f32 %v2189, %v2257
        %s2262 = sld [smem:[#allocation3 + $0x43]]
        %v2263 = vstv %s2262
        %v2264 = vmul.f32 %v2263, %v2034
        %v2265 = vmul.f32 %v2263, %v2035
        %v2266 = vmul.f32 %v2263, %v2036
        %v2270 = vrot.slane %v2264, 1
        %v2271 = vrot.slane %v2265, 1
        %v2272 = vsel %vm343, %v2270, %v2271
        %v2273 = vrot.slane %v2266, 1
        %v2274 = vsel %vm343, %v2271, %v2273
        %2275 = vrot.lane.b32.xlu0 %v2272, 127
        %v2276 = vpop.permute.xlu0 %2275
        %2277 = vrot.lane.b32.xlu0 %v2274, 127
        %v2278 = vpop.permute.xlu0 %2277
        %v2281 = vadd.f32 %v2205, %v2276
        %v2282 = vadd.f32 %v2206, %v2278
        %s2283 = sld [smem:[#allocation3 + $0x67]]
        %v2284 = vstv %s2283
        %v2285 = vmul.f32 %v2284, %v2034
        %v2286 = vmul.f32 %v2284, %v2035
        %v2287 = vmul.f32 %v2284, %v2036
        %v2291 = vrot.slane %v2285, 1
        %v2292 = vrot.slane %v2286, 1
        %v2293 = vsel %vm343, %v2291, %v2292
        %v2294 = vrot.slane %v2287, 1
        %v2295 = vsel %vm343, %v2292, %v2294
        %2296 = vrot.lane.b32.xlu0 %v2293, 127
        %v2297 = vpop.permute.xlu0 %2296
        %2298 = vrot.lane.b32.xlu0 %v2295, 127
        %v2299 = vpop.permute.xlu0 %2298
        %v2302 = vadd.f32 %v2222, %v2297
        %v2303 = vadd.f32 %v2223, %v2299
        %s2304 = sld [smem:[#allocation3 + $0x8b]]
        %v2305 = vstv %s2304
        %v2306 = vmul.f32 %v2305, %v2034
        %v2307 = vmul.f32 %v2305, %v2035
        %v2308 = vmul.f32 %v2305, %v2036
        %v2312 = vrot.slane %v2306, 1
        %v2313 = vrot.slane %v2307, 1
        %v2314 = vsel %vm343, %v2312, %v2313
        %v2315 = vrot.slane %v2308, 1
        %v2316 = vsel %vm343, %v2313, %v2315
        %2317 = vrot.lane.b32.xlu0 %v2314, 127
        %v2318 = vpop.permute.xlu0 %2317
        %2319 = vrot.lane.b32.xlu0 %v2316, 127
        %v2320 = vpop.permute.xlu0 %2319
        %v2323 = vadd.f32 %v2239, %v2318
        %v2324 = vadd.f32 %v2240, %v2320
        %s2325 = sld [smem:[#allocation3 + $0x20]]
        %v2326 = vstv %s2325
        %v2327 = vmul.f32 %v2326, %v2034
        %v2328 = vmul.f32 %v2326, %v2035
        %v2329 = vmul.f32 %v2326, %v2036
        %v2333 = vrot.slane %v2327, 1
        %v2334 = vrot.slane %v2328, 1
        %v2335 = vsel %vm343, %v2333, %v2334
        %v2336 = vrot.slane %v2329, 1
        %v2337 = vsel %vm343, %v2334, %v2336
        %2338 = vrot.lane.b32.xlu0 %v2335, 126
        %v2339 = vpop.permute.xlu0 %2338
        %2340 = vrot.lane.b32.xlu0 %v2337, 126
        %v2341 = vpop.permute.xlu0 %2340
        %v2344 = vadd.f32 %v2260, %v2339
        %v2345 = vadd.f32 %v2261, %v2341
        %s2346 = sld [smem:[#allocation3 + $0x44]]
        %v2347 = vstv %s2346
        %v2348 = vmul.f32 %v2347, %v2034
        %v2349 = vmul.f32 %v2347, %v2035
        %v2350 = vmul.f32 %v2347, %v2036
        %v2354 = vrot.slane %v2348, 1
        %v2355 = vrot.slane %v2349, 1
        %v2356 = vsel %vm343, %v2354, %v2355
        %v2357 = vrot.slane %v2350, 1
        %v2358 = vsel %vm343, %v2355, %v2357
        %2359 = vrot.lane.b32.xlu0 %v2356, 126
        %v2360 = vpop.permute.xlu0 %2359
        %2361 = vrot.lane.b32.xlu0 %v2358, 126
        %v2362 = vpop.permute.xlu0 %2361
        %v2365 = vadd.f32 %v2281, %v2360
        %v2366 = vadd.f32 %v2282, %v2362
        %s2367 = sld [smem:[#allocation3 + $0x68]]
        %v2368 = vstv %s2367
        %v2369 = vmul.f32 %v2368, %v2034
        %v2370 = vmul.f32 %v2368, %v2035
        %v2371 = vmul.f32 %v2368, %v2036
        %v2375 = vrot.slane %v2369, 1
        %v2376 = vrot.slane %v2370, 1
        %v2377 = vsel %vm343, %v2375, %v2376
        %v2378 = vrot.slane %v2371, 1
        %v2379 = vsel %vm343, %v2376, %v2378
        %2380 = vrot.lane.b32.xlu0 %v2377, 126
        %v2381 = vpop.permute.xlu0 %2380
        %2382 = vrot.lane.b32.xlu0 %v2379, 126
        %v2383 = vpop.permute.xlu0 %2382
        %v2386 = vadd.f32 %v2302, %v2381
        %v2387 = vadd.f32 %v2303, %v2383
        %s2388 = sld [smem:[#allocation3 + $0x8c]]
        %v2389 = vstv %s2388
        %v2390 = vmul.f32 %v2389, %v2034
        %v2391 = vmul.f32 %v2389, %v2035
        %v2392 = vmul.f32 %v2389, %v2036
        %v2396 = vrot.slane %v2390, 1
        %v2397 = vrot.slane %v2391, 1
        %v2398 = vsel %vm343, %v2396, %v2397
        %v2399 = vrot.slane %v2392, 1
        %v2400 = vsel %vm343, %v2397, %v2399
        %2401 = vrot.lane.b32.xlu0 %v2398, 126
        %v2402 = vpop.permute.xlu0 %2401
        %2403 = vrot.lane.b32.xlu0 %v2400, 126
        %v2404 = vpop.permute.xlu0 %2403
        %v2407 = vadd.f32 %v2323, %v2402
        %v2408 = vadd.f32 %v2324, %v2404
        %s2409 = sld [smem:[#allocation3 + $0x21]]
        %v2410 = vstv %s2409
        %v2411 = vmul.f32 %v2410, %v2034
        %v2412 = vmul.f32 %v2410, %v2035
        %v2413 = vmul.f32 %v2410, %v2036
        %v2417 = vrot.slane %v2411, 2
        %v2418 = vrot.slane %v2412, 2
        %v2419 = vsel %vm580, %v2417, %v2418
        %v2420 = vrot.slane %v2413, 2
        %v2421 = vsel %vm580, %v2418, %v2420
        %v2424 = vadd.f32 %v2344, %v2419
        %v2425 = vadd.f32 %v2345, %v2421
        %s2426 = sld [smem:[#allocation3 + $0x45]]
        %v2427 = vstv %s2426
        %v2428 = vmul.f32 %v2427, %v2034
        %v2429 = vmul.f32 %v2427, %v2035
        %v2430 = vmul.f32 %v2427, %v2036
        %v2434 = vrot.slane %v2428, 2
        %v2435 = vrot.slane %v2429, 2
        %v2436 = vsel %vm580, %v2434, %v2435
        %v2437 = vrot.slane %v2430, 2
        %v2438 = vsel %vm580, %v2435, %v2437
        %v2441 = vadd.f32 %v2365, %v2436
        %v2442 = vadd.f32 %v2366, %v2438
        %s2443 = sld [smem:[#allocation3 + $0x69]]
        %v2444 = vstv %s2443
        %v2445 = vmul.f32 %v2444, %v2034
        %v2446 = vmul.f32 %v2444, %v2035
        %v2447 = vmul.f32 %v2444, %v2036
        %v2451 = vrot.slane %v2445, 2
        %v2452 = vrot.slane %v2446, 2
        %v2453 = vsel %vm580, %v2451, %v2452
        %v2454 = vrot.slane %v2447, 2
        %v2455 = vsel %vm580, %v2452, %v2454
        %v2458 = vadd.f32 %v2386, %v2453
        %v2459 = vadd.f32 %v2387, %v2455
        %s2460 = sld [smem:[#allocation3 + $0x8d]]
        %v2461 = vstv %s2460
        %v2462 = vmul.f32 %v2461, %v2034
        %v2463 = vmul.f32 %v2461, %v2035
        %v2464 = vmul.f32 %v2461, %v2036
        %v2468 = vrot.slane %v2462, 2
        %v2469 = vrot.slane %v2463, 2
        %v2470 = vsel %vm580, %v2468, %v2469
        %v2471 = vrot.slane %v2464, 2
        %v2472 = vsel %vm580, %v2469, %v2471
        %v2475 = vadd.f32 %v2407, %v2470
        %v2476 = vadd.f32 %v2408, %v2472
        %s2477 = sld [smem:[#allocation3 + $0x22]]
        %v2478 = vstv %s2477
        %v2479 = vmul.f32 %v2478, %v2034
        %v2480 = vmul.f32 %v2478, %v2035
        %v2481 = vmul.f32 %v2478, %v2036
        %v2485 = vrot.slane %v2479, 2
        %v2486 = vrot.slane %v2480, 2
        %v2487 = vsel %vm580, %v2485, %v2486
        %v2488 = vrot.slane %v2481, 2
        %v2489 = vsel %vm580, %v2486, %v2488
        %2490 = vrot.lane.b32.xlu0 %v2487, 127
        %v2491 = vpop.permute.xlu0 %2490
        %2492 = vrot.lane.b32.xlu0 %v2489, 127
        %v2493 = vpop.permute.xlu0 %2492
        %v2496 = vadd.f32 %v2424, %v2491
        %v2497 = vadd.f32 %v2425, %v2493
        %s2498 = sld [smem:[#allocation3 + $0x46]]
        %v2499 = vstv %s2498
        %v2500 = vmul.f32 %v2499, %v2034
        %v2501 = vmul.f32 %v2499, %v2035
        %v2502 = vmul.f32 %v2499, %v2036
        %v2506 = vrot.slane %v2500, 2
        %v2507 = vrot.slane %v2501, 2
        %v2508 = vsel %vm580, %v2506, %v2507
        %v2509 = vrot.slane %v2502, 2
        %v2510 = vsel %vm580, %v2507, %v2509
        %2511 = vrot.lane.b32.xlu0 %v2508, 127
        %v2512 = vpop.permute.xlu0 %2511
        %2513 = vrot.lane.b32.xlu0 %v2510, 127
        %v2514 = vpop.permute.xlu0 %2513
        %v2517 = vadd.f32 %v2441, %v2512
        %v2518 = vadd.f32 %v2442, %v2514
        %s2519 = sld [smem:[#allocation3 + $0x6a]]
        %v2520 = vstv %s2519
        %v2521 = vmul.f32 %v2520, %v2034
        %v2522 = vmul.f32 %v2520, %v2035
        %v2523 = vmul.f32 %v2520, %v2036
        %v2527 = vrot.slane %v2521, 2
        %v2528 = vrot.slane %v2522, 2
        %v2529 = vsel %vm580, %v2527, %v2528
        %v2530 = vrot.slane %v2523, 2
        %v2531 = vsel %vm580, %v2528, %v2530
        %2532 = vrot.lane.b32.xlu0 %v2529, 127
        %v2533 = vpop.permute.xlu0 %2532
        %2534 = vrot.lane.b32.xlu0 %v2531, 127
        %v2535 = vpop.permute.xlu0 %2534
        %v2538 = vadd.f32 %v2458, %v2533
        %v2539 = vadd.f32 %v2459, %v2535
        %s2540 = sld [smem:[#allocation3 + $0x8e]]
        %v2541 = vstv %s2540
        %v2542 = vmul.f32 %v2541, %v2034
        %v2543 = vmul.f32 %v2541, %v2035
        %v2544 = vmul.f32 %v2541, %v2036
        %v2548 = vrot.slane %v2542, 2
        %v2549 = vrot.slane %v2543, 2
        %v2550 = vsel %vm580, %v2548, %v2549
        %v2551 = vrot.slane %v2544, 2
        %v2552 = vsel %vm580, %v2549, %v2551
        %2553 = vrot.lane.b32.xlu0 %v2550, 127
        %v2554 = vpop.permute.xlu0 %2553
        %2555 = vrot.lane.b32.xlu0 %v2552, 127
        %v2556 = vpop.permute.xlu0 %2555
        %v2559 = vadd.f32 %v2475, %v2554
        %v2560 = vadd.f32 %v2476, %v2556
        %s2561 = sld [smem:[#allocation3 + $0x23]]
        %v2562 = vstv %s2561
        %v2563 = vmul.f32 %v2562, %v2034
        %v2564 = vmul.f32 %v2562, %v2035
        %v2565 = vmul.f32 %v2562, %v2036
        %v2569 = vrot.slane %v2563, 2
        %v2570 = vrot.slane %v2564, 2
        %v2571 = vsel %vm580, %v2569, %v2570
        %v2572 = vrot.slane %v2565, 2
        %v2573 = vsel %vm580, %v2570, %v2572
        %2574 = vrot.lane.b32.xlu0 %v2571, 126
        %v2575 = vpop.permute.xlu0 %2574
        %2576 = vrot.lane.b32.xlu0 %v2573, 126
        %v2577 = vpop.permute.xlu0 %2576
        %v2580 = vadd.f32 %v2496, %v2575
        %v2581 = vadd.f32 %v2497, %v2577
        %s2582 = sld [smem:[#allocation3 + $0x47]]
        %v2583 = vstv %s2582
        %v2584 = vmul.f32 %v2583, %v2034
        %v2585 = vmul.f32 %v2583, %v2035
        %v2586 = vmul.f32 %v2583, %v2036
        %v2590 = vrot.slane %v2584, 2
        %v2591 = vrot.slane %v2585, 2
        %v2592 = vsel %vm580, %v2590, %v2591
        %v2593 = vrot.slane %v2586, 2
        %v2594 = vsel %vm580, %v2591, %v2593
        %2595 = vrot.lane.b32.xlu0 %v2592, 126
        %v2596 = vpop.permute.xlu0 %2595
        %2597 = vrot.lane.b32.xlu0 %v2594, 126
        %v2598 = vpop.permute.xlu0 %2597
        %v2601 = vadd.f32 %v2517, %v2596
        %v2602 = vadd.f32 %v2518, %v2598
        %s2603 = sld [smem:[#allocation3 + $0x6b]]
        %v2604 = vstv %s2603
        %v2605 = vmul.f32 %v2604, %v2034
        %v2606 = vmul.f32 %v2604, %v2035
        %v2607 = vmul.f32 %v2604, %v2036
        %v2611 = vrot.slane %v2605, 2
        %v2612 = vrot.slane %v2606, 2
        %v2613 = vsel %vm580, %v2611, %v2612
        %v2614 = vrot.slane %v2607, 2
        %v2615 = vsel %vm580, %v2612, %v2614
        %2616 = vrot.lane.b32.xlu0 %v2613, 126
        %v2617 = vpop.permute.xlu0 %2616
        %2618 = vrot.lane.b32.xlu0 %v2615, 126
        %v2619 = vpop.permute.xlu0 %2618
        %v2622 = vadd.f32 %v2538, %v2617
        %v2623 = vadd.f32 %v2539, %v2619
        %s2624 = sld [smem:[#allocation3 + $0x8f]]
        %v2625 = vstv %s2624
        %v2626 = vmul.f32 %v2625, %v2034
        %v2627 = vmul.f32 %v2625, %v2035
        %v2628 = vmul.f32 %v2625, %v2036
        %v2632 = vrot.slane %v2626, 2
        %v2633 = vrot.slane %v2627, 2
        %v2634 = vsel %vm580, %v2632, %v2633
        %v2635 = vrot.slane %v2628, 2
        %v2636 = vsel %vm580, %v2633, %v2635
        %2637 = vrot.lane.b32.xlu0 %v2634, 126
        %v2638 = vpop.permute.xlu0 %2637
        %2639 = vrot.lane.b32.xlu0 %v2636, 126
        %v2640 = vpop.permute.xlu0 %2639
        %v2643 = vadd.f32 %v2559, %v2638
        %v2644 = vadd.f32 %v2560, %v2640
        %vm2645 = vcmask 146432
        %2646 = vst.msk [vmem:[#allocation2] sm:$0xff] %vm2645, 0.0
        %2647 = vst.msk [vmem:[#allocation2 + $0x8] sm:$0xff] %vm2645, 0.0
        %vm2648 = vcmask 140288
        %2649 = vst.msk [vmem:[#allocation2 + $0x10] sm:$0x3] %vm2648, 0.0
        %2650 = vst.msk [vmem:[#allocation2 + $0x18] sm:$0xff] %vm2645, 0.0
        %2651 = vst.msk [vmem:[#allocation2 + $0x20] sm:$0xff] %vm2645, 0.0
        %2652 = vst.msk [vmem:[#allocation2 + $0x28] sm:$0x3] %vm2648, 0.0
        %2653 = vst.msk [vmem:[#allocation2 + $0x30] sm:$0xff] %vm2645, 0.0
        %2654 = vst.msk [vmem:[#allocation2 + $0x38] sm:$0xff] %vm2645, 0.0
        %2655 = vst.msk [vmem:[#allocation2 + $0x40] sm:$0x3] %vm2648, 0.0
        %2656 = vst.msk [vmem:[#allocation2 + $0x48] sm:$0xff] %vm2645, 0.0
        %2657 = vst.msk [vmem:[#allocation2 + $0x50] sm:$0xff] %vm2645, 0.0
        %2658 = vst.msk [vmem:[#allocation2 + $0x58] sm:$0x3] %vm2648, 0.0
        %v2659 = vmax.f32 %v2580, 0.0
        %v2660 = vmax.f32 %v2581, 0.0
        %v2661 = vmax.f32 %v2601, 0.0
        %v2662 = vmax.f32 %v2602, 0.0
        %v2663 = vmax.f32 %v2622, 0.0
        %v2664 = vmax.f32 %v2623, 0.0
        %v2665 = vmax.f32 %v2643, 0.0
        %v2666 = vmax.f32 %v2644, 0.0
        %2675 = vrot.lane.b32.xlu0 %v2659, 2
        %v2676 = vpop.permute.xlu0 %2675
        %2677 = vrot.lane.b32.xlu0 %v2660, 2
        %v2678 = vpop.permute.xlu0 %2677
        %2679 = vrot.lane.b32.xlu0 %v2661, 2
        %v2680 = vpop.permute.xlu0 %2679
        %2681 = vrot.lane.b32.xlu0 %v2662, 2
        %v2682 = vpop.permute.xlu0 %2681
        %2683 = vrot.lane.b32.xlu0 %v2663, 2
        %v2684 = vpop.permute.xlu0 %2683
        %2685 = vrot.lane.b32.xlu0 %v2664, 2
        %v2686 = vpop.permute.xlu0 %2685
        %2687 = vrot.lane.b32.xlu0 %v2665, 2
        %v2688 = vpop.permute.xlu0 %2687
        %2689 = vrot.lane.b32.xlu0 %v2666, 2
        %v2690 = vpop.permute.xlu0 %2689
        %vm2699 = vcmask 146448
        %2700 = vst.msk [vmem:[#allocation2 + $0x1] sm:$0xff] %vm2699, %v2676
        %2701 = vst.msk [vmem:[#allocation2 + $0x9] sm:$0xff] %vm2699, %v2678
        %2702 = vst.msk [vmem:[#allocation2 + $0x19] sm:$0xff] %vm2699, %v2680
        %2703 = vst.msk [vmem:[#allocation2 + $0x21] sm:$0xff] %vm2699, %v2682
        %2704 = vst.msk [vmem:[#allocation2 + $0x31] sm:$0xff] %vm2699, %v2684
        %2705 = vst.msk [vmem:[#allocation2 + $0x39] sm:$0xff] %vm2699, %v2686
        %2706 = vst.msk [vmem:[#allocation2 + $0x49] sm:$0xff] %vm2699, %v2688
        %2707 = vst.msk [vmem:[#allocation2 + $0x51] sm:$0xff] %vm2699, %v2690
        %v2708 = vld [vmem:[#allocation2] sm:$0xff]
        %v2709 = vld [vmem:[#allocation2 + $0x8] sm:$0xff]
        %v2710 = vld [vmem:[#allocation2 + $0x10] sm:$0x3]
        %s2711 = sld [smem:[#allocation6]]
        %v2712 = vstv %s2711
        %v2713 = vmul.f32 %v2712, %v2708
        %v2714 = vmul.f32 %v2712, %v2709
        %v2715 = vadd.f32 %v2713, 0.0
        %v2716 = vadd.f32 %v2714, 0.0
        %s2717 = sld [smem:[#allocation6 + $0x24]]
        %v2718 = vstv %s2717
        %v2719 = vmul.f32 %v2718, %v2708
        %v2720 = vmul.f32 %v2718, %v2709
        %v2721 = vadd.f32 %v2719, 0.0
        %v2722 = vadd.f32 %v2720, 0.0
        %s2723 = sld [smem:[#allocation6 + $0x48]]
        %v2724 = vstv %s2723
        %v2725 = vmul.f32 %v2724, %v2708
        %v2726 = vmul.f32 %v2724, %v2709
        %v2727 = vadd.f32 %v2725, 0.0
        %v2728 = vadd.f32 %v2726, 0.0
        %s2729 = sld [smem:[#allocation6 + $0x6c]]
        %v2730 = vstv %s2729
        %v2731 = vmul.f32 %v2730, %v2708
        %v2732 = vmul.f32 %v2730, %v2709
        %v2733 = vadd.f32 %v2731, 0.0
        %v2734 = vadd.f32 %v2732, 0.0
        %s2735 = sld [smem:[#allocation6 + $0x1]]
        %v2736 = vstv %s2735
        %v2737 = vmul.f32 %v2736, %v2708
        %v2738 = vmul.f32 %v2736, %v2709
        %2741 = vrot.lane.b32.xlu0 %v2737, 127
        %v2742 = vpop.permute.xlu0 %2741
        %2743 = vrot.lane.b32.xlu0 %v2738, 127
        %v2744 = vpop.permute.xlu0 %2743
        %v2747 = vadd.f32 %v2715, %v2742
        %v2748 = vadd.f32 %v2716, %v2744
        %s2749 = sld [smem:[#allocation6 + $0x25]]
        %v2750 = vstv %s2749
        %v2751 = vmul.f32 %v2750, %v2708
        %v2752 = vmul.f32 %v2750, %v2709
        %2755 = vrot.lane.b32.xlu0 %v2751, 127
        %v2756 = vpop.permute.xlu0 %2755
        %2757 = vrot.lane.b32.xlu0 %v2752, 127
        %v2758 = vpop.permute.xlu0 %2757
        %v2761 = vadd.f32 %v2721, %v2756
        %v2762 = vadd.f32 %v2722, %v2758
        %s2763 = sld [smem:[#allocation6 + $0x49]]
        %v2764 = vstv %s2763
        %v2765 = vmul.f32 %v2764, %v2708
        %v2766 = vmul.f32 %v2764, %v2709
        %2769 = vrot.lane.b32.xlu0 %v2765, 127
        %v2770 = vpop.permute.xlu0 %2769
        %2771 = vrot.lane.b32.xlu0 %v2766, 127
        %v2772 = vpop.permute.xlu0 %2771
        %v2775 = vadd.f32 %v2727, %v2770
        %v2776 = vadd.f32 %v2728, %v2772
        %s2777 = sld [smem:[#allocation6 + $0x6d]]
        %v2778 = vstv %s2777
        %v2779 = vmul.f32 %v2778, %v2708
        %v2780 = vmul.f32 %v2778, %v2709
        %2783 = vrot.lane.b32.xlu0 %v2779, 127
        %v2784 = vpop.permute.xlu0 %2783
        %2785 = vrot.lane.b32.xlu0 %v2780, 127
        %v2786 = vpop.permute.xlu0 %2785
        %v2789 = vadd.f32 %v2733, %v2784
        %v2790 = vadd.f32 %v2734, %v2786
        %s2791 = sld [smem:[#allocation6 + $0x2]]
        %v2792 = vstv %s2791
        %v2793 = vmul.f32 %v2792, %v2708
        %v2794 = vmul.f32 %v2792, %v2709
        %2797 = vrot.lane.b32.xlu0 %v2793, 126
        %v2798 = vpop.permute.xlu0 %2797
        %2799 = vrot.lane.b32.xlu0 %v2794, 126
        %v2800 = vpop.permute.xlu0 %2799
        %v2803 = vadd.f32 %v2747, %v2798
        %v2804 = vadd.f32 %v2748, %v2800
        %s2805 = sld [smem:[#allocation6 + $0x26]]
        %v2806 = vstv %s2805
        %v2807 = vmul.f32 %v2806, %v2708
        %v2808 = vmul.f32 %v2806, %v2709
        %2811 = vrot.lane.b32.xlu0 %v2807, 126
        %v2812 = vpop.permute.xlu0 %2811
        %2813 = vrot.lane.b32.xlu0 %v2808, 126
        %v2814 = vpop.permute.xlu0 %2813
        %v2817 = vadd.f32 %v2761, %v2812
        %v2818 = vadd.f32 %v2762, %v2814
        %s2819 = sld [smem:[#allocation6 + $0x4a]]
        %v2820 = vstv %s2819
        %v2821 = vmul.f32 %v2820, %v2708
        %v2822 = vmul.f32 %v2820, %v2709
        %2825 = vrot.lane.b32.xlu0 %v2821, 126
        %v2826 = vpop.permute.xlu0 %2825
        %2827 = vrot.lane.b32.xlu0 %v2822, 126
        %v2828 = vpop.permute.xlu0 %2827
        %v2831 = vadd.f32 %v2775, %v2826
        %v2832 = vadd.f32 %v2776, %v2828
        %s2833 = sld [smem:[#allocation6 + $0x6e]]
        %v2834 = vstv %s2833
        %v2835 = vmul.f32 %v2834, %v2708
        %v2836 = vmul.f32 %v2834, %v2709
        %2839 = vrot.lane.b32.xlu0 %v2835, 126
        %v2840 = vpop.permute.xlu0 %2839
        %2841 = vrot.lane.b32.xlu0 %v2836, 126
        %v2842 = vpop.permute.xlu0 %2841
        %v2845 = vadd.f32 %v2789, %v2840
        %v2846 = vadd.f32 %v2790, %v2842
        %s2847 = sld [smem:[#allocation6 + $0x3]]
        %v2848 = vstv %s2847
        %v2849 = vmul.f32 %v2848, %v2708
        %v2850 = vmul.f32 %v2848, %v2709
        %v2851 = vmul.f32 %v2848, %v2710
        %v2855 = vrot.slane %v2849, 1
        %v2856 = vrot.slane %v2850, 1
        %v2857 = vsel %vm343, %v2855, %v2856
        %v2858 = vrot.slane %v2851, 1
        %v2859 = vsel %vm343, %v2856, %v2858
        %v2862 = vadd.f32 %v2803, %v2857
        %v2863 = vadd.f32 %v2804, %v2859
        %s2864 = sld [smem:[#allocation6 + $0x27]]
        %v2865 = vstv %s2864
        %v2866 = vmul.f32 %v2865, %v2708
        %v2867 = vmul.f32 %v2865, %v2709
        %v2868 = vmul.f32 %v2865, %v2710
        %v2872 = vrot.slane %v2866, 1
        %v2873 = vrot.slane %v2867, 1
        %v2874 = vsel %vm343, %v2872, %v2873
        %v2875 = vrot.slane %v2868, 1
        %v2876 = vsel %vm343, %v2873, %v2875
        %v2879 = vadd.f32 %v2817, %v2874
        %v2880 = vadd.f32 %v2818, %v2876
        %s2881 = sld [smem:[#allocation6 + $0x4b]]
        %v2882 = vstv %s2881
        %v2883 = vmul.f32 %v2882, %v2708
        %v2884 = vmul.f32 %v2882, %v2709
        %v2885 = vmul.f32 %v2882, %v2710
        %v2889 = vrot.slane %v2883, 1
        %v2890 = vrot.slane %v2884, 1
        %v2891 = vsel %vm343, %v2889, %v2890
        %v2892 = vrot.slane %v2885, 1
        %v2893 = vsel %vm343, %v2890, %v2892
        %v2896 = vadd.f32 %v2831, %v2891
        %v2897 = vadd.f32 %v2832, %v2893
        %s2898 = sld [smem:[#allocation6 + $0x6f]]
        %v2899 = vstv %s2898
        %v2900 = vmul.f32 %v2899, %v2708
        %v2901 = vmul.f32 %v2899, %v2709
        %v2902 = vmul.f32 %v2899, %v2710
        %v2906 = vrot.slane %v2900, 1
        %v2907 = vrot.slane %v2901, 1
        %v2908 = vsel %vm343, %v2906, %v2907
        %v2909 = vrot.slane %v2902, 1
        %v2910 = vsel %vm343, %v2907, %v2909
        %v2913 = vadd.f32 %v2845, %v2908
        %v2914 = vadd.f32 %v2846, %v2910
        %s2915 = sld [smem:[#allocation6 + $0x4]]
        %v2916 = vstv %s2915
        %v2917 = vmul.f32 %v2916, %v2708
        %v2918 = vmul.f32 %v2916, %v2709
        %v2919 = vmul.f32 %v2916, %v2710
        %v2923 = vrot.slane %v2917, 1
        %v2924 = vrot.slane %v2918, 1
        %v2925 = vsel %vm343, %v2923, %v2924
        %v2926 = vrot.slane %v2919, 1
        %v2927 = vsel %vm343, %v2924, %v2926
        %2928 = vrot.lane.b32.xlu0 %v2925, 127
        %v2929 = vpop.permute.xlu0 %2928
        %2930 = vrot.lane.b32.xlu0 %v2927, 127
        %v2931 = vpop.permute.xlu0 %2930
        %v2934 = vadd.f32 %v2862, %v2929
        %v2935 = vadd.f32 %v2863, %v2931
        %s2936 = sld [smem:[#allocation6 + $0x28]]
        %v2937 = vstv %s2936
        %v2938 = vmul.f32 %v2937, %v2708
        %v2939 = vmul.f32 %v2937, %v2709
        %v2940 = vmul.f32 %v2937, %v2710
        %v2944 = vrot.slane %v2938, 1
        %v2945 = vrot.slane %v2939, 1
        %v2946 = vsel %vm343, %v2944, %v2945
        %v2947 = vrot.slane %v2940, 1
        %v2948 = vsel %vm343, %v2945, %v2947
        %2949 = vrot.lane.b32.xlu0 %v2946, 127
        %v2950 = vpop.permute.xlu0 %2949
        %2951 = vrot.lane.b32.xlu0 %v2948, 127
        %v2952 = vpop.permute.xlu0 %2951
        %v2955 = vadd.f32 %v2879, %v2950
        %v2956 = vadd.f32 %v2880, %v2952
        %s2957 = sld [smem:[#allocation6 + $0x4c]]
        %v2958 = vstv %s2957
        %v2959 = vmul.f32 %v2958, %v2708
        %v2960 = vmul.f32 %v2958, %v2709
        %v2961 = vmul.f32 %v2958, %v2710
        %v2965 = vrot.slane %v2959, 1
        %v2966 = vrot.slane %v2960, 1
        %v2967 = vsel %vm343, %v2965, %v2966
        %v2968 = vrot.slane %v2961, 1
        %v2969 = vsel %vm343, %v2966, %v2968
        %2970 = vrot.lane.b32.xlu0 %v2967, 127
        %v2971 = vpop.permute.xlu0 %2970
        %2972 = vrot.lane.b32.xlu0 %v2969, 127
        %v2973 = vpop.permute.xlu0 %2972
        %v2976 = vadd.f32 %v2896, %v2971
        %v2977 = vadd.f32 %v2897, %v2973
        %s2978 = sld [smem:[#allocation6 + $0x70]]
        %v2979 = vstv %s2978
        %v2980 = vmul.f32 %v2979, %v2708
        %v2981 = vmul.f32 %v2979, %v2709
        %v2982 = vmul.f32 %v2979, %v2710
        %v2986 = vrot.slane %v2980, 1
        %v2987 = vrot.slane %v2981, 1
        %v2988 = vsel %vm343, %v2986, %v2987
        %v2989 = vrot.slane %v2982, 1
        %v2990 = vsel %vm343, %v2987, %v2989
        %2991 = vrot.lane.b32.xlu0 %v2988, 127
        %v2992 = vpop.permute.xlu0 %2991
        %2993 = vrot.lane.b32.xlu0 %v2990, 127
        %v2994 = vpop.permute.xlu0 %2993
        %v2997 = vadd.f32 %v2913, %v2992
        %v2998 = vadd.f32 %v2914, %v2994
        %s2999 = sld [smem:[#allocation6 + $0x5]]
        %v3000 = vstv %s2999
        %v3001 = vmul.f32 %v3000, %v2708
        %v3002 = vmul.f32 %v3000, %v2709
        %v3003 = vmul.f32 %v3000, %v2710
        %v3007 = vrot.slane %v3001, 1
        %v3008 = vrot.slane %v3002, 1
        %v3009 = vsel %vm343, %v3007, %v3008
        %v3010 = vrot.slane %v3003, 1
        %v3011 = vsel %vm343, %v3008, %v3010
        %3012 = vrot.lane.b32.xlu0 %v3009, 126
        %v3013 = vpop.permute.xlu0 %3012
        %3014 = vrot.lane.b32.xlu0 %v3011, 126
        %v3015 = vpop.permute.xlu0 %3014
        %v3018 = vadd.f32 %v2934, %v3013
        %v3019 = vadd.f32 %v2935, %v3015
        %s3020 = sld [smem:[#allocation6 + $0x29]]
        %v3021 = vstv %s3020
        %v3022 = vmul.f32 %v3021, %v2708
        %v3023 = vmul.f32 %v3021, %v2709
        %v3024 = vmul.f32 %v3021, %v2710
        %v3028 = vrot.slane %v3022, 1
        %v3029 = vrot.slane %v3023, 1
        %v3030 = vsel %vm343, %v3028, %v3029
        %v3031 = vrot.slane %v3024, 1
        %v3032 = vsel %vm343, %v3029, %v3031
        %3033 = vrot.lane.b32.xlu0 %v3030, 126
        %v3034 = vpop.permute.xlu0 %3033
        %3035 = vrot.lane.b32.xlu0 %v3032, 126
        %v3036 = vpop.permute.xlu0 %3035
        %v3039 = vadd.f32 %v2955, %v3034
        %v3040 = vadd.f32 %v2956, %v3036
        %s3041 = sld [smem:[#allocation6 + $0x4d]]
        %v3042 = vstv %s3041
        %v3043 = vmul.f32 %v3042, %v2708
        %v3044 = vmul.f32 %v3042, %v2709
        %v3045 = vmul.f32 %v3042, %v2710
        %v3049 = vrot.slane %v3043, 1
        %v3050 = vrot.slane %v3044, 1
        %v3051 = vsel %vm343, %v3049, %v3050
        %v3052 = vrot.slane %v3045, 1
        %v3053 = vsel %vm343, %v3050, %v3052
        %3054 = vrot.lane.b32.xlu0 %v3051, 126
        %v3055 = vpop.permute.xlu0 %3054
        %3056 = vrot.lane.b32.xlu0 %v3053, 126
        %v3057 = vpop.permute.xlu0 %3056
        %v3060 = vadd.f32 %v2976, %v3055
        %v3061 = vadd.f32 %v2977, %v3057
        %s3062 = sld [smem:[#allocation6 + $0x71]]
        %v3063 = vstv %s3062
        %v3064 = vmul.f32 %v3063, %v2708
        %v3065 = vmul.f32 %v3063, %v2709
        %v3066 = vmul.f32 %v3063, %v2710
        %v3070 = vrot.slane %v3064, 1
        %v3071 = vrot.slane %v3065, 1
        %v3072 = vsel %vm343, %v3070, %v3071
        %v3073 = vrot.slane %v3066, 1
        %v3074 = vsel %vm343, %v3071, %v3073
        %3075 = vrot.lane.b32.xlu0 %v3072, 126
        %v3076 = vpop.permute.xlu0 %3075
        %3077 = vrot.lane.b32.xlu0 %v3074, 126
        %v3078 = vpop.permute.xlu0 %3077
        %v3081 = vadd.f32 %v2997, %v3076
        %v3082 = vadd.f32 %v2998, %v3078
        %s3083 = sld [smem:[#allocation6 + $0x6]]
        %v3084 = vstv %s3083
        %v3085 = vmul.f32 %v3084, %v2708
        %v3086 = vmul.f32 %v3084, %v2709
        %v3087 = vmul.f32 %v3084, %v2710
        %v3091 = vrot.slane %v3085, 2
        %v3092 = vrot.slane %v3086, 2
        %v3093 = vsel %vm580, %v3091, %v3092
        %v3094 = vrot.slane %v3087, 2
        %v3095 = vsel %vm580, %v3092, %v3094
        %v3098 = vadd.f32 %v3018, %v3093
        %v3099 = vadd.f32 %v3019, %v3095
        %s3100 = sld [smem:[#allocation6 + $0x2a]]
        %v3101 = vstv %s3100
        %v3102 = vmul.f32 %v3101, %v2708
        %v3103 = vmul.f32 %v3101, %v2709
        %v3104 = vmul.f32 %v3101, %v2710
        %v3108 = vrot.slane %v3102, 2
        %v3109 = vrot.slane %v3103, 2
        %v3110 = vsel %vm580, %v3108, %v3109
        %v3111 = vrot.slane %v3104, 2
        %v3112 = vsel %vm580, %v3109, %v3111
        %v3115 = vadd.f32 %v3039, %v3110
        %v3116 = vadd.f32 %v3040, %v3112
        %s3117 = sld [smem:[#allocation6 + $0x4e]]
        %v3118 = vstv %s3117
        %v3119 = vmul.f32 %v3118, %v2708
        %v3120 = vmul.f32 %v3118, %v2709
        %v3121 = vmul.f32 %v3118, %v2710
        %v3125 = vrot.slane %v3119, 2
        %v3126 = vrot.slane %v3120, 2
        %v3127 = vsel %vm580, %v3125, %v3126
        %v3128 = vrot.slane %v3121, 2
        %v3129 = vsel %vm580, %v3126, %v3128
        %v3132 = vadd.f32 %v3060, %v3127
        %v3133 = vadd.f32 %v3061, %v3129
        %s3134 = sld [smem:[#allocation6 + $0x72]]
        %v3135 = vstv %s3134
        %v3136 = vmul.f32 %v3135, %v2708
        %v3137 = vmul.f32 %v3135, %v2709
        %v3138 = vmul.f32 %v3135, %v2710
        %v3142 = vrot.slane %v3136, 2
        %v3143 = vrot.slane %v3137, 2
        %v3144 = vsel %vm580, %v3142, %v3143
        %v3145 = vrot.slane %v3138, 2
        %v3146 = vsel %vm580, %v3143, %v3145
        %v3149 = vadd.f32 %v3081, %v3144
        %v3150 = vadd.f32 %v3082, %v3146
        %s3151 = sld [smem:[#allocation6 + $0x7]]
        %v3152 = vstv %s3151
        %v3153 = vmul.f32 %v3152, %v2708
        %v3154 = vmul.f32 %v3152, %v2709
        %v3155 = vmul.f32 %v3152, %v2710
        %v3159 = vrot.slane %v3153, 2
        %v3160 = vrot.slane %v3154, 2
        %v3161 = vsel %vm580, %v3159, %v3160
        %v3162 = vrot.slane %v3155, 2
        %v3163 = vsel %vm580, %v3160, %v3162
        %3164 = vrot.lane.b32.xlu0 %v3161, 127
        %v3165 = vpop.permute.xlu0 %3164
        %3166 = vrot.lane.b32.xlu0 %v3163, 127
        %v3167 = vpop.permute.xlu0 %3166
        %v3170 = vadd.f32 %v3098, %v3165
        %v3171 = vadd.f32 %v3099, %v3167
        %s3172 = sld [smem:[#allocation6 + $0x2b]]
        %v3173 = vstv %s3172
        %v3174 = vmul.f32 %v3173, %v2708
        %v3175 = vmul.f32 %v3173, %v2709
        %v3176 = vmul.f32 %v3173, %v2710
        %v3180 = vrot.slane %v3174, 2
        %v3181 = vrot.slane %v3175, 2
        %v3182 = vsel %vm580, %v3180, %v3181
        %v3183 = vrot.slane %v3176, 2
        %v3184 = vsel %vm580, %v3181, %v3183
        %3185 = vrot.lane.b32.xlu0 %v3182, 127
        %v3186 = vpop.permute.xlu0 %3185
        %3187 = vrot.lane.b32.xlu0 %v3184, 127
        %v3188 = vpop.permute.xlu0 %3187
        %v3191 = vadd.f32 %v3115, %v3186
        %v3192 = vadd.f32 %v3116, %v3188
        %s3193 = sld [smem:[#allocation6 + $0x4f]]
        %v3194 = vstv %s3193
        %v3195 = vmul.f32 %v3194, %v2708
        %v3196 = vmul.f32 %v3194, %v2709
        %v3197 = vmul.f32 %v3194, %v2710
        %v3201 = vrot.slane %v3195, 2
        %v3202 = vrot.slane %v3196, 2
        %v3203 = vsel %vm580, %v3201, %v3202
        %v3204 = vrot.slane %v3197, 2
        %v3205 = vsel %vm580, %v3202, %v3204
        %3206 = vrot.lane.b32.xlu0 %v3203, 127
        %v3207 = vpop.permute.xlu0 %3206
        %3208 = vrot.lane.b32.xlu0 %v3205, 127
        %v3209 = vpop.permute.xlu0 %3208
        %v3212 = vadd.f32 %v3132, %v3207
        %v3213 = vadd.f32 %v3133, %v3209
        %s3214 = sld [smem:[#allocation6 + $0x73]]
        %v3215 = vstv %s3214
        %v3216 = vmul.f32 %v3215, %v2708
        %v3217 = vmul.f32 %v3215, %v2709
        %v3218 = vmul.f32 %v3215, %v2710
        %v3222 = vrot.slane %v3216, 2
        %v3223 = vrot.slane %v3217, 2
        %v3224 = vsel %vm580, %v3222, %v3223
        %v3225 = vrot.slane %v3218, 2
        %v3226 = vsel %vm580, %v3223, %v3225
        %3227 = vrot.lane.b32.xlu0 %v3224, 127
        %v3228 = vpop.permute.xlu0 %3227
        %3229 = vrot.lane.b32.xlu0 %v3226, 127
        %v3230 = vpop.permute.xlu0 %3229
        %v3233 = vadd.f32 %v3149, %v3228
        %v3234 = vadd.f32 %v3150, %v3230
        %s3235 = sld [smem:[#allocation6 + $0x8]]
        %v3236 = vstv %s3235
        %v3237 = vmul.f32 %v3236, %v2708
        %v3238 = vmul.f32 %v3236, %v2709
        %v3239 = vmul.f32 %v3236, %v2710
        %v3243 = vrot.slane %v3237, 2
        %v3244 = vrot.slane %v3238, 2
        %v3245 = vsel %vm580, %v3243, %v3244
        %v3246 = vrot.slane %v3239, 2
        %v3247 = vsel %vm580, %v3244, %v3246
        %3248 = vrot.lane.b32.xlu0 %v3245, 126
        %v3249 = vpop.permute.xlu0 %3248
        %3250 = vrot.lane.b32.xlu0 %v3247, 126
        %v3251 = vpop.permute.xlu0 %3250
        %v3254 = vadd.f32 %v3170, %v3249
        %v3255 = vadd.f32 %v3171, %v3251
        %s3256 = sld [smem:[#allocation6 + $0x2c]]
        %v3257 = vstv %s3256
        %v3258 = vmul.f32 %v3257, %v2708
        %v3259 = vmul.f32 %v3257, %v2709
        %v3260 = vmul.f32 %v3257, %v2710
        %v3264 = vrot.slane %v3258, 2
        %v3265 = vrot.slane %v3259, 2
        %v3266 = vsel %vm580, %v3264, %v3265
        %v3267 = vrot.slane %v3260, 2
        %v3268 = vsel %vm580, %v3265, %v3267
        %3269 = vrot.lane.b32.xlu0 %v3266, 126
        %v3270 = vpop.permute.xlu0 %3269
        %3271 = vrot.lane.b32.xlu0 %v3268, 126
        %v3272 = vpop.permute.xlu0 %3271
        %v3275 = vadd.f32 %v3191, %v3270
        %v3276 = vadd.f32 %v3192, %v3272
        %s3277 = sld [smem:[#allocation6 + $0x50]]
        %v3278 = vstv %s3277
        %v3279 = vmul.f32 %v3278, %v2708
        %v3280 = vmul.f32 %v3278, %v2709
        %v3281 = vmul.f32 %v3278, %v2710
        %v3285 = vrot.slane %v3279, 2
        %v3286 = vrot.slane %v3280, 2
        %v3287 = vsel %vm580, %v3285, %v3286
        %v3288 = vrot.slane %v3281, 2
        %v3289 = vsel %vm580, %v3286, %v3288
        %3290 = vrot.lane.b32.xlu0 %v3287, 126
        %v3291 = vpop.permute.xlu0 %3290
        %3292 = vrot.lane.b32.xlu0 %v3289, 126
        %v3293 = vpop.permute.xlu0 %3292
        %v3296 = vadd.f32 %v3212, %v3291
        %v3297 = vadd.f32 %v3213, %v3293
        %s3298 = sld [smem:[#allocation6 + $0x74]]
        %v3299 = vstv %s3298
        %v3300 = vmul.f32 %v3299, %v2708
        %v3301 = vmul.f32 %v3299, %v2709
        %v3302 = vmul.f32 %v3299, %v2710
        %v3306 = vrot.slane %v3300, 2
        %v3307 = vrot.slane %v3301, 2
        %v3308 = vsel %vm580, %v3306, %v3307
        %v3309 = vrot.slane %v3302, 2
        %v3310 = vsel %vm580, %v3307, %v3309
        %3311 = vrot.lane.b32.xlu0 %v3308, 126
        %v3312 = vpop.permute.xlu0 %3311
        %3313 = vrot.lane.b32.xlu0 %v3310, 126
        %v3314 = vpop.permute.xlu0 %3313
        %v3317 = vadd.f32 %v3233, %v3312
        %v3318 = vadd.f32 %v3234, %v3314
        %s3319 = scalar_lea.vmem [#allocation2], 24
        %v3320 = vld [vmem:[%s3319] sm:$0xff]
        %v3321 = vld [vmem:[%s3319 + $0x8] sm:$0xff]
        %v3322 = vld [vmem:[%s3319 + $0x10] sm:$0x3]
        %s3323 = sld [smem:[#allocation6 + $0x9]]
        %v3324 = vstv %s3323
        %v3325 = vmul.f32 %v3324, %v3320
        %v3326 = vmul.f32 %v3324, %v3321
        %v3327 = vadd.f32 %v3254, %v3325
        %v3328 = vadd.f32 %v3255, %v3326
        %s3329 = sld [smem:[#allocation6 + $0x2d]]
        %v3330 = vstv %s3329
        %v3331 = vmul.f32 %v3330, %v3320
        %v3332 = vmul.f32 %v3330, %v3321
        %v3333 = vadd.f32 %v3275, %v3331
        %v3334 = vadd.f32 %v3276, %v3332
        %s3335 = sld [smem:[#allocation6 + $0x51]]
        %v3336 = vstv %s3335
        %v3337 = vmul.f32 %v3336, %v3320
        %v3338 = vmul.f32 %v3336, %v3321
        %v3339 = vadd.f32 %v3296, %v3337
        %v3340 = vadd.f32 %v3297, %v3338
        %s3341 = sld [smem:[#allocation6 + $0x75]]
        %v3342 = vstv %s3341
        %v3343 = vmul.f32 %v3342, %v3320
        %v3344 = vmul.f32 %v3342, %v3321
        %v3345 = vadd.f32 %v3317, %v3343
        %v3346 = vadd.f32 %v3318, %v3344
        %s3347 = sld [smem:[#allocation6 + $0xa]]
        %v3348 = vstv %s3347
        %v3349 = vmul.f32 %v3348, %v3320
        %v3350 = vmul.f32 %v3348, %v3321
        %3353 = vrot.lane.b32.xlu0 %v3349, 127
        %v3354 = vpop.permute.xlu0 %3353
        %3355 = vrot.lane.b32.xlu0 %v3350, 127
        %v3356 = vpop.permute.xlu0 %3355
        %v3359 = vadd.f32 %v3327, %v3354
        %v3360 = vadd.f32 %v3328, %v3356
        %s3361 = sld [smem:[#allocation6 + $0x2e]]
        %v3362 = vstv %s3361
        %v3363 = vmul.f32 %v3362, %v3320
        %v3364 = vmul.f32 %v3362, %v3321
        %3367 = vrot.lane.b32.xlu0 %v3363, 127
        %v3368 = vpop.permute.xlu0 %3367
        %3369 = vrot.lane.b32.xlu0 %v3364, 127
        %v3370 = vpop.permute.xlu0 %3369
        %v3373 = vadd.f32 %v3333, %v3368
        %v3374 = vadd.f32 %v3334, %v3370
        %s3375 = sld [smem:[#allocation6 + $0x52]]
        %v3376 = vstv %s3375
        %v3377 = vmul.f32 %v3376, %v3320
        %v3378 = vmul.f32 %v3376, %v3321
        %3381 = vrot.lane.b32.xlu0 %v3377, 127
        %v3382 = vpop.permute.xlu0 %3381
        %3383 = vrot.lane.b32.xlu0 %v3378, 127
        %v3384 = vpop.permute.xlu0 %3383
        %v3387 = vadd.f32 %v3339, %v3382
        %v3388 = vadd.f32 %v3340, %v3384
        %s3389 = sld [smem:[#allocation6 + $0x76]]
        %v3390 = vstv %s3389
        %v3391 = vmul.f32 %v3390, %v3320
        %v3392 = vmul.f32 %v3390, %v3321
        %3395 = vrot.lane.b32.xlu0 %v3391, 127
        %v3396 = vpop.permute.xlu0 %3395
        %3397 = vrot.lane.b32.xlu0 %v3392, 127
        %v3398 = vpop.permute.xlu0 %3397
        %v3401 = vadd.f32 %v3345, %v3396
        %v3402 = vadd.f32 %v3346, %v3398
        %s3403 = sld [smem:[#allocation6 + $0xb]]
        %v3404 = vstv %s3403
        %v3405 = vmul.f32 %v3404, %v3320
        %v3406 = vmul.f32 %v3404, %v3321
        %3409 = vrot.lane.b32.xlu0 %v3405, 126
        %v3410 = vpop.permute.xlu0 %3409
        %3411 = vrot.lane.b32.xlu0 %v3406, 126
        %v3412 = vpop.permute.xlu0 %3411
        %v3415 = vadd.f32 %v3359, %v3410
        %v3416 = vadd.f32 %v3360, %v3412
        %s3417 = sld [smem:[#allocation6 + $0x2f]]
        %v3418 = vstv %s3417
        %v3419 = vmul.f32 %v3418, %v3320
        %v3420 = vmul.f32 %v3418, %v3321
        %3423 = vrot.lane.b32.xlu0 %v3419, 126
        %v3424 = vpop.permute.xlu0 %3423
        %3425 = vrot.lane.b32.xlu0 %v3420, 126
        %v3426 = vpop.permute.xlu0 %3425
        %v3429 = vadd.f32 %v3373, %v3424
        %v3430 = vadd.f32 %v3374, %v3426
        %s3431 = sld [smem:[#allocation6 + $0x53]]
        %v3432 = vstv %s3431
        %v3433 = vmul.f32 %v3432, %v3320
        %v3434 = vmul.f32 %v3432, %v3321
        %3437 = vrot.lane.b32.xlu0 %v3433, 126
        %v3438 = vpop.permute.xlu0 %3437
        %3439 = vrot.lane.b32.xlu0 %v3434, 126
        %v3440 = vpop.permute.xlu0 %3439
        %v3443 = vadd.f32 %v3387, %v3438
        %v3444 = vadd.f32 %v3388, %v3440
        %s3445 = sld [smem:[#allocation6 + $0x77]]
        %v3446 = vstv %s3445
        %v3447 = vmul.f32 %v3446, %v3320
        %v3448 = vmul.f32 %v3446, %v3321
        %3451 = vrot.lane.b32.xlu0 %v3447, 126
        %v3452 = vpop.permute.xlu0 %3451
        %3453 = vrot.lane.b32.xlu0 %v3448, 126
        %v3454 = vpop.permute.xlu0 %3453
        %v3457 = vadd.f32 %v3401, %v3452
        %v3458 = vadd.f32 %v3402, %v3454
        %s3459 = sld [smem:[#allocation6 + $0xc]]
        %v3460 = vstv %s3459
        %v3461 = vmul.f32 %v3460, %v3320
        %v3462 = vmul.f32 %v3460, %v3321
        %v3463 = vmul.f32 %v3460, %v3322
        %v3467 = vrot.slane %v3461, 1
        %v3468 = vrot.slane %v3462, 1
        %v3469 = vsel %vm343, %v3467, %v3468
        %v3470 = vrot.slane %v3463, 1
        %v3471 = vsel %vm343, %v3468, %v3470
        %v3474 = vadd.f32 %v3415, %v3469
        %v3475 = vadd.f32 %v3416, %v3471
        %s3476 = sld [smem:[#allocation6 + $0x30]]
        %v3477 = vstv %s3476
        %v3478 = vmul.f32 %v3477, %v3320
        %v3479 = vmul.f32 %v3477, %v3321
        %v3480 = vmul.f32 %v3477, %v3322
        %v3484 = vrot.slane %v3478, 1
        %v3485 = vrot.slane %v3479, 1
        %v3486 = vsel %vm343, %v3484, %v3485
        %v3487 = vrot.slane %v3480, 1
        %v3488 = vsel %vm343, %v3485, %v3487
        %v3491 = vadd.f32 %v3429, %v3486
        %v3492 = vadd.f32 %v3430, %v3488
        %s3493 = sld [smem:[#allocation6 + $0x54]]
        %v3494 = vstv %s3493
        %v3495 = vmul.f32 %v3494, %v3320
        %v3496 = vmul.f32 %v3494, %v3321
        %v3497 = vmul.f32 %v3494, %v3322
        %v3501 = vrot.slane %v3495, 1
        %v3502 = vrot.slane %v3496, 1
        %v3503 = vsel %vm343, %v3501, %v3502
        %v3504 = vrot.slane %v3497, 1
        %v3505 = vsel %vm343, %v3502, %v3504
        %v3508 = vadd.f32 %v3443, %v3503
        %v3509 = vadd.f32 %v3444, %v3505
        %s3510 = sld [smem:[#allocation6 + $0x78]]
        %v3511 = vstv %s3510
        %v3512 = vmul.f32 %v3511, %v3320
        %v3513 = vmul.f32 %v3511, %v3321
        %v3514 = vmul.f32 %v3511, %v3322
        %v3518 = vrot.slane %v3512, 1
        %v3519 = vrot.slane %v3513, 1
        %v3520 = vsel %vm343, %v3518, %v3519
        %v3521 = vrot.slane %v3514, 1
        %v3522 = vsel %vm343, %v3519, %v3521
        %v3525 = vadd.f32 %v3457, %v3520
        %v3526 = vadd.f32 %v3458, %v3522
        %s3527 = sld [smem:[#allocation6 + $0xd]]
        %v3528 = vstv %s3527
        %v3529 = vmul.f32 %v3528, %v3320
        %v3530 = vmul.f32 %v3528, %v3321
        %v3531 = vmul.f32 %v3528, %v3322
        %v3535 = vrot.slane %v3529, 1
        %v3536 = vrot.slane %v3530, 1
        %v3537 = vsel %vm343, %v3535, %v3536
        %v3538 = vrot.slane %v3531, 1
        %v3539 = vsel %vm343, %v3536, %v3538
        %3540 = vrot.lane.b32.xlu0 %v3537, 127
        %v3541 = vpop.permute.xlu0 %3540
        %3542 = vrot.lane.b32.xlu0 %v3539, 127
        %v3543 = vpop.permute.xlu0 %3542
        %v3546 = vadd.f32 %v3474, %v3541
        %v3547 = vadd.f32 %v3475, %v3543
        %s3548 = sld [smem:[#allocation6 + $0x31]]
        %v3549 = vstv %s3548
        %v3550 = vmul.f32 %v3549, %v3320
        %v3551 = vmul.f32 %v3549, %v3321
        %v3552 = vmul.f32 %v3549, %v3322
        %v3556 = vrot.slane %v3550, 1
        %v3557 = vrot.slane %v3551, 1
        %v3558 = vsel %vm343, %v3556, %v3557
        %v3559 = vrot.slane %v3552, 1
        %v3560 = vsel %vm343, %v3557, %v3559
        %3561 = vrot.lane.b32.xlu0 %v3558, 127
        %v3562 = vpop.permute.xlu0 %3561
        %3563 = vrot.lane.b32.xlu0 %v3560, 127
        %v3564 = vpop.permute.xlu0 %3563
        %v3567 = vadd.f32 %v3491, %v3562
        %v3568 = vadd.f32 %v3492, %v3564
        %s3569 = sld [smem:[#allocation6 + $0x55]]
        %v3570 = vstv %s3569
        %v3571 = vmul.f32 %v3570, %v3320
        %v3572 = vmul.f32 %v3570, %v3321
        %v3573 = vmul.f32 %v3570, %v3322
        %v3577 = vrot.slane %v3571, 1
        %v3578 = vrot.slane %v3572, 1
        %v3579 = vsel %vm343, %v3577, %v3578
        %v3580 = vrot.slane %v3573, 1
        %v3581 = vsel %vm343, %v3578, %v3580
        %3582 = vrot.lane.b32.xlu0 %v3579, 127
        %v3583 = vpop.permute.xlu0 %3582
        %3584 = vrot.lane.b32.xlu0 %v3581, 127
        %v3585 = vpop.permute.xlu0 %3584
        %v3588 = vadd.f32 %v3508, %v3583
        %v3589 = vadd.f32 %v3509, %v3585
        %s3590 = sld [smem:[#allocation6 + $0x79]]
        %v3591 = vstv %s3590
        %v3592 = vmul.f32 %v3591, %v3320
        %v3593 = vmul.f32 %v3591, %v3321
        %v3594 = vmul.f32 %v3591, %v3322
        %v3598 = vrot.slane %v3592, 1
        %v3599 = vrot.slane %v3593, 1
        %v3600 = vsel %vm343, %v3598, %v3599
        %v3601 = vrot.slane %v3594, 1
        %v3602 = vsel %vm343, %v3599, %v3601
        %3603 = vrot.lane.b32.xlu0 %v3600, 127
        %v3604 = vpop.permute.xlu0 %3603
        %3605 = vrot.lane.b32.xlu0 %v3602, 127
        %v3606 = vpop.permute.xlu0 %3605
        %v3609 = vadd.f32 %v3525, %v3604
        %v3610 = vadd.f32 %v3526, %v3606
        %s3611 = sld [smem:[#allocation6 + $0xe]]
        %v3612 = vstv %s3611
        %v3613 = vmul.f32 %v3612, %v3320
        %v3614 = vmul.f32 %v3612, %v3321
        %v3615 = vmul.f32 %v3612, %v3322
        %v3619 = vrot.slane %v3613, 1
        %v3620 = vrot.slane %v3614, 1
        %v3621 = vsel %vm343, %v3619, %v3620
        %v3622 = vrot.slane %v3615, 1
        %v3623 = vsel %vm343, %v3620, %v3622
        %3624 = vrot.lane.b32.xlu0 %v3621, 126
        %v3625 = vpop.permute.xlu0 %3624
        %3626 = vrot.lane.b32.xlu0 %v3623, 126
        %v3627 = vpop.permute.xlu0 %3626
        %v3630 = vadd.f32 %v3546, %v3625
        %v3631 = vadd.f32 %v3547, %v3627
        %s3632 = sld [smem:[#allocation6 + $0x32]]
        %v3633 = vstv %s3632
        %v3634 = vmul.f32 %v3633, %v3320
        %v3635 = vmul.f32 %v3633, %v3321
        %v3636 = vmul.f32 %v3633, %v3322
        %v3640 = vrot.slane %v3634, 1
        %v3641 = vrot.slane %v3635, 1
        %v3642 = vsel %vm343, %v3640, %v3641
        %v3643 = vrot.slane %v3636, 1
        %v3644 = vsel %vm343, %v3641, %v3643
        %3645 = vrot.lane.b32.xlu0 %v3642, 126
        %v3646 = vpop.permute.xlu0 %3645
        %3647 = vrot.lane.b32.xlu0 %v3644, 126
        %v3648 = vpop.permute.xlu0 %3647
        %v3651 = vadd.f32 %v3567, %v3646
        %v3652 = vadd.f32 %v3568, %v3648
        %s3653 = sld [smem:[#allocation6 + $0x56]]
        %v3654 = vstv %s3653
        %v3655 = vmul.f32 %v3654, %v3320
        %v3656 = vmul.f32 %v3654, %v3321
        %v3657 = vmul.f32 %v3654, %v3322
        %v3661 = vrot.slane %v3655, 1
        %v3662 = vrot.slane %v3656, 1
        %v3663 = vsel %vm343, %v3661, %v3662
        %v3664 = vrot.slane %v3657, 1
        %v3665 = vsel %vm343, %v3662, %v3664
        %3666 = vrot.lane.b32.xlu0 %v3663, 126
        %v3667 = vpop.permute.xlu0 %3666
        %3668 = vrot.lane.b32.xlu0 %v3665, 126
        %v3669 = vpop.permute.xlu0 %3668
        %v3672 = vadd.f32 %v3588, %v3667
        %v3673 = vadd.f32 %v3589, %v3669
        %s3674 = sld [smem:[#allocation6 + $0x7a]]
        %v3675 = vstv %s3674
        %v3676 = vmul.f32 %v3675, %v3320
        %v3677 = vmul.f32 %v3675, %v3321
        %v3678 = vmul.f32 %v3675, %v3322
        %v3682 = vrot.slane %v3676, 1
        %v3683 = vrot.slane %v3677, 1
        %v3684 = vsel %vm343, %v3682, %v3683
        %v3685 = vrot.slane %v3678, 1
        %v3686 = vsel %vm343, %v3683, %v3685
        %3687 = vrot.lane.b32.xlu0 %v3684, 126
        %v3688 = vpop.permute.xlu0 %3687
        %3689 = vrot.lane.b32.xlu0 %v3686, 126
        %v3690 = vpop.permute.xlu0 %3689
        %v3693 = vadd.f32 %v3609, %v3688
        %v3694 = vadd.f32 %v3610, %v3690
        %s3695 = sld [smem:[#allocation6 + $0xf]]
        %v3696 = vstv %s3695
        %v3697 = vmul.f32 %v3696, %v3320
        %v3698 = vmul.f32 %v3696, %v3321
        %v3699 = vmul.f32 %v3696, %v3322
        %v3703 = vrot.slane %v3697, 2
        %v3704 = vrot.slane %v3698, 2
        %v3705 = vsel %vm580, %v3703, %v3704
        %v3706 = vrot.slane %v3699, 2
        %v3707 = vsel %vm580, %v3704, %v3706
        %v3710 = vadd.f32 %v3630, %v3705
        %v3711 = vadd.f32 %v3631, %v3707
        %s3712 = sld [smem:[#allocation6 + $0x33]]
        %v3713 = vstv %s3712
        %v3714 = vmul.f32 %v3713, %v3320
        %v3715 = vmul.f32 %v3713, %v3321
        %v3716 = vmul.f32 %v3713, %v3322
        %v3720 = vrot.slane %v3714, 2
        %v3721 = vrot.slane %v3715, 2
        %v3722 = vsel %vm580, %v3720, %v3721
        %v3723 = vrot.slane %v3716, 2
        %v3724 = vsel %vm580, %v3721, %v3723
        %v3727 = vadd.f32 %v3651, %v3722
        %v3728 = vadd.f32 %v3652, %v3724
        %s3729 = sld [smem:[#allocation6 + $0x57]]
        %v3730 = vstv %s3729
        %v3731 = vmul.f32 %v3730, %v3320
        %v3732 = vmul.f32 %v3730, %v3321
        %v3733 = vmul.f32 %v3730, %v3322
        %v3737 = vrot.slane %v3731, 2
        %v3738 = vrot.slane %v3732, 2
        %v3739 = vsel %vm580, %v3737, %v3738
        %v3740 = vrot.slane %v3733, 2
        %v3741 = vsel %vm580, %v3738, %v3740
        %v3744 = vadd.f32 %v3672, %v3739
        %v3745 = vadd.f32 %v3673, %v3741
        %s3746 = sld [smem:[#allocation6 + $0x7b]]
        %v3747 = vstv %s3746
        %v3748 = vmul.f32 %v3747, %v3320
        %v3749 = vmul.f32 %v3747, %v3321
        %v3750 = vmul.f32 %v3747, %v3322
        %v3754 = vrot.slane %v3748, 2
        %v3755 = vrot.slane %v3749, 2
        %v3756 = vsel %vm580, %v3754, %v3755
        %v3757 = vrot.slane %v3750, 2
        %v3758 = vsel %vm580, %v3755, %v3757
        %v3761 = vadd.f32 %v3693, %v3756
        %v3762 = vadd.f32 %v3694, %v3758
        %s3763 = sld [smem:[#allocation6 + $0x10]]
        %v3764 = vstv %s3763
        %v3765 = vmul.f32 %v3764, %v3320
        %v3766 = vmul.f32 %v3764, %v3321
        %v3767 = vmul.f32 %v3764, %v3322
        %v3771 = vrot.slane %v3765, 2
        %v3772 = vrot.slane %v3766, 2
        %v3773 = vsel %vm580, %v3771, %v3772
        %v3774 = vrot.slane %v3767, 2
        %v3775 = vsel %vm580, %v3772, %v3774
        %3776 = vrot.lane.b32.xlu0 %v3773, 127
        %v3777 = vpop.permute.xlu0 %3776
        %3778 = vrot.lane.b32.xlu0 %v3775, 127
        %v3779 = vpop.permute.xlu0 %3778
        %v3782 = vadd.f32 %v3710, %v3777
        %v3783 = vadd.f32 %v3711, %v3779
        %s3784 = sld [smem:[#allocation6 + $0x34]]
        %v3785 = vstv %s3784
        %v3786 = vmul.f32 %v3785, %v3320
        %v3787 = vmul.f32 %v3785, %v3321
        %v3788 = vmul.f32 %v3785, %v3322
        %v3792 = vrot.slane %v3786, 2
        %v3793 = vrot.slane %v3787, 2
        %v3794 = vsel %vm580, %v3792, %v3793
        %v3795 = vrot.slane %v3788, 2
        %v3796 = vsel %vm580, %v3793, %v3795
        %3797 = vrot.lane.b32.xlu0 %v3794, 127
        %v3798 = vpop.permute.xlu0 %3797
        %3799 = vrot.lane.b32.xlu0 %v3796, 127
        %v3800 = vpop.permute.xlu0 %3799
        %v3803 = vadd.f32 %v3727, %v3798
        %v3804 = vadd.f32 %v3728, %v3800
        %s3805 = sld [smem:[#allocation6 + $0x58]]
        %v3806 = vstv %s3805
        %v3807 = vmul.f32 %v3806, %v3320
        %v3808 = vmul.f32 %v3806, %v3321
        %v3809 = vmul.f32 %v3806, %v3322
        %v3813 = vrot.slane %v3807, 2
        %v3814 = vrot.slane %v3808, 2
        %v3815 = vsel %vm580, %v3813, %v3814
        %v3816 = vrot.slane %v3809, 2
        %v3817 = vsel %vm580, %v3814, %v3816
        %3818 = vrot.lane.b32.xlu0 %v3815, 127
        %v3819 = vpop.permute.xlu0 %3818
        %3820 = vrot.lane.b32.xlu0 %v3817, 127
        %v3821 = vpop.permute.xlu0 %3820
        %v3824 = vadd.f32 %v3744, %v3819
        %v3825 = vadd.f32 %v3745, %v3821
        %s3826 = sld [smem:[#allocation6 + $0x7c]]
        %v3827 = vstv %s3826
        %v3828 = vmul.f32 %v3827, %v3320
        %v3829 = vmul.f32 %v3827, %v3321
        %v3830 = vmul.f32 %v3827, %v3322
        %v3834 = vrot.slane %v3828, 2
        %v3835 = vrot.slane %v3829, 2
        %v3836 = vsel %vm580, %v3834, %v3835
        %v3837 = vrot.slane %v3830, 2
        %v3838 = vsel %vm580, %v3835, %v3837
        %3839 = vrot.lane.b32.xlu0 %v3836, 127
        %v3840 = vpop.permute.xlu0 %3839
        %3841 = vrot.lane.b32.xlu0 %v3838, 127
        %v3842 = vpop.permute.xlu0 %3841
        %v3845 = vadd.f32 %v3761, %v3840
        %v3846 = vadd.f32 %v3762, %v3842
        %s3847 = sld [smem:[#allocation6 + $0x11]]
        %v3848 = vstv %s3847
        %v3849 = vmul.f32 %v3848, %v3320
        %v3850 = vmul.f32 %v3848, %v3321
        %v3851 = vmul.f32 %v3848, %v3322
        %v3855 = vrot.slane %v3849, 2
        %v3856 = vrot.slane %v3850, 2
        %v3857 = vsel %vm580, %v3855, %v3856
        %v3858 = vrot.slane %v3851, 2
        %v3859 = vsel %vm580, %v3856, %v3858
        %3860 = vrot.lane.b32.xlu0 %v3857, 126
        %v3861 = vpop.permute.xlu0 %3860
        %3862 = vrot.lane.b32.xlu0 %v3859, 126
        %v3863 = vpop.permute.xlu0 %3862
        %v3866 = vadd.f32 %v3782, %v3861
        %v3867 = vadd.f32 %v3783, %v3863
        %s3868 = sld [smem:[#allocation6 + $0x35]]
        %v3869 = vstv %s3868
        %v3870 = vmul.f32 %v3869, %v3320
        %v3871 = vmul.f32 %v3869, %v3321
        %v3872 = vmul.f32 %v3869, %v3322
        %v3876 = vrot.slane %v3870, 2
        %v3877 = vrot.slane %v3871, 2
        %v3878 = vsel %vm580, %v3876, %v3877
        %v3879 = vrot.slane %v3872, 2
        %v3880 = vsel %vm580, %v3877, %v3879
        %3881 = vrot.lane.b32.xlu0 %v3878, 126
        %v3882 = vpop.permute.xlu0 %3881
        %3883 = vrot.lane.b32.xlu0 %v3880, 126
        %v3884 = vpop.permute.xlu0 %3883
        %v3887 = vadd.f32 %v3803, %v3882
        %v3888 = vadd.f32 %v3804, %v3884
        %s3889 = sld [smem:[#allocation6 + $0x59]]
        %v3890 = vstv %s3889
        %v3891 = vmul.f32 %v3890, %v3320
        %v3892 = vmul.f32 %v3890, %v3321
        %v3893 = vmul.f32 %v3890, %v3322
        %v3897 = vrot.slane %v3891, 2
        %v3898 = vrot.slane %v3892, 2
        %v3899 = vsel %vm580, %v3897, %v3898
        %v3900 = vrot.slane %v3893, 2
        %v3901 = vsel %vm580, %v3898, %v3900
        %3902 = vrot.lane.b32.xlu0 %v3899, 126
        %v3903 = vpop.permute.xlu0 %3902
        %3904 = vrot.lane.b32.xlu0 %v3901, 126
        %v3905 = vpop.permute.xlu0 %3904
        %v3908 = vadd.f32 %v3824, %v3903
        %v3909 = vadd.f32 %v3825, %v3905
        %s3910 = sld [smem:[#allocation6 + $0x7d]]
        %v3911 = vstv %s3910
        %v3912 = vmul.f32 %v3911, %v3320
        %v3913 = vmul.f32 %v3911, %v3321
        %v3914 = vmul.f32 %v3911, %v3322
        %v3918 = vrot.slane %v3912, 2
        %v3919 = vrot.slane %v3913, 2
        %v3920 = vsel %vm580, %v3918, %v3919
        %v3921 = vrot.slane %v3914, 2
        %v3922 = vsel %vm580, %v3919, %v3921
        %3923 = vrot.lane.b32.xlu0 %v3920, 126
        %v3924 = vpop.permute.xlu0 %3923
        %3925 = vrot.lane.b32.xlu0 %v3922, 126
        %v3926 = vpop.permute.xlu0 %3925
        %v3929 = vadd.f32 %v3845, %v3924
        %v3930 = vadd.f32 %v3846, %v3926
        %s3931 = scalar_lea.vmem [#allocation2], 48
        %v3932 = vld [vmem:[%s3931] sm:$0xff]
        %v3933 = vld [vmem:[%s3931 + $0x8] sm:$0xff]
        %v3934 = vld [vmem:[%s3931 + $0x10] sm:$0x3]
        %s3935 = sld [smem:[#allocation6 + $0x12]]
        %v3936 = vstv %s3935
        %v3937 = vmul.f32 %v3936, %v3932
        %v3938 = vmul.f32 %v3936, %v3933
        %v3939 = vadd.f32 %v3866, %v3937
        %v3940 = vadd.f32 %v3867, %v3938
        %s3941 = sld [smem:[#allocation6 + $0x36]]
        %v3942 = vstv %s3941
        %v3943 = vmul.f32 %v3942, %v3932
        %v3944 = vmul.f32 %v3942, %v3933
        %v3945 = vadd.f32 %v3887, %v3943
        %v3946 = vadd.f32 %v3888, %v3944
        %s3947 = sld [smem:[#allocation6 + $0x5a]]
        %v3948 = vstv %s3947
        %v3949 = vmul.f32 %v3948, %v3932
        %v3950 = vmul.f32 %v3948, %v3933
        %v3951 = vadd.f32 %v3908, %v3949
        %v3952 = vadd.f32 %v3909, %v3950
        %s3953 = sld [smem:[#allocation6 + $0x7e]]
        %v3954 = vstv %s3953
        %v3955 = vmul.f32 %v3954, %v3932
        %v3956 = vmul.f32 %v3954, %v3933
        %v3957 = vadd.f32 %v3929, %v3955
        %v3958 = vadd.f32 %v3930, %v3956
        %s3959 = sld [smem:[#allocation6 + $0x13]]
        %v3960 = vstv %s3959
        %v3961 = vmul.f32 %v3960, %v3932
        %v3962 = vmul.f32 %v3960, %v3933
        %3965 = vrot.lane.b32.xlu0 %v3961, 127
        %v3966 = vpop.permute.xlu0 %3965
        %3967 = vrot.lane.b32.xlu0 %v3962, 127
        %v3968 = vpop.permute.xlu0 %3967
        %v3971 = vadd.f32 %v3939, %v3966
        %v3972 = vadd.f32 %v3940, %v3968
        %s3973 = sld [smem:[#allocation6 + $0x37]]
        %v3974 = vstv %s3973
        %v3975 = vmul.f32 %v3974, %v3932
        %v3976 = vmul.f32 %v3974, %v3933
        %3979 = vrot.lane.b32.xlu0 %v3975, 127
        %v3980 = vpop.permute.xlu0 %3979
        %3981 = vrot.lane.b32.xlu0 %v3976, 127
        %v3982 = vpop.permute.xlu0 %3981
        %v3985 = vadd.f32 %v3945, %v3980
        %v3986 = vadd.f32 %v3946, %v3982
        %s3987 = sld [smem:[#allocation6 + $0x5b]]
        %v3988 = vstv %s3987
        %v3989 = vmul.f32 %v3988, %v3932
        %v3990 = vmul.f32 %v3988, %v3933
        %3993 = vrot.lane.b32.xlu0 %v3989, 127
        %v3994 = vpop.permute.xlu0 %3993
        %3995 = vrot.lane.b32.xlu0 %v3990, 127
        %v3996 = vpop.permute.xlu0 %3995
        %v3999 = vadd.f32 %v3951, %v3994
        %v4000 = vadd.f32 %v3952, %v3996
        %s4001 = sld [smem:[#allocation6 + $0x7f]]
        %v4002 = vstv %s4001
        %v4003 = vmul.f32 %v4002, %v3932
        %v4004 = vmul.f32 %v4002, %v3933
        %4007 = vrot.lane.b32.xlu0 %v4003, 127
        %v4008 = vpop.permute.xlu0 %4007
        %4009 = vrot.lane.b32.xlu0 %v4004, 127
        %v4010 = vpop.permute.xlu0 %4009
        %v4013 = vadd.f32 %v3957, %v4008
        %v4014 = vadd.f32 %v3958, %v4010
        %s4015 = sld [smem:[#allocation6 + $0x14]]
        %v4016 = vstv %s4015
        %v4017 = vmul.f32 %v4016, %v3932
        %v4018 = vmul.f32 %v4016, %v3933
        %4021 = vrot.lane.b32.xlu0 %v4017, 126
        %v4022 = vpop.permute.xlu0 %4021
        %4023 = vrot.lane.b32.xlu0 %v4018, 126
        %v4024 = vpop.permute.xlu0 %4023
        %v4027 = vadd.f32 %v3971, %v4022
        %v4028 = vadd.f32 %v3972, %v4024
        %s4029 = sld [smem:[#allocation6 + $0x38]]
        %v4030 = vstv %s4029
        %v4031 = vmul.f32 %v4030, %v3932
        %v4032 = vmul.f32 %v4030, %v3933
        %4035 = vrot.lane.b32.xlu0 %v4031, 126
        %v4036 = vpop.permute.xlu0 %4035
        %4037 = vrot.lane.b32.xlu0 %v4032, 126
        %v4038 = vpop.permute.xlu0 %4037
        %v4041 = vadd.f32 %v3985, %v4036
        %v4042 = vadd.f32 %v3986, %v4038
        %s4043 = sld [smem:[#allocation6 + $0x5c]]
        %v4044 = vstv %s4043
        %v4045 = vmul.f32 %v4044, %v3932
        %v4046 = vmul.f32 %v4044, %v3933
        %4049 = vrot.lane.b32.xlu0 %v4045, 126
        %v4050 = vpop.permute.xlu0 %4049
        %4051 = vrot.lane.b32.xlu0 %v4046, 126
        %v4052 = vpop.permute.xlu0 %4051
        %v4055 = vadd.f32 %v3999, %v4050
        %v4056 = vadd.f32 %v4000, %v4052
        %s4057 = sld [smem:[#allocation6 + $0x80]]
        %v4058 = vstv %s4057
        %v4059 = vmul.f32 %v4058, %v3932
        %v4060 = vmul.f32 %v4058, %v3933
        %4063 = vrot.lane.b32.xlu0 %v4059, 126
        %v4064 = vpop.permute.xlu0 %4063
        %4065 = vrot.lane.b32.xlu0 %v4060, 126
        %v4066 = vpop.permute.xlu0 %4065
        %v4069 = vadd.f32 %v4013, %v4064
        %v4070 = vadd.f32 %v4014, %v4066
        %s4071 = sld [smem:[#allocation6 + $0x15]]
        %v4072 = vstv %s4071
        %v4073 = vmul.f32 %v4072, %v3932
        %v4074 = vmul.f32 %v4072, %v3933
        %v4075 = vmul.f32 %v4072, %v3934
        %v4079 = vrot.slane %v4073, 1
        %v4080 = vrot.slane %v4074, 1
        %v4081 = vsel %vm343, %v4079, %v4080
        %v4082 = vrot.slane %v4075, 1
        %v4083 = vsel %vm343, %v4080, %v4082
        %v4086 = vadd.f32 %v4027, %v4081
        %v4087 = vadd.f32 %v4028, %v4083
        %s4088 = sld [smem:[#allocation6 + $0x39]]
        %v4089 = vstv %s4088
        %v4090 = vmul.f32 %v4089, %v3932
        %v4091 = vmul.f32 %v4089, %v3933
        %v4092 = vmul.f32 %v4089, %v3934
        %v4096 = vrot.slane %v4090, 1
        %v4097 = vrot.slane %v4091, 1
        %v4098 = vsel %vm343, %v4096, %v4097
        %v4099 = vrot.slane %v4092, 1
        %v4100 = vsel %vm343, %v4097, %v4099
        %v4103 = vadd.f32 %v4041, %v4098
        %v4104 = vadd.f32 %v4042, %v4100
        %s4105 = sld [smem:[#allocation6 + $0x5d]]
        %v4106 = vstv %s4105
        %v4107 = vmul.f32 %v4106, %v3932
        %v4108 = vmul.f32 %v4106, %v3933
        %v4109 = vmul.f32 %v4106, %v3934
        %v4113 = vrot.slane %v4107, 1
        %v4114 = vrot.slane %v4108, 1
        %v4115 = vsel %vm343, %v4113, %v4114
        %v4116 = vrot.slane %v4109, 1
        %v4117 = vsel %vm343, %v4114, %v4116
        %v4120 = vadd.f32 %v4055, %v4115
        %v4121 = vadd.f32 %v4056, %v4117
        %s4122 = sld [smem:[#allocation6 + $0x81]]
        %v4123 = vstv %s4122
        %v4124 = vmul.f32 %v4123, %v3932
        %v4125 = vmul.f32 %v4123, %v3933
        %v4126 = vmul.f32 %v4123, %v3934
        %v4130 = vrot.slane %v4124, 1
        %v4131 = vrot.slane %v4125, 1
        %v4132 = vsel %vm343, %v4130, %v4131
        %v4133 = vrot.slane %v4126, 1
        %v4134 = vsel %vm343, %v4131, %v4133
        %v4137 = vadd.f32 %v4069, %v4132
        %v4138 = vadd.f32 %v4070, %v4134
        %s4139 = sld [smem:[#allocation6 + $0x16]]
        %v4140 = vstv %s4139
        %v4141 = vmul.f32 %v4140, %v3932
        %v4142 = vmul.f32 %v4140, %v3933
        %v4143 = vmul.f32 %v4140, %v3934
        %v4147 = vrot.slane %v4141, 1
        %v4148 = vrot.slane %v4142, 1
        %v4149 = vsel %vm343, %v4147, %v4148
        %v4150 = vrot.slane %v4143, 1
        %v4151 = vsel %vm343, %v4148, %v4150
        %4152 = vrot.lane.b32.xlu0 %v4149, 127
        %v4153 = vpop.permute.xlu0 %4152
        %4154 = vrot.lane.b32.xlu0 %v4151, 127
        %v4155 = vpop.permute.xlu0 %4154
        %v4158 = vadd.f32 %v4086, %v4153
        %v4159 = vadd.f32 %v4087, %v4155
        %s4160 = sld [smem:[#allocation6 + $0x3a]]
        %v4161 = vstv %s4160
        %v4162 = vmul.f32 %v4161, %v3932
        %v4163 = vmul.f32 %v4161, %v3933
        %v4164 = vmul.f32 %v4161, %v3934
        %v4168 = vrot.slane %v4162, 1
        %v4169 = vrot.slane %v4163, 1
        %v4170 = vsel %vm343, %v4168, %v4169
        %v4171 = vrot.slane %v4164, 1
        %v4172 = vsel %vm343, %v4169, %v4171
        %4173 = vrot.lane.b32.xlu0 %v4170, 127
        %v4174 = vpop.permute.xlu0 %4173
        %4175 = vrot.lane.b32.xlu0 %v4172, 127
        %v4176 = vpop.permute.xlu0 %4175
        %v4179 = vadd.f32 %v4103, %v4174
        %v4180 = vadd.f32 %v4104, %v4176
        %s4181 = sld [smem:[#allocation6 + $0x5e]]
        %v4182 = vstv %s4181
        %v4183 = vmul.f32 %v4182, %v3932
        %v4184 = vmul.f32 %v4182, %v3933
        %v4185 = vmul.f32 %v4182, %v3934
        %v4189 = vrot.slane %v4183, 1
        %v4190 = vrot.slane %v4184, 1
        %v4191 = vsel %vm343, %v4189, %v4190
        %v4192 = vrot.slane %v4185, 1
        %v4193 = vsel %vm343, %v4190, %v4192
        %4194 = vrot.lane.b32.xlu0 %v4191, 127
        %v4195 = vpop.permute.xlu0 %4194
        %4196 = vrot.lane.b32.xlu0 %v4193, 127
        %v4197 = vpop.permute.xlu0 %4196
        %v4200 = vadd.f32 %v4120, %v4195
        %v4201 = vadd.f32 %v4121, %v4197
        %s4202 = sld [smem:[#allocation6 + $0x82]]
        %v4203 = vstv %s4202
        %v4204 = vmul.f32 %v4203, %v3932
        %v4205 = vmul.f32 %v4203, %v3933
        %v4206 = vmul.f32 %v4203, %v3934
        %v4210 = vrot.slane %v4204, 1
        %v4211 = vrot.slane %v4205, 1
        %v4212 = vsel %vm343, %v4210, %v4211
        %v4213 = vrot.slane %v4206, 1
        %v4214 = vsel %vm343, %v4211, %v4213
        %4215 = vrot.lane.b32.xlu0 %v4212, 127
        %v4216 = vpop.permute.xlu0 %4215
        %4217 = vrot.lane.b32.xlu0 %v4214, 127
        %v4218 = vpop.permute.xlu0 %4217
        %v4221 = vadd.f32 %v4137, %v4216
        %v4222 = vadd.f32 %v4138, %v4218
        %s4223 = sld [smem:[#allocation6 + $0x17]]
        %v4224 = vstv %s4223
        %v4225 = vmul.f32 %v4224, %v3932
        %v4226 = vmul.f32 %v4224, %v3933
        %v4227 = vmul.f32 %v4224, %v3934
        %v4231 = vrot.slane %v4225, 1
        %v4232 = vrot.slane %v4226, 1
        %v4233 = vsel %vm343, %v4231, %v4232
        %v4234 = vrot.slane %v4227, 1
        %v4235 = vsel %vm343, %v4232, %v4234
        %4236 = vrot.lane.b32.xlu0 %v4233, 126
        %v4237 = vpop.permute.xlu0 %4236
        %4238 = vrot.lane.b32.xlu0 %v4235, 126
        %v4239 = vpop.permute.xlu0 %4238
        %v4242 = vadd.f32 %v4158, %v4237
        %v4243 = vadd.f32 %v4159, %v4239
        %s4244 = sld [smem:[#allocation6 + $0x3b]]
        %v4245 = vstv %s4244
        %v4246 = vmul.f32 %v4245, %v3932
        %v4247 = vmul.f32 %v4245, %v3933
        %v4248 = vmul.f32 %v4245, %v3934
        %v4252 = vrot.slane %v4246, 1
        %v4253 = vrot.slane %v4247, 1
        %v4254 = vsel %vm343, %v4252, %v4253
        %v4255 = vrot.slane %v4248, 1
        %v4256 = vsel %vm343, %v4253, %v4255
        %4257 = vrot.lane.b32.xlu0 %v4254, 126
        %v4258 = vpop.permute.xlu0 %4257
        %4259 = vrot.lane.b32.xlu0 %v4256, 126
        %v4260 = vpop.permute.xlu0 %4259
        %v4263 = vadd.f32 %v4179, %v4258
        %v4264 = vadd.f32 %v4180, %v4260
        %s4265 = sld [smem:[#allocation6 + $0x5f]]
        %v4266 = vstv %s4265
        %v4267 = vmul.f32 %v4266, %v3932
        %v4268 = vmul.f32 %v4266, %v3933
        %v4269 = vmul.f32 %v4266, %v3934
        %v4273 = vrot.slane %v4267, 1
        %v4274 = vrot.slane %v4268, 1
        %v4275 = vsel %vm343, %v4273, %v4274
        %v4276 = vrot.slane %v4269, 1
        %v4277 = vsel %vm343, %v4274, %v4276
        %4278 = vrot.lane.b32.xlu0 %v4275, 126
        %v4279 = vpop.permute.xlu0 %4278
        %4280 = vrot.lane.b32.xlu0 %v4277, 126
        %v4281 = vpop.permute.xlu0 %4280
        %v4284 = vadd.f32 %v4200, %v4279
        %v4285 = vadd.f32 %v4201, %v4281
        %s4286 = sld [smem:[#allocation6 + $0x83]]
        %v4287 = vstv %s4286
        %v4288 = vmul.f32 %v4287, %v3932
        %v4289 = vmul.f32 %v4287, %v3933
        %v4290 = vmul.f32 %v4287, %v3934
        %v4294 = vrot.slane %v4288, 1
        %v4295 = vrot.slane %v4289, 1
        %v4296 = vsel %vm343, %v4294, %v4295
        %v4297 = vrot.slane %v4290, 1
        %v4298 = vsel %vm343, %v4295, %v4297
        %4299 = vrot.lane.b32.xlu0 %v4296, 126
        %v4300 = vpop.permute.xlu0 %4299
        %4301 = vrot.lane.b32.xlu0 %v4298, 126
        %v4302 = vpop.permute.xlu0 %4301
        %v4305 = vadd.f32 %v4221, %v4300
        %v4306 = vadd.f32 %v4222, %v4302
        %s4307 = sld [smem:[#allocation6 + $0x18]]
        %v4308 = vstv %s4307
        %v4309 = vmul.f32 %v4308, %v3932
        %v4310 = vmul.f32 %v4308, %v3933
        %v4311 = vmul.f32 %v4308, %v3934
        %v4315 = vrot.slane %v4309, 2
        %v4316 = vrot.slane %v4310, 2
        %v4317 = vsel %vm580, %v4315, %v4316
        %v4318 = vrot.slane %v4311, 2
        %v4319 = vsel %vm580, %v4316, %v4318
        %v4322 = vadd.f32 %v4242, %v4317
        %v4323 = vadd.f32 %v4243, %v4319
        %s4324 = sld [smem:[#allocation6 + $0x3c]]
        %v4325 = vstv %s4324
        %v4326 = vmul.f32 %v4325, %v3932
        %v4327 = vmul.f32 %v4325, %v3933
        %v4328 = vmul.f32 %v4325, %v3934
        %v4332 = vrot.slane %v4326, 2
        %v4333 = vrot.slane %v4327, 2
        %v4334 = vsel %vm580, %v4332, %v4333
        %v4335 = vrot.slane %v4328, 2
        %v4336 = vsel %vm580, %v4333, %v4335
        %v4339 = vadd.f32 %v4263, %v4334
        %v4340 = vadd.f32 %v4264, %v4336
        %s4341 = sld [smem:[#allocation6 + $0x60]]
        %v4342 = vstv %s4341
        %v4343 = vmul.f32 %v4342, %v3932
        %v4344 = vmul.f32 %v4342, %v3933
        %v4345 = vmul.f32 %v4342, %v3934
        %v4349 = vrot.slane %v4343, 2
        %v4350 = vrot.slane %v4344, 2
        %v4351 = vsel %vm580, %v4349, %v4350
        %v4352 = vrot.slane %v4345, 2
        %v4353 = vsel %vm580, %v4350, %v4352
        %v4356 = vadd.f32 %v4284, %v4351
        %v4357 = vadd.f32 %v4285, %v4353
        %s4358 = sld [smem:[#allocation6 + $0x84]]
        %v4359 = vstv %s4358
        %v4360 = vmul.f32 %v4359, %v3932
        %v4361 = vmul.f32 %v4359, %v3933
        %v4362 = vmul.f32 %v4359, %v3934
        %v4366 = vrot.slane %v4360, 2
        %v4367 = vrot.slane %v4361, 2
        %v4368 = vsel %vm580, %v4366, %v4367
        %v4369 = vrot.slane %v4362, 2
        %v4370 = vsel %vm580, %v4367, %v4369
        %v4373 = vadd.f32 %v4305, %v4368
        %v4374 = vadd.f32 %v4306, %v4370
        %s4375 = sld [smem:[#allocation6 + $0x19]]
        %v4376 = vstv %s4375
        %v4377 = vmul.f32 %v4376, %v3932
        %v4378 = vmul.f32 %v4376, %v3933
        %v4379 = vmul.f32 %v4376, %v3934
        %v4383 = vrot.slane %v4377, 2
        %v4384 = vrot.slane %v4378, 2
        %v4385 = vsel %vm580, %v4383, %v4384
        %v4386 = vrot.slane %v4379, 2
        %v4387 = vsel %vm580, %v4384, %v4386
        %4388 = vrot.lane.b32.xlu0 %v4385, 127
        %v4389 = vpop.permute.xlu0 %4388
        %4390 = vrot.lane.b32.xlu0 %v4387, 127
        %v4391 = vpop.permute.xlu0 %4390
        %v4394 = vadd.f32 %v4322, %v4389
        %v4395 = vadd.f32 %v4323, %v4391
        %s4396 = sld [smem:[#allocation6 + $0x3d]]
        %v4397 = vstv %s4396
        %v4398 = vmul.f32 %v4397, %v3932
        %v4399 = vmul.f32 %v4397, %v3933
        %v4400 = vmul.f32 %v4397, %v3934
        %v4404 = vrot.slane %v4398, 2
        %v4405 = vrot.slane %v4399, 2
        %v4406 = vsel %vm580, %v4404, %v4405
        %v4407 = vrot.slane %v4400, 2
        %v4408 = vsel %vm580, %v4405, %v4407
        %4409 = vrot.lane.b32.xlu0 %v4406, 127
        %v4410 = vpop.permute.xlu0 %4409
        %4411 = vrot.lane.b32.xlu0 %v4408, 127
        %v4412 = vpop.permute.xlu0 %4411
        %v4415 = vadd.f32 %v4339, %v4410
        %v4416 = vadd.f32 %v4340, %v4412
        %s4417 = sld [smem:[#allocation6 + $0x61]]
        %v4418 = vstv %s4417
        %v4419 = vmul.f32 %v4418, %v3932
        %v4420 = vmul.f32 %v4418, %v3933
        %v4421 = vmul.f32 %v4418, %v3934
        %v4425 = vrot.slane %v4419, 2
        %v4426 = vrot.slane %v4420, 2
        %v4427 = vsel %vm580, %v4425, %v4426
        %v4428 = vrot.slane %v4421, 2
        %v4429 = vsel %vm580, %v4426, %v4428
        %4430 = vrot.lane.b32.xlu0 %v4427, 127
        %v4431 = vpop.permute.xlu0 %4430
        %4432 = vrot.lane.b32.xlu0 %v4429, 127
        %v4433 = vpop.permute.xlu0 %4432
        %v4436 = vadd.f32 %v4356, %v4431
        %v4437 = vadd.f32 %v4357, %v4433
        %s4438 = sld [smem:[#allocation6 + $0x85]]
        %v4439 = vstv %s4438
        %v4440 = vmul.f32 %v4439, %v3932
        %v4441 = vmul.f32 %v4439, %v3933
        %v4442 = vmul.f32 %v4439, %v3934
        %v4446 = vrot.slane %v4440, 2
        %v4447 = vrot.slane %v4441, 2
        %v4448 = vsel %vm580, %v4446, %v4447
        %v4449 = vrot.slane %v4442, 2
        %v4450 = vsel %vm580, %v4447, %v4449
        %4451 = vrot.lane.b32.xlu0 %v4448, 127
        %v4452 = vpop.permute.xlu0 %4451
        %4453 = vrot.lane.b32.xlu0 %v4450, 127
        %v4454 = vpop.permute.xlu0 %4453
        %v4457 = vadd.f32 %v4373, %v4452
        %v4458 = vadd.f32 %v4374, %v4454
        %s4459 = sld [smem:[#allocation6 + $0x1a]]
        %v4460 = vstv %s4459
        %v4461 = vmul.f32 %v4460, %v3932
        %v4462 = vmul.f32 %v4460, %v3933
        %v4463 = vmul.f32 %v4460, %v3934
        %v4467 = vrot.slane %v4461, 2
        %v4468 = vrot.slane %v4462, 2
        %v4469 = vsel %vm580, %v4467, %v4468
        %v4470 = vrot.slane %v4463, 2
        %v4471 = vsel %vm580, %v4468, %v4470
        %4472 = vrot.lane.b32.xlu0 %v4469, 126
        %v4473 = vpop.permute.xlu0 %4472
        %4474 = vrot.lane.b32.xlu0 %v4471, 126
        %v4475 = vpop.permute.xlu0 %4474
        %v4478 = vadd.f32 %v4394, %v4473
        %v4479 = vadd.f32 %v4395, %v4475
        %s4480 = sld [smem:[#allocation6 + $0x3e]]
        %v4481 = vstv %s4480
        %v4482 = vmul.f32 %v4481, %v3932
        %v4483 = vmul.f32 %v4481, %v3933
        %v4484 = vmul.f32 %v4481, %v3934
        %v4488 = vrot.slane %v4482, 2
        %v4489 = vrot.slane %v4483, 2
        %v4490 = vsel %vm580, %v4488, %v4489
        %v4491 = vrot.slane %v4484, 2
        %v4492 = vsel %vm580, %v4489, %v4491
        %4493 = vrot.lane.b32.xlu0 %v4490, 126
        %v4494 = vpop.permute.xlu0 %4493
        %4495 = vrot.lane.b32.xlu0 %v4492, 126
        %v4496 = vpop.permute.xlu0 %4495
        %v4499 = vadd.f32 %v4415, %v4494
        %v4500 = vadd.f32 %v4416, %v4496
        %s4501 = sld [smem:[#allocation6 + $0x62]]
        %v4502 = vstv %s4501
        %v4503 = vmul.f32 %v4502, %v3932
        %v4504 = vmul.f32 %v4502, %v3933
        %v4505 = vmul.f32 %v4502, %v3934
        %v4509 = vrot.slane %v4503, 2
        %v4510 = vrot.slane %v4504, 2
        %v4511 = vsel %vm580, %v4509, %v4510
        %v4512 = vrot.slane %v4505, 2
        %v4513 = vsel %vm580, %v4510, %v4512
        %4514 = vrot.lane.b32.xlu0 %v4511, 126
        %v4515 = vpop.permute.xlu0 %4514
        %4516 = vrot.lane.b32.xlu0 %v4513, 126
        %v4517 = vpop.permute.xlu0 %4516
        %v4520 = vadd.f32 %v4436, %v4515
        %v4521 = vadd.f32 %v4437, %v4517
        %s4522 = sld [smem:[#allocation6 + $0x86]]
        %v4523 = vstv %s4522
        %v4524 = vmul.f32 %v4523, %v3932
        %v4525 = vmul.f32 %v4523, %v3933
        %v4526 = vmul.f32 %v4523, %v3934
        %v4530 = vrot.slane %v4524, 2
        %v4531 = vrot.slane %v4525, 2
        %v4532 = vsel %vm580, %v4530, %v4531
        %v4533 = vrot.slane %v4526, 2
        %v4534 = vsel %vm580, %v4531, %v4533
        %4535 = vrot.lane.b32.xlu0 %v4532, 126
        %v4536 = vpop.permute.xlu0 %4535
        %4537 = vrot.lane.b32.xlu0 %v4534, 126
        %v4538 = vpop.permute.xlu0 %4537
        %v4541 = vadd.f32 %v4457, %v4536
        %v4542 = vadd.f32 %v4458, %v4538
        %s4543 = scalar_lea.vmem [#allocation2], 72
        %v4544 = vld [vmem:[%s4543] sm:$0xff]
        %v4545 = vld [vmem:[%s4543 + $0x8] sm:$0xff]
        %v4546 = vld [vmem:[%s4543 + $0x10] sm:$0x3]
        %s4547 = sld [smem:[#allocation6 + $0x1b]]
        %v4548 = vstv %s4547
        %v4549 = vmul.f32 %v4548, %v4544
        %v4550 = vmul.f32 %v4548, %v4545
        %v4551 = vadd.f32 %v4478, %v4549
        %v4552 = vadd.f32 %v4479, %v4550
        %s4553 = sld [smem:[#allocation6 + $0x3f]]
        %v4554 = vstv %s4553
        %v4555 = vmul.f32 %v4554, %v4544
        %v4556 = vmul.f32 %v4554, %v4545
        %v4557 = vadd.f32 %v4499, %v4555
        %v4558 = vadd.f32 %v4500, %v4556
        %s4559 = sld [smem:[#allocation6 + $0x63]]
        %v4560 = vstv %s4559
        %v4561 = vmul.f32 %v4560, %v4544
        %v4562 = vmul.f32 %v4560, %v4545
        %v4563 = vadd.f32 %v4520, %v4561
        %v4564 = vadd.f32 %v4521, %v4562
        %s4565 = sld [smem:[#allocation6 + $0x87]]
        %v4566 = vstv %s4565
        %v4567 = vmul.f32 %v4566, %v4544
        %v4568 = vmul.f32 %v4566, %v4545
        %v4569 = vadd.f32 %v4541, %v4567
        %v4570 = vadd.f32 %v4542, %v4568
        %s4571 = sld [smem:[#allocation6 + $0x1c]]
        %v4572 = vstv %s4571
        %v4573 = vmul.f32 %v4572, %v4544
        %v4574 = vmul.f32 %v4572, %v4545
        %4577 = vrot.lane.b32.xlu0 %v4573, 127
        %v4578 = vpop.permute.xlu0 %4577
        %4579 = vrot.lane.b32.xlu0 %v4574, 127
        %v4580 = vpop.permute.xlu0 %4579
        %v4583 = vadd.f32 %v4551, %v4578
        %v4584 = vadd.f32 %v4552, %v4580
        %s4585 = sld [smem:[#allocation6 + $0x40]]
        %v4586 = vstv %s4585
        %v4587 = vmul.f32 %v4586, %v4544
        %v4588 = vmul.f32 %v4586, %v4545
        %4591 = vrot.lane.b32.xlu0 %v4587, 127
        %v4592 = vpop.permute.xlu0 %4591
        %4593 = vrot.lane.b32.xlu0 %v4588, 127
        %v4594 = vpop.permute.xlu0 %4593
        %v4597 = vadd.f32 %v4557, %v4592
        %v4598 = vadd.f32 %v4558, %v4594
        %s4599 = sld [smem:[#allocation6 + $0x64]]
        %v4600 = vstv %s4599
        %v4601 = vmul.f32 %v4600, %v4544
        %v4602 = vmul.f32 %v4600, %v4545
        %4605 = vrot.lane.b32.xlu0 %v4601, 127
        %v4606 = vpop.permute.xlu0 %4605
        %4607 = vrot.lane.b32.xlu0 %v4602, 127
        %v4608 = vpop.permute.xlu0 %4607
        %v4611 = vadd.f32 %v4563, %v4606
        %v4612 = vadd.f32 %v4564, %v4608
        %s4613 = sld [smem:[#allocation6 + $0x88]]
        %v4614 = vstv %s4613
        %v4615 = vmul.f32 %v4614, %v4544
        %v4616 = vmul.f32 %v4614, %v4545
        %4619 = vrot.lane.b32.xlu0 %v4615, 127
        %v4620 = vpop.permute.xlu0 %4619
        %4621 = vrot.lane.b32.xlu0 %v4616, 127
        %v4622 = vpop.permute.xlu0 %4621
        %v4625 = vadd.f32 %v4569, %v4620
        %v4626 = vadd.f32 %v4570, %v4622
        %s4627 = sld [smem:[#allocation6 + $0x1d]]
        %v4628 = vstv %s4627
        %v4629 = vmul.f32 %v4628, %v4544
        %v4630 = vmul.f32 %v4628, %v4545
        %4633 = vrot.lane.b32.xlu0 %v4629, 126
        %v4634 = vpop.permute.xlu0 %4633
        %4635 = vrot.lane.b32.xlu0 %v4630, 126
        %v4636 = vpop.permute.xlu0 %4635
        %v4639 = vadd.f32 %v4583, %v4634
        %v4640 = vadd.f32 %v4584, %v4636
        %s4641 = sld [smem:[#allocation6 + $0x41]]
        %v4642 = vstv %s4641
        %v4643 = vmul.f32 %v4642, %v4544
        %v4644 = vmul.f32 %v4642, %v4545
        %4647 = vrot.lane.b32.xlu0 %v4643, 126
        %v4648 = vpop.permute.xlu0 %4647
        %4649 = vrot.lane.b32.xlu0 %v4644, 126
        %v4650 = vpop.permute.xlu0 %4649
        %v4653 = vadd.f32 %v4597, %v4648
        %v4654 = vadd.f32 %v4598, %v4650
        %s4655 = sld [smem:[#allocation6 + $0x65]]
        %v4656 = vstv %s4655
        %v4657 = vmul.f32 %v4656, %v4544
        %v4658 = vmul.f32 %v4656, %v4545
        %4661 = vrot.lane.b32.xlu0 %v4657, 126
        %v4662 = vpop.permute.xlu0 %4661
        %4663 = vrot.lane.b32.xlu0 %v4658, 126
        %v4664 = vpop.permute.xlu0 %4663
        %v4667 = vadd.f32 %v4611, %v4662
        %v4668 = vadd.f32 %v4612, %v4664
        %s4669 = sld [smem:[#allocation6 + $0x89]]
        %v4670 = vstv %s4669
        %v4671 = vmul.f32 %v4670, %v4544
        %v4672 = vmul.f32 %v4670, %v4545
        %4675 = vrot.lane.b32.xlu0 %v4671, 126
        %v4676 = vpop.permute.xlu0 %4675
        %4677 = vrot.lane.b32.xlu0 %v4672, 126
        %v4678 = vpop.permute.xlu0 %4677
        %v4681 = vadd.f32 %v4625, %v4676
        %v4682 = vadd.f32 %v4626, %v4678
        %s4683 = sld [smem:[#allocation6 + $0x1e]]
        %v4684 = vstv %s4683
        %v4685 = vmul.f32 %v4684, %v4544
        %v4686 = vmul.f32 %v4684, %v4545
        %v4687 = vmul.f32 %v4684, %v4546
        %v4691 = vrot.slane %v4685, 1
        %v4692 = vrot.slane %v4686, 1
        %v4693 = vsel %vm343, %v4691, %v4692
        %v4694 = vrot.slane %v4687, 1
        %v4695 = vsel %vm343, %v4692, %v4694
        %v4698 = vadd.f32 %v4639, %v4693
        %v4699 = vadd.f32 %v4640, %v4695
        %s4700 = sld [smem:[#allocation6 + $0x42]]
        %v4701 = vstv %s4700
        %v4702 = vmul.f32 %v4701, %v4544
        %v4703 = vmul.f32 %v4701, %v4545
        %v4704 = vmul.f32 %v4701, %v4546
        %v4708 = vrot.slane %v4702, 1
        %v4709 = vrot.slane %v4703, 1
        %v4710 = vsel %vm343, %v4708, %v4709
        %v4711 = vrot.slane %v4704, 1
        %v4712 = vsel %vm343, %v4709, %v4711
        %v4715 = vadd.f32 %v4653, %v4710
        %v4716 = vadd.f32 %v4654, %v4712
        %s4717 = sld [smem:[#allocation6 + $0x66]]
        %v4718 = vstv %s4717
        %v4719 = vmul.f32 %v4718, %v4544
        %v4720 = vmul.f32 %v4718, %v4545
        %v4721 = vmul.f32 %v4718, %v4546
        %v4725 = vrot.slane %v4719, 1
        %v4726 = vrot.slane %v4720, 1
        %v4727 = vsel %vm343, %v4725, %v4726
        %v4728 = vrot.slane %v4721, 1
        %v4729 = vsel %vm343, %v4726, %v4728
        %v4732 = vadd.f32 %v4667, %v4727
        %v4733 = vadd.f32 %v4668, %v4729
        %s4734 = sld [smem:[#allocation6 + $0x8a]]
        %v4735 = vstv %s4734
        %v4736 = vmul.f32 %v4735, %v4544
        %v4737 = vmul.f32 %v4735, %v4545
        %v4738 = vmul.f32 %v4735, %v4546
        %v4742 = vrot.slane %v4736, 1
        %v4743 = vrot.slane %v4737, 1
        %v4744 = vsel %vm343, %v4742, %v4743
        %v4745 = vrot.slane %v4738, 1
        %v4746 = vsel %vm343, %v4743, %v4745
        %v4749 = vadd.f32 %v4681, %v4744
        %v4750 = vadd.f32 %v4682, %v4746
        %s4751 = sld [smem:[#allocation6 + $0x1f]]
        %v4752 = vstv %s4751
        %v4753 = vmul.f32 %v4752, %v4544
        %v4754 = vmul.f32 %v4752, %v4545
        %v4755 = vmul.f32 %v4752, %v4546
        %v4759 = vrot.slane %v4753, 1
        %v4760 = vrot.slane %v4754, 1
        %v4761 = vsel %vm343, %v4759, %v4760
        %v4762 = vrot.slane %v4755, 1
        %v4763 = vsel %vm343, %v4760, %v4762
        %4764 = vrot.lane.b32.xlu0 %v4761, 127
        %v4765 = vpop.permute.xlu0 %4764
        %4766 = vrot.lane.b32.xlu0 %v4763, 127
        %v4767 = vpop.permute.xlu0 %4766
        %v4770 = vadd.f32 %v4698, %v4765
        %v4771 = vadd.f32 %v4699, %v4767
        %s4772 = sld [smem:[#allocation6 + $0x43]]
        %v4773 = vstv %s4772
        %v4774 = vmul.f32 %v4773, %v4544
        %v4775 = vmul.f32 %v4773, %v4545
        %v4776 = vmul.f32 %v4773, %v4546
        %v4780 = vrot.slane %v4774, 1
        %v4781 = vrot.slane %v4775, 1
        %v4782 = vsel %vm343, %v4780, %v4781
        %v4783 = vrot.slane %v4776, 1
        %v4784 = vsel %vm343, %v4781, %v4783
        %4785 = vrot.lane.b32.xlu0 %v4782, 127
        %v4786 = vpop.permute.xlu0 %4785
        %4787 = vrot.lane.b32.xlu0 %v4784, 127
        %v4788 = vpop.permute.xlu0 %4787
        %v4791 = vadd.f32 %v4715, %v4786
        %v4792 = vadd.f32 %v4716, %v4788
        %s4793 = sld [smem:[#allocation6 + $0x67]]
        %v4794 = vstv %s4793
        %v4795 = vmul.f32 %v4794, %v4544
        %v4796 = vmul.f32 %v4794, %v4545
        %v4797 = vmul.f32 %v4794, %v4546
        %v4801 = vrot.slane %v4795, 1
        %v4802 = vrot.slane %v4796, 1
        %v4803 = vsel %vm343, %v4801, %v4802
        %v4804 = vrot.slane %v4797, 1
        %v4805 = vsel %vm343, %v4802, %v4804
        %4806 = vrot.lane.b32.xlu0 %v4803, 127
        %v4807 = vpop.permute.xlu0 %4806
        %4808 = vrot.lane.b32.xlu0 %v4805, 127
        %v4809 = vpop.permute.xlu0 %4808
        %v4812 = vadd.f32 %v4732, %v4807
        %v4813 = vadd.f32 %v4733, %v4809
        %s4814 = sld [smem:[#allocation6 + $0x8b]]
        %v4815 = vstv %s4814
        %v4816 = vmul.f32 %v4815, %v4544
        %v4817 = vmul.f32 %v4815, %v4545
        %v4818 = vmul.f32 %v4815, %v4546
        %v4822 = vrot.slane %v4816, 1
        %v4823 = vrot.slane %v4817, 1
        %v4824 = vsel %vm343, %v4822, %v4823
        %v4825 = vrot.slane %v4818, 1
        %v4826 = vsel %vm343, %v4823, %v4825
        %4827 = vrot.lane.b32.xlu0 %v4824, 127
        %v4828 = vpop.permute.xlu0 %4827
        %4829 = vrot.lane.b32.xlu0 %v4826, 127
        %v4830 = vpop.permute.xlu0 %4829
        %v4833 = vadd.f32 %v4749, %v4828
        %v4834 = vadd.f32 %v4750, %v4830
        %s4835 = sld [smem:[#allocation6 + $0x20]]
        %v4836 = vstv %s4835
        %v4837 = vmul.f32 %v4836, %v4544
        %v4838 = vmul.f32 %v4836, %v4545
        %v4839 = vmul.f32 %v4836, %v4546
        %v4843 = vrot.slane %v4837, 1
        %v4844 = vrot.slane %v4838, 1
        %v4845 = vsel %vm343, %v4843, %v4844
        %v4846 = vrot.slane %v4839, 1
        %v4847 = vsel %vm343, %v4844, %v4846
        %4848 = vrot.lane.b32.xlu0 %v4845, 126
        %v4849 = vpop.permute.xlu0 %4848
        %4850 = vrot.lane.b32.xlu0 %v4847, 126
        %v4851 = vpop.permute.xlu0 %4850
        %v4854 = vadd.f32 %v4770, %v4849
        %v4855 = vadd.f32 %v4771, %v4851
        %s4856 = sld [smem:[#allocation6 + $0x44]]
        %v4857 = vstv %s4856
        %v4858 = vmul.f32 %v4857, %v4544
        %v4859 = vmul.f32 %v4857, %v4545
        %v4860 = vmul.f32 %v4857, %v4546
        %v4864 = vrot.slane %v4858, 1
        %v4865 = vrot.slane %v4859, 1
        %v4866 = vsel %vm343, %v4864, %v4865
        %v4867 = vrot.slane %v4860, 1
        %v4868 = vsel %vm343, %v4865, %v4867
        %4869 = vrot.lane.b32.xlu0 %v4866, 126
        %v4870 = vpop.permute.xlu0 %4869
        %4871 = vrot.lane.b32.xlu0 %v4868, 126
        %v4872 = vpop.permute.xlu0 %4871
        %v4875 = vadd.f32 %v4791, %v4870
        %v4876 = vadd.f32 %v4792, %v4872
        %s4877 = sld [smem:[#allocation6 + $0x68]]
        %v4878 = vstv %s4877
        %v4879 = vmul.f32 %v4878, %v4544
        %v4880 = vmul.f32 %v4878, %v4545
        %v4881 = vmul.f32 %v4878, %v4546
        %v4885 = vrot.slane %v4879, 1
        %v4886 = vrot.slane %v4880, 1
        %v4887 = vsel %vm343, %v4885, %v4886
        %v4888 = vrot.slane %v4881, 1
        %v4889 = vsel %vm343, %v4886, %v4888
        %4890 = vrot.lane.b32.xlu0 %v4887, 126
        %v4891 = vpop.permute.xlu0 %4890
        %4892 = vrot.lane.b32.xlu0 %v4889, 126
        %v4893 = vpop.permute.xlu0 %4892
        %v4896 = vadd.f32 %v4812, %v4891
        %v4897 = vadd.f32 %v4813, %v4893
        %s4898 = sld [smem:[#allocation6 + $0x8c]]
        %v4899 = vstv %s4898
        %v4900 = vmul.f32 %v4899, %v4544
        %v4901 = vmul.f32 %v4899, %v4545
        %v4902 = vmul.f32 %v4899, %v4546
        %v4906 = vrot.slane %v4900, 1
        %v4907 = vrot.slane %v4901, 1
        %v4908 = vsel %vm343, %v4906, %v4907
        %v4909 = vrot.slane %v4902, 1
        %v4910 = vsel %vm343, %v4907, %v4909
        %4911 = vrot.lane.b32.xlu0 %v4908, 126
        %v4912 = vpop.permute.xlu0 %4911
        %4913 = vrot.lane.b32.xlu0 %v4910, 126
        %v4914 = vpop.permute.xlu0 %4913
        %v4917 = vadd.f32 %v4833, %v4912
        %v4918 = vadd.f32 %v4834, %v4914
        %s4919 = sld [smem:[#allocation6 + $0x21]]
        %v4920 = vstv %s4919
        %v4921 = vmul.f32 %v4920, %v4544
        %v4922 = vmul.f32 %v4920, %v4545
        %v4923 = vmul.f32 %v4920, %v4546
        %v4927 = vrot.slane %v4921, 2
        %v4928 = vrot.slane %v4922, 2
        %v4929 = vsel %vm580, %v4927, %v4928
        %v4930 = vrot.slane %v4923, 2
        %v4931 = vsel %vm580, %v4928, %v4930
        %v4934 = vadd.f32 %v4854, %v4929
        %v4935 = vadd.f32 %v4855, %v4931
        %s4936 = sld [smem:[#allocation6 + $0x45]]
        %v4937 = vstv %s4936
        %v4938 = vmul.f32 %v4937, %v4544
        %v4939 = vmul.f32 %v4937, %v4545
        %v4940 = vmul.f32 %v4937, %v4546
        %v4944 = vrot.slane %v4938, 2
        %v4945 = vrot.slane %v4939, 2
        %v4946 = vsel %vm580, %v4944, %v4945
        %v4947 = vrot.slane %v4940, 2
        %v4948 = vsel %vm580, %v4945, %v4947
        %v4951 = vadd.f32 %v4875, %v4946
        %v4952 = vadd.f32 %v4876, %v4948
        %s4953 = sld [smem:[#allocation6 + $0x69]]
        %v4954 = vstv %s4953
        %v4955 = vmul.f32 %v4954, %v4544
        %v4956 = vmul.f32 %v4954, %v4545
        %v4957 = vmul.f32 %v4954, %v4546
        %v4961 = vrot.slane %v4955, 2
        %v4962 = vrot.slane %v4956, 2
        %v4963 = vsel %vm580, %v4961, %v4962
        %v4964 = vrot.slane %v4957, 2
        %v4965 = vsel %vm580, %v4962, %v4964
        %v4968 = vadd.f32 %v4896, %v4963
        %v4969 = vadd.f32 %v4897, %v4965
        %s4970 = sld [smem:[#allocation6 + $0x8d]]
        %v4971 = vstv %s4970
        %v4972 = vmul.f32 %v4971, %v4544
        %v4973 = vmul.f32 %v4971, %v4545
        %v4974 = vmul.f32 %v4971, %v4546
        %v4978 = vrot.slane %v4972, 2
        %v4979 = vrot.slane %v4973, 2
        %v4980 = vsel %vm580, %v4978, %v4979
        %v4981 = vrot.slane %v4974, 2
        %v4982 = vsel %vm580, %v4979, %v4981
        %v4985 = vadd.f32 %v4917, %v4980
        %v4986 = vadd.f32 %v4918, %v4982
        %s4987 = sld [smem:[#allocation6 + $0x22]]
        %v4988 = vstv %s4987
        %v4989 = vmul.f32 %v4988, %v4544
        %v4990 = vmul.f32 %v4988, %v4545
        %v4991 = vmul.f32 %v4988, %v4546
        %v4995 = vrot.slane %v4989, 2
        %v4996 = vrot.slane %v4990, 2
        %v4997 = vsel %vm580, %v4995, %v4996
        %v4998 = vrot.slane %v4991, 2
        %v4999 = vsel %vm580, %v4996, %v4998
        %5000 = vrot.lane.b32.xlu0 %v4997, 127
        %v5001 = vpop.permute.xlu0 %5000
        %5002 = vrot.lane.b32.xlu0 %v4999, 127
        %v5003 = vpop.permute.xlu0 %5002
        %v5006 = vadd.f32 %v4934, %v5001
        %v5007 = vadd.f32 %v4935, %v5003
        %s5008 = sld [smem:[#allocation6 + $0x46]]
        %v5009 = vstv %s5008
        %v5010 = vmul.f32 %v5009, %v4544
        %v5011 = vmul.f32 %v5009, %v4545
        %v5012 = vmul.f32 %v5009, %v4546
        %v5016 = vrot.slane %v5010, 2
        %v5017 = vrot.slane %v5011, 2
        %v5018 = vsel %vm580, %v5016, %v5017
        %v5019 = vrot.slane %v5012, 2
        %v5020 = vsel %vm580, %v5017, %v5019
        %5021 = vrot.lane.b32.xlu0 %v5018, 127
        %v5022 = vpop.permute.xlu0 %5021
        %5023 = vrot.lane.b32.xlu0 %v5020, 127
        %v5024 = vpop.permute.xlu0 %5023
        %v5027 = vadd.f32 %v4951, %v5022
        %v5028 = vadd.f32 %v4952, %v5024
        %s5029 = sld [smem:[#allocation6 + $0x6a]]
        %v5030 = vstv %s5029
        %v5031 = vmul.f32 %v5030, %v4544
        %v5032 = vmul.f32 %v5030, %v4545
        %v5033 = vmul.f32 %v5030, %v4546
        %v5037 = vrot.slane %v5031, 2
        %v5038 = vrot.slane %v5032, 2
        %v5039 = vsel %vm580, %v5037, %v5038
        %v5040 = vrot.slane %v5033, 2
        %v5041 = vsel %vm580, %v5038, %v5040
        %5042 = vrot.lane.b32.xlu0 %v5039, 127
        %v5043 = vpop.permute.xlu0 %5042
        %5044 = vrot.lane.b32.xlu0 %v5041, 127
        %v5045 = vpop.permute.xlu0 %5044
        %v5048 = vadd.f32 %v4968, %v5043
        %v5049 = vadd.f32 %v4969, %v5045
        %s5050 = sld [smem:[#allocation6 + $0x8e]]
        %v5051 = vstv %s5050
        %v5052 = vmul.f32 %v5051, %v4544
        %v5053 = vmul.f32 %v5051, %v4545
        %v5054 = vmul.f32 %v5051, %v4546
        %v5058 = vrot.slane %v5052, 2
        %v5059 = vrot.slane %v5053, 2
        %v5060 = vsel %vm580, %v5058, %v5059
        %v5061 = vrot.slane %v5054, 2
        %v5062 = vsel %vm580, %v5059, %v5061
        %5063 = vrot.lane.b32.xlu0 %v5060, 127
        %v5064 = vpop.permute.xlu0 %5063
        %5065 = vrot.lane.b32.xlu0 %v5062, 127
        %v5066 = vpop.permute.xlu0 %5065
        %v5069 = vadd.f32 %v4985, %v5064
        %v5070 = vadd.f32 %v4986, %v5066
        %s5071 = sld [smem:[#allocation6 + $0x23]]
        %v5072 = vstv %s5071
        %v5073 = vmul.f32 %v5072, %v4544
        %v5074 = vmul.f32 %v5072, %v4545
        %v5075 = vmul.f32 %v5072, %v4546
        %v5079 = vrot.slane %v5073, 2
        %v5080 = vrot.slane %v5074, 2
        %v5081 = vsel %vm580, %v5079, %v5080
        %v5082 = vrot.slane %v5075, 2
        %v5083 = vsel %vm580, %v5080, %v5082
        %5084 = vrot.lane.b32.xlu0 %v5081, 126
        %v5085 = vpop.permute.xlu0 %5084
        %5086 = vrot.lane.b32.xlu0 %v5083, 126
        %v5087 = vpop.permute.xlu0 %5086
        %v5090 = vadd.f32 %v5006, %v5085
        %v5091 = vadd.f32 %v5007, %v5087
        %s5092 = sld [smem:[#allocation6 + $0x47]]
        %v5093 = vstv %s5092
        %v5094 = vmul.f32 %v5093, %v4544
        %v5095 = vmul.f32 %v5093, %v4545
        %v5096 = vmul.f32 %v5093, %v4546
        %v5100 = vrot.slane %v5094, 2
        %v5101 = vrot.slane %v5095, 2
        %v5102 = vsel %vm580, %v5100, %v5101
        %v5103 = vrot.slane %v5096, 2
        %v5104 = vsel %vm580, %v5101, %v5103
        %5105 = vrot.lane.b32.xlu0 %v5102, 126
        %v5106 = vpop.permute.xlu0 %5105
        %5107 = vrot.lane.b32.xlu0 %v5104, 126
        %v5108 = vpop.permute.xlu0 %5107
        %v5111 = vadd.f32 %v5027, %v5106
        %v5112 = vadd.f32 %v5028, %v5108
        %s5113 = sld [smem:[#allocation6 + $0x6b]]
        %v5114 = vstv %s5113
        %v5115 = vmul.f32 %v5114, %v4544
        %v5116 = vmul.f32 %v5114, %v4545
        %v5117 = vmul.f32 %v5114, %v4546
        %v5121 = vrot.slane %v5115, 2
        %v5122 = vrot.slane %v5116, 2
        %v5123 = vsel %vm580, %v5121, %v5122
        %v5124 = vrot.slane %v5117, 2
        %v5125 = vsel %vm580, %v5122, %v5124
        %5126 = vrot.lane.b32.xlu0 %v5123, 126
        %v5127 = vpop.permute.xlu0 %5126
        %5128 = vrot.lane.b32.xlu0 %v5125, 126
        %v5129 = vpop.permute.xlu0 %5128
        %v5132 = vadd.f32 %v5048, %v5127
        %v5133 = vadd.f32 %v5049, %v5129
        %s5134 = sld [smem:[#allocation6 + $0x8f]]
        %v5135 = vstv %s5134
        %v5136 = vmul.f32 %v5135, %v4544
        %v5137 = vmul.f32 %v5135, %v4545
        %v5138 = vmul.f32 %v5135, %v4546
        %v5142 = vrot.slane %v5136, 2
        %v5143 = vrot.slane %v5137, 2
        %v5144 = vsel %vm580, %v5142, %v5143
        %v5145 = vrot.slane %v5138, 2
        %v5146 = vsel %vm580, %v5143, %v5145
        %5147 = vrot.lane.b32.xlu0 %v5144, 126
        %v5148 = vpop.permute.xlu0 %5147
        %5149 = vrot.lane.b32.xlu0 %v5146, 126
        %v5150 = vpop.permute.xlu0 %5149
        %v5153 = vadd.f32 %v5069, %v5148
        %v5154 = vadd.f32 %v5070, %v5150
        %v5155 = vld [vmem:[%s195 + $0x1] sm:$0xff]
        %v5156 = vld [vmem:[%s195 + $0x9] sm:$0xff]
        %v5157 = vld [vmem:[%s195 + $0x19] sm:$0xff]
        %v5158 = vld [vmem:[%s195 + $0x21] sm:$0xff]
        %v5159 = vld [vmem:[%s195 + $0x31] sm:$0xff]
        %v5160 = vld [vmem:[%s195 + $0x39] sm:$0xff]
        %v5161 = vld [vmem:[%s195 + $0x49] sm:$0xff]
        %v5162 = vld [vmem:[%s195 + $0x51] sm:$0xff]
        %5171 = vrot.lane.b32.xlu0 %v5155, 126
        %v5172 = vpop.permute.xlu0 %5171
        %5173 = vrot.lane.b32.xlu0 %v5156, 126
        %v5174 = vpop.permute.xlu0 %5173
        %5175 = vrot.lane.b32.xlu0 %v5157, 126
        %v5176 = vpop.permute.xlu0 %5175
        %5177 = vrot.lane.b32.xlu0 %v5158, 126
        %v5178 = vpop.permute.xlu0 %5177
        %5179 = vrot.lane.b32.xlu0 %v5159, 126
        %v5180 = vpop.permute.xlu0 %5179
        %5181 = vrot.lane.b32.xlu0 %v5160, 126
        %v5182 = vpop.permute.xlu0 %5181
        %5183 = vrot.lane.b32.xlu0 %v5161, 126
        %v5184 = vpop.permute.xlu0 %5183
        %5185 = vrot.lane.b32.xlu0 %v5162, 126
        %v5186 = vpop.permute.xlu0 %5185
        %v5195 = vadd.f32 %v5090, %v5172
        %v5196 = vadd.f32 %v5091, %v5174
        %v5197 = vadd.f32 %v5111, %v5176
        %v5198 = vadd.f32 %v5112, %v5178
        %v5199 = vadd.f32 %v5132, %v5180
        %v5200 = vadd.f32 %v5133, %v5182
        %v5201 = vadd.f32 %v5153, %v5184
        %v5202 = vadd.f32 %v5154, %v5186
        %v5203 = vmax.f32 %v5195, 0.0
        %v5204 = vmax.f32 %v5196, 0.0
        %v5205 = vmax.f32 %v5197, 0.0
        %v5206 = vmax.f32 %v5198, 0.0
        %v5207 = vmax.f32 %v5199, 0.0
        %v5208 = vmax.f32 %v5200, 0.0
        %v5209 = vmax.f32 %v5201, 0.0
        %v5210 = vmax.f32 %v5202, 0.0
        %vm5211 = vcmask 130048
        %5212 = vst.msk [vmem:[%s190] sm:$0xff] %vm5211, %v5203
        %5213 = vst.msk [vmem:[%s190 + $0x8] sm:$0xff] %vm5211, %v5204
        %5214 = vst.msk [vmem:[%s190 + $0x10] sm:$0xff] %vm5211, %v5205
        %5215 = vst.msk [vmem:[%s190 + $0x18] sm:$0xff] %vm5211, %v5206
        %5216 = vst.msk [vmem:[%s190 + $0x20] sm:$0xff] %vm5211, %v5207
        %5217 = vst.msk [vmem:[%s190 + $0x28] sm:$0xff] %vm5211, %v5208
        %5218 = vst.msk [vmem:[%s190 + $0x30] sm:$0xff] %vm5211, %v5209
        %5219 = vst.msk [vmem:[%s190 + $0x38] sm:$0xff] %vm5211, %v5210
        %s5220 = sand.u32 %s95, 1
        %s5221 = scalar_lea.sflag [#allocation4], %s5220
        %s5222 = sand.u32 %s95, 1
        %s5223 = smul.addr %s5222, 64
        %s5224 = scalar_lea.vmem [#allocation8], %s5223
        // Predicated region
        $region41: #{tpu_custom_call.1} parent=31 // pred_check
          %p5225 = pneg %p105
        $region42: #{tpu_custom_call.1} parent=31 // pred_check_branch
          %5227 = sbr.rel (%p5225) target = $region44
        $region43: #{tpu_custom_call.1} parent=31 // pred_region
          %5229 = vsyncadd %s5221, 0
          %s5230 = smul.addr %s19, 8
          %s5231 = smul.addr %s5230, 8
          %s5232 = scalar_lea.hbm %s3, %s5231
          %s5233 = sshll.u32 %s5224, 4
          %s5234 = int_to_ptr.vmem [resolvable:$true] %s5233
          %s5235 = sshll.u32 %s5232, 4
          %s5236 = int_to_ptr.hbm [resolvable:$true] %s5235
          %5241 = dma.vmem_to_hbm [thread:$0]  %s5234, 1024, %s5236, %s5221, 128, 128, 8
        $region44: #{tpu_custom_call.1} parent=31 // pred_fallthru
          _
      $region32: #{tpu_custom_call.1} parent=5 // pred_fallthru
        _
      %p5242 = scmp.le.s32.totalorder 2, %s14
      // Predicated region
      $region45: #{tpu_custom_call.1} parent=5 // pred_check
        %p5243 = pneg %p5242
      $region46: #{tpu_custom_call.1} parent=5 // pred_check_branch
        %5245 = sbr.rel (%p5243) target = $region48
      $region47: #{tpu_custom_call.1} parent=5 // pred_region
        %s5246 = ssub.s32 %s14, 2
        // Predicated region
        $region49: #{tpu_custom_call.1} parent=47 // pred_check
          %p5247 = pneg %p111
        $region50: #{tpu_custom_call.1} parent=47 // pred_check_branch
          %5249 = sbr.rel (%p5247) target = $region52
        $region51: #{tpu_custom_call.1} parent=47 // pred_region
          %s5250 = sand.u32 %s96, 1
          %s5251 = scalar_lea.sflag [#allocation4], %s5250
          %s5252 = sand.u32 %s96, 1
          %s5253 = smul.addr %s5252, 64
          %s5254 = scalar_lea.vmem [#allocation8], %s5253
          %5256 = dma.done %s5251, 1024
        $region52: #{tpu_custom_call.1} parent=47 // pred_fallthru
          _
      $region48: #{tpu_custom_call.1} parent=5 // pred_fallthru
        _
    $region6: #{tpu_custom_call.1} parent=1 // loop_footer
      %s18 = sadd.s32 1, %s14
    $region7: #{tpu_custom_call.1} parent=1 // loop_footer_branch
      %13 = sbr.rel target = $region3
    $region8: #{tpu_custom_call.1} parent=1 // loop_exit
      _
    %5257 = vsyncpa [#allocation4], 1
    %s5258 = scalar_lea.sflag [#allocation4], 1
    %5259 = vsyncpa %s5258, 1
    %5260 = vsyncpa [#allocation5], 1
    %s5261 = scalar_lea.sflag [#allocation5], 1
    %5262 = vsyncpa %s5261, 1
    %5263 = vsyncpa [#allocation7], 1

</llo_original>
